<compile_context>
chip_gen: v5e
topology: v5e:2x2
jax: 0.10.0
libtpu: 0.0.40
codegen_flags: <defaults>
</compile_context>

<pallas_src>
import functools

import jax
import jax.numpy as jnp
from jax import lax
from jax.experimental import pallas as pl
from jax.experimental.pallas import tpu as pltpu

EPS = 1e-5  # torch.nn.GroupNorm default eps


def _pick_vmem_limit():
    """Generation-aware scoped-VMEM limit (v5e/v6e: 128 MiB phys, v7x: 64 MiB)."""
    cap = 64 * 1024 * 1024                       # v7x-safe fallback
    try:
        cap = int(pltpu.get_tpu_info().vmem_capacity_bytes)
    except Exception:
        pass
    return max(32 * 1024 * 1024, min(cap * 3 // 4, 100 * 1024 * 1024))


def down_forward(x_stack, params, num_groups):
    """x_stack: (M, N, Cin, D, H, W) f32 (stacked modality list, NCDHW each).
    Returns (M, N, Cout, D//2, H//2, W//2) f32."""
    M, N, Cin, D, H, W = x_stack.shape
    w1, b1, g1, be1 = params["w1"], params["b1"], params["g1"], params["be1"]
    w2, b2, g2, be2 = params["w2"], params["b2"], params["g2"], params["be2"]
    Cmid, Cout = w1.shape[0], w2.shape[0]
    G = num_groups

    Dp, Hp, Wp = D // 2, H // 2, W // 2
    De, He, We = Dp + 2, Hp + 2, Wp + 2            # conv zero-halo of 1
    P = De * He * We                               # flattened haloed grid
    S = Dp * Hp * Wp                               # valid voxels per batch
    maxoff = He * We + We + 1                      # |largest tap offset|
    Pw = ((P + 127) // 128) * 128                  # lane-dense per-batch width
    NPw = N * Pw                                   # batch folded into lanes
    EXT = max(128, ((maxoff + 127) // 128) * 128)  # VMEM-only margin (aligned)
    ext_w = NPw + 2 * EXT

    # flat-space offsets of the 27 conv taps; order matches the weight reshape
    offsets = [(kd - 1) * He * We + (kh - 1) * We + (kw - 1)
               for kd in range(3) for kh in range(3) for kw in range(3)]

    inv_cnt1 = 1.0 / float((Cmid // G) * S)        # 1 / (group_size * S)
    inv_cnt2 = 1.0 / float((Cout // G) * S)

    # ------------- glue (single cheap XLA pass, dense bf16, no halo pad) ----
    xb = x_stack.astype(jnp.bfloat16)
    xr = xb.reshape(M, N, Cin, Dp, 2, Hp, 2, Wp, 2)
    xr = xr.transpose(0, 4, 6, 8, 2, 1, 3, 5, 7)   # (M,2,2,2,Cin,N,Dp,Hp,Wp)
    xr = xr.reshape(M, 8, Cin, N, Dp, Hp, Wp)
    xr = jnp.pad(xr, ((0, 0),) * 4 + ((1, 1), (1, 1), (1, 1)))
    xr = xr.reshape(M, 8, Cin, N, P)
    xr = jnp.pad(xr, ((0, 0),) * 4 + ((0, Pw - P),))
    xr = xr.reshape(M, 8, Cin, NPw)                # batch-major lane segments

    # folded, lane-dense, bf16 conv weights: (Cout, 27*Cin)
    w1f = jnp.transpose(w1, (0, 2, 3, 4, 1)).reshape(Cmid, 27 * Cin)
    w1f = w1f.astype(jnp.bfloat16)
    w2f = jnp.transpose(w2, (0, 2, 3, 4, 1)).reshape(Cout, 27 * Cmid)
    w2f = w2f.astype(jnp.bfloat16)

    b1c = b1.reshape(Cmid, 1).astype(jnp.float32)
    b2c = b2.reshape(Cout, 1).astype(jnp.float32)
    g1c = g1.reshape(M, Cmid, 1).astype(jnp.float32)
    be1c = be1.reshape(M, Cmid, 1).astype(jnp.float32)
    g2c = g2.reshape(M, Cout, 1).astype(jnp.float32)
    be2c = be2.reshape(M, Cout, 1).astype(jnp.float32)

    # validity mask over the NPw working columns (1 = interior voxel)
    m3 = jnp.zeros((De, He, We), jnp.float32)
    m3 = m3.at[1:Dp + 1, 1:Hp + 1, 1:Wp + 1].set(1.0)
    maskP = jnp.pad(m3.reshape(P), (0, Pw - P))
    mask = jnp.tile(maskP, (N,)).reshape(1, NPw)

    # ------------------------------- kernel ---------------------------------
    def kernel(x8_ref, mask_ref, w1_ref, b1_ref, g1_ref, be1_ref,
               w2_ref, b2_ref, g2_ref, be2_ref, o_ref, in_scr, mid_scr):
        # Fused MaxPool3d(2): VPU max over the 8 pre-split corners, in bf16.
        # NOTE(v5e): no bf16 VALU there -> the max pays a convert, but halving
        # the DMA / patch-build traffic still wins.
        pooled = x8_ref[0, 0]
        for k in range(1, 8):
            pooled = jnp.maximum(pooled, x8_ref[0, k])      # (Cin, NPw) bf16
        in_scr[:, EXT:EXT + NPw] = pooled
        # The EXT margins of in_scr / mid_scr are never written: they only feed
        # masked (halo/pad) output columns, which are removed via jnp.where
        # selects below, so no zero-fill of the scratches is needed at all.

        mvalid = mask_ref[...] > 0.5                        # (1, NPw) bool

        def group_sum(v):
            # per-channel (Co,1) sums -> per-group sums broadcast back to
            # channels, on VPU/XLU only (no tiny MXU matmuls).
            Co = v.shape[0]
            cg = Co // G
            if cg == 1:
                return v
            if cg == 2:  # DoubleConv default (e.g. 16 ch / 8 groups)
                up = pltpu.roll(v, Co - 1, 0)               # v[(c+1) % Co]
                dn = pltpu.roll(v, 1, 0)                    # v[(c-1) % Co]
                even = lax.broadcasted_iota(jnp.int32, (Co, 1), 0) % 2 == 0
                return v + jnp.where(even, up, dn)
            # TODO(synk): general group size (unused by the default config).
            s = jnp.sum(v.reshape(G, cg, 1), axis=1, keepdims=True)
            return jnp.broadcast_to(s, (G, cg, 1)).reshape(Co, 1)

        def conv_gn_relu(src, w_ref, b_ref, g_ref, be_ref, inv_cnt, store):
            # 27 statically lane-shifted bf16 views stacked along sublanes ->
            # ONE MXU matmul with the taps folded into K (= 27*C).
            pieces = [src[:, EXT + off:EXT + off + NPw] for off in offsets]
            patch = jnp.concatenate(pieces, axis=0)         # (27*C, NPw) bf16
            y = jnp.dot(w_ref[...], patch,
                        preferred_element_type=jnp.float32) + b_ref[...]
            gamma, beta = g_ref[0], be_ref[0]               # (Co, 1)
            # GroupNorm with per-batch-segment stats (batch lives on lanes, so
            # stats must not leak across segments).
            for b in range(N):
                sl = slice(b * Pw, (b + 1) * Pw)
                yb, mb = y[:, sl], mvalid[:, sl]
                ysum = jnp.sum(jnp.where(mb, yb, 0.0), axis=1, keepdims=True)
                gmean = group_sum(ysum) * inv_cnt
                cen = yb - gmean
                cm = jnp.where(mb, cen, 0.0)
                gvar = group_sum(jnp.sum(cm * cm, axis=1,
                                         keepdims=True)) * inv_cnt
                yn = cen * lax.rsqrt(gvar + EPS) * gamma + beta
                # select (not multiply): halo/pad columns come out exactly 0,
                # the zero-halo layout the next conv relies on, and garbage in
                # the unwritten margins can never propagate.
                store(b, jnp.where(mb, jnp.maximum(yn, 0.0), 0.0))

        def store_mid(b, s):  # inter-stage activation stays in VMEM, bf16
            mid_scr[:, EXT + b * Pw:EXT + (b + 1) * Pw] = s.astype(jnp.bfloat16)

        def store_out(b, s):
            o_ref[0, :, b * Pw:(b + 1) * Pw] = s.astype(o_ref.dtype)

        conv_gn_relu(in_scr, w1_ref, b1_ref, g1_ref, be1_ref, inv_cnt1,
                     store_mid)
        conv_gn_relu(mid_scr, w2_ref, b2_ref, g2_ref, be2_ref, inv_cnt2,
                     store_out)

    out = pl.pallas_call(
        kernel,
        out_shape=jax.ShapeDtypeStruct((M, Cout, NPw), jnp.float32),
        grid=(M,),
        in_specs=[
            pl.BlockSpec((1, 8, Cin, NPw), lambda m: (m, 0, 0, 0)),
            pl.BlockSpec((1, NPw), lambda m: (0, 0)),
            pl.BlockSpec((Cmid, 27 * Cin), lambda m: (0, 0)),
            pl.BlockSpec((Cmid, 1), lambda m: (0, 0)),
            pl.BlockSpec((1, Cmid, 1), lambda m: (m, 0, 0)),
            pl.BlockSpec((1, Cmid, 1), lambda m: (m, 0, 0)),
            pl.BlockSpec((Cout, 27 * Cmid), lambda m: (0, 0)),
            pl.BlockSpec((Cout, 1), lambda m: (0, 0)),
            pl.BlockSpec((1, Cout, 1), lambda m: (m, 0, 0)),
            pl.BlockSpec((1, Cout, 1), lambda m: (m, 0, 0)),
        ],
        out_specs=pl.BlockSpec((1, Cout, NPw), lambda m: (m, 0, 0)),
        scratch_shapes=[pltpu.VMEM((Cin, ext_w), jnp.bfloat16),
                        pltpu.VMEM((Cmid, ext_w), jnp.bfloat16)],
        compiler_params=pltpu.CompilerParams(
            dimension_semantics=("parallel",),
            vmem_limit_bytes=_pick_vmem_limit()),
    )(xr, mask, w1f, b1c, g1c, be1c, w2f, b2c, g2c, be2c)

    # glue: split batch segments, drop halo columns, restore NCDHW
    out = out.reshape(M, Cout, N, Pw).transpose(0, 2, 1, 3)
    out = out[..., :P].reshape(M, N, Cout, De, He, We)
    return out[..., 1:Dp + 1, 1:Hp + 1, 1:Wp + 1]


# ----------------------------------------------------------------------------
# Pure-JAX reference (correctness check).  Conv operands are rounded to bf16,
# matching the kernel's MXU operand precision; everything else is f32.
# ----------------------------------------------------------------------------
def _round_bf16(a):
    return a.astype(jnp.bfloat16).astype(jnp.float32)


def _ref_forward(x_stack, params, num_groups):
    M, N, C, D, H, W = x_stack.shape
    x = x_stack.reshape(M, N, C, D // 2, 2, H // 2, 2, W // 2, 2).max(
        axis=(4, 6, 8))

    def block(x, w, b, g, be):
        Mq, Nq, Ci, Dq, Hq, Wq = x.shape
        Co = w.shape[0]
        xl = jnp.transpose(x, (0, 1, 3, 4, 5, 2)).reshape(Mq * Nq, Dq, Hq, Wq, Ci)
        wt = jnp.transpose(w, (2, 3, 4, 1, 0))  # DHWIO
        y = lax.conv_general_dilated(
            _round_bf16(xl), _round_bf16(wt), (1, 1, 1), "SAME",
            dimension_numbers=("NDHWC", "DHWIO", "NDHWC"),
            precision=lax.Precision.HIGHEST) + b
        y = y.reshape(Mq, Nq, Dq, Hq, Wq, Co)
        yg = y.reshape(Mq, Nq, Dq * Hq * Wq, num_groups, Co // num_groups)
        mean = yg.mean(axis=(2, 4), keepdims=True)
        var = ((yg - mean) ** 2).mean(axis=(2, 4), keepdims=True)
        yn = ((yg - mean) / jnp.sqrt(var + EPS)).reshape(Mq, Nq, Dq, Hq, Wq, Co)
        yn = yn * g[:, None, None, None, None, :] + be[:, None, None, None, None, :]
        yn = jnp.maximum(yn, 0.0)
        return jnp.transpose(yn, (0, 1, 5, 2, 3, 4))

    x = block(x, params["w1"], params["b1"], params["g1"], params["be1"])
    x = block(x, params["w2"], params["b2"], params["g2"], params["be2"])
    return x


if __name__ == "__main__":
    # Down(in_channels=8, out_channels=16), num_modalities=2, batch=2, 8^3 vol.
    M = 2          # num_modalities (length of the parallel list)
    N = 2          # batch
    Cin = 8
    Cout = 16      # mid_channels == out_channels (DoubleConv default)
    D = H = W = 8
    G = 8          # GroupNorm num_groups

    key = jax.random.PRNGKey(0)
    ks = jax.random.split(key, 9)

    fan1 = Cin * 27
    fan2 = Cout * 27
    params = {
        "w1": jax.random.normal(ks[0], (Cout, Cin, 3, 3, 3), jnp.float32)
              * (2.0 / fan1) ** 0.5,
        "b1": jax.random.normal(ks[1], (Cout,), jnp.float32) * 0.05,
        "g1": 1.0 + 0.1 * jax.random.normal(ks[2], (M, Cout), jnp.float32),
        "be1": 0.1 * jax.random.normal(ks[3], (M, Cout), jnp.float32),
        "w2": jax.random.normal(ks[4], (Cout, Cout, 3, 3, 3), jnp.float32)
              * (2.0 / fan2) ** 0.5,
        "b2": jax.random.normal(ks[5], (Cout,), jnp.float32) * 0.05,
        "g2": 1.0 + 0.1 * jax.random.normal(ks[6], (M, Cout), jnp.float32),
        "be2": 0.1 * jax.random.normal(ks[7], (M, Cout), jnp.float32),
    }

    x = jax.random.normal(ks[8], (M, N, Cin, D, H, W), jnp.float32)

    fwd = jax.jit(functools.partial(down_forward, num_groups=G))
    out = jax.block_until_ready(fwd(x, params))
    assert out.shape == (M, N, Cout, D // 2, H // 2, W // 2), out.shape

    ref = jax.block_until_ready(_ref_forward(x, params, G))
    max_err = float(jnp.max(jnp.abs(out - ref)))
    assert jnp.allclose(out, ref, atol=2e-2, rtol=2e-2), max_err

    print("KERNEL_OK")
</pallas_src>

<mosaic_0001>
module attributes {stable_mosaic.version = 11 : i64} {
  func.func @kernel(%arg0: i32, %arg1: memref<1x8x8x512xbf16, #tpu.memory_space<vmem>>, %arg2: memref<1x512xf32, #tpu.memory_space<vmem>>, %arg3: memref<16x216xbf16, #tpu.memory_space<vmem>>, %arg4: memref<16x1xf32, #tpu.memory_space<vmem>>, %arg5: memref<1x16x1xf32, #tpu.memory_space<vmem>>, %arg6: memref<1x16x1xf32, #tpu.memory_space<vmem>>, %arg7: memref<16x432xbf16, #tpu.memory_space<vmem>>, %arg8: memref<16x1xf32, #tpu.memory_space<vmem>>, %arg9: memref<1x16x1xf32, #tpu.memory_space<vmem>>, %arg10: memref<1x16x1xf32, #tpu.memory_space<vmem>>, %arg11: memref<1x16x512xf32, #tpu.memory_space<vmem>>, %arg12: memref<8x768xbf16, #tpu.memory_space<vmem>>, %arg13: memref<16x768xbf16, #tpu.memory_space<vmem>>) attributes {dimension_semantics = [#tpu.dimension_semantics<parallel>], iteration_bounds = array<i64: 2>, scalar_prefetch = 0 : i64, scratch_operands = 2 : i64, tpu.core_type = #tpu.core_type<tc>, window_params = [{transform_indices = @transform_0, window_bounds = array<i64: 1, 8, 8, 512>}, {pipeline_mode = #tpu.pipeline_mode<synchronous>, transform_indices = @transform_1, window_bounds = array<i64: 1, 512>}, {pipeline_mode = #tpu.pipeline_mode<synchronous>, transform_indices = @transform_2, window_bounds = array<i64: 16, 216>}, {pipeline_mode = #tpu.pipeline_mode<synchronous>, transform_indices = @transform_3, window_bounds = array<i64: 16, 1>}, {transform_indices = @transform_4, window_bounds = array<i64: 1, 16, 1>}, {transform_indices = @transform_5, window_bounds = array<i64: 1, 16, 1>}, {pipeline_mode = #tpu.pipeline_mode<synchronous>, transform_indices = @transform_6, window_bounds = array<i64: 16, 432>}, {pipeline_mode = #tpu.pipeline_mode<synchronous>, transform_indices = @transform_7, window_bounds = array<i64: 16, 1>}, {transform_indices = @transform_8, window_bounds = array<i64: 1, 16, 1>}, {transform_indices = @transform_9, window_bounds = array<i64: 1, 16, 1>}, {transform_indices = @transform_10, window_bounds = array<i64: 1, 16, 512>}]} {
    %c0 = arith.constant 0 : index
    %c0_0 = arith.constant 0 : index
    %c0_1 = arith.constant 0 : index
    %c0_2 = arith.constant 0 : index
    %0 = vector.load %arg1[%c0, %c0_0, %c0_1, %c0_2] : memref<1x8x8x512xbf16, #tpu.memory_space<vmem>>, vector<1x1x8x512xbf16>
    %1 = vector.shape_cast %0 : vector<1x1x8x512xbf16> to vector<8x512xbf16>
    %c0_3 = arith.constant 0 : index
    %c1 = arith.constant 1 : index
    %c0_4 = arith.constant 0 : index
    %c0_5 = arith.constant 0 : index
    %2 = vector.load %arg1[%c0_3, %c1, %c0_4, %c0_5] : memref<1x8x8x512xbf16, #tpu.memory_space<vmem>>, vector<1x1x8x512xbf16>
    %3 = vector.shape_cast %2 : vector<1x1x8x512xbf16> to vector<8x512xbf16>
    %4 = arith.maximumf %1, %3 : vector<8x512xbf16>
    %c0_6 = arith.constant 0 : index
    %c2 = arith.constant 2 : index
    %c0_7 = arith.constant 0 : index
    %c0_8 = arith.constant 0 : index
    %5 = vector.load %arg1[%c0_6, %c2, %c0_7, %c0_8] : memref<1x8x8x512xbf16, #tpu.memory_space<vmem>>, vector<1x1x8x512xbf16>
    %6 = vector.shape_cast %5 : vector<1x1x8x512xbf16> to vector<8x512xbf16>
    %7 = arith.maximumf %4, %6 : vector<8x512xbf16>
    %c0_9 = arith.constant 0 : index
    %c3 = arith.constant 3 : index
    %c0_10 = arith.constant 0 : index
    %c0_11 = arith.constant 0 : index
    %8 = vector.load %arg1[%c0_9, %c3, %c0_10, %c0_11] : memref<1x8x8x512xbf16, #tpu.memory_space<vmem>>, vector<1x1x8x512xbf16>
    %9 = vector.shape_cast %8 : vector<1x1x8x512xbf16> to vector<8x512xbf16>
    %10 = arith.maximumf %7, %9 : vector<8x512xbf16>
    %c0_12 = arith.constant 0 : index
    %c4 = arith.constant 4 : index
    %c0_13 = arith.constant 0 : index
    %c0_14 = arith.constant 0 : index
    %11 = vector.load %arg1[%c0_12, %c4, %c0_13, %c0_14] : memref<1x8x8x512xbf16, #tpu.memory_space<vmem>>, vector<1x1x8x512xbf16>
    %12 = vector.shape_cast %11 : vector<1x1x8x512xbf16> to vector<8x512xbf16>
    %13 = arith.maximumf %10, %12 : vector<8x512xbf16>
    %c0_15 = arith.constant 0 : index
    %c5 = arith.constant 5 : index
    %c0_16 = arith.constant 0 : index
    %c0_17 = arith.constant 0 : index
    %14 = vector.load %arg1[%c0_15, %c5, %c0_16, %c0_17] : memref<1x8x8x512xbf16, #tpu.memory_space<vmem>>, vector<1x1x8x512xbf16>
    %15 = vector.shape_cast %14 : vector<1x1x8x512xbf16> to vector<8x512xbf16>
    %16 = arith.maximumf %13, %15 : vector<8x512xbf16>
    %c0_18 = arith.constant 0 : index
    %c6 = arith.constant 6 : index
    %c0_19 = arith.constant 0 : index
    %c0_20 = arith.constant 0 : index
    %17 = vector.load %arg1[%c0_18, %c6, %c0_19, %c0_20] : memref<1x8x8x512xbf16, #tpu.memory_space<vmem>>, vector<1x1x8x512xbf16>
    %18 = vector.shape_cast %17 : vector<1x1x8x512xbf16> to vector<8x512xbf16>
    %19 = arith.maximumf %16, %18 : vector<8x512xbf16>
    %c0_21 = arith.constant 0 : index
    %c7 = arith.constant 7 : index
    %c0_22 = arith.constant 0 : index
    %c0_23 = arith.constant 0 : index
    %20 = vector.load %arg1[%c0_21, %c7, %c0_22, %c0_23] : memref<1x8x8x512xbf16, #tpu.memory_space<vmem>>, vector<1x1x8x512xbf16>
    %21 = vector.shape_cast %20 : vector<1x1x8x512xbf16> to vector<8x512xbf16>
    %22 = arith.maximumf %19, %21 : vector<8x512xbf16>
    %c0_24 = arith.constant 0 : index
    %c128 = arith.constant 128 : index
    %23 = vector.load %arg12[%c0_24, %c128] : memref<8x768xbf16, #tpu.memory_space<vmem>>, vector<8x512xbf16>
    tpu.vector_store %arg12[%c0_24, %c128], %22 {strides = array<i32>} : memref<8x768xbf16, #tpu.memory_space<vmem>>, vector<8x512xbf16>,
    %c0_25 = arith.constant 0 : index
    %c0_26 = arith.constant 0 : index
    %24 = vector.load %arg2[%c0_25, %c0_26] : memref<1x512xf32, #tpu.memory_space<vmem>>, vector<1x512xf32>
    %cst = arith.constant 5.000000e-01 : f32
    %25 = vector.broadcast %cst : f32 to vector<1x512xf32>
    %26 = arith.cmpf ogt, %24, %25 : vector<1x512xf32>
    %c0_27 = arith.constant 0 : index
    %c85 = arith.constant 85 : index
    %27 = vector.load %arg12[%c0_27, %c85] : memref<8x768xbf16, #tpu.memory_space<vmem>>, vector<8x512xbf16>
    %c0_28 = arith.constant 0 : index
    %c86 = arith.constant 86 : index
    %28 = vector.load %arg12[%c0_28, %c86] : memref<8x768xbf16, #tpu.memory_space<vmem>>, vector<8x512xbf16>
    %c0_29 = arith.constant 0 : index
    %c87 = arith.constant 87 : index
    %29 = vector.load %arg12[%c0_29, %c87] : memref<8x768xbf16, #tpu.memory_space<vmem>>, vector<8x512xbf16>
    %c0_30 = arith.constant 0 : index
    %c91 = arith.constant 91 : index
    %30 = vector.load %arg12[%c0_30, %c91] : memref<8x768xbf16, #tpu.memory_space<vmem>>, vector<8x512xbf16>
    %c0_31 = arith.constant 0 : index
    %c92 = arith.constant 92 : index
    %31 = vector.load %arg12[%c0_31, %c92] : memref<8x768xbf16, #tpu.memory_space<vmem>>, vector<8x512xbf16>
    %c0_32 = arith.constant 0 : index
    %c93 = arith.constant 93 : index
    %32 = vector.load %arg12[%c0_32, %c93] : memref<8x768xbf16, #tpu.memory_space<vmem>>, vector<8x512xbf16>
    %c0_33 = arith.constant 0 : index
    %c97 = arith.constant 97 : index
    %33 = vector.load %arg12[%c0_33, %c97] : memref<8x768xbf16, #tpu.memory_space<vmem>>, vector<8x512xbf16>
    %c0_34 = arith.constant 0 : index
    %c98 = arith.constant 98 : index
    %34 = vector.load %arg12[%c0_34, %c98] : memref<8x768xbf16, #tpu.memory_space<vmem>>, vector<8x512xbf16>
    %c0_35 = arith.constant 0 : index
    %c99 = arith.constant 99 : index
    %35 = vector.load %arg12[%c0_35, %c99] : memref<8x768xbf16, #tpu.memory_space<vmem>>, vector<8x512xbf16>
    %c0_36 = arith.constant 0 : index
    %c121 = arith.constant 121 : index
    %36 = vector.load %arg12[%c0_36, %c121] : memref<8x768xbf16, #tpu.memory_space<vmem>>, vector<8x512xbf16>
    %c0_37 = arith.constant 0 : index
    %c122 = arith.constant 122 : index
    %37 = vector.load %arg12[%c0_37, %c122] : memref<8x768xbf16, #tpu.memory_space<vmem>>, vector<8x512xbf16>
    %c0_38 = arith.constant 0 : index
    %c123 = arith.constant 123 : index
    %38 = vector.load %arg12[%c0_38, %c123] : memref<8x768xbf16, #tpu.memory_space<vmem>>, vector<8x512xbf16>
    %c0_39 = arith.constant 0 : index
    %c127 = arith.constant 127 : index
    %39 = vector.load %arg12[%c0_39, %c127] : memref<8x768xbf16, #tpu.memory_space<vmem>>, vector<8x512xbf16>
    %c0_40 = arith.constant 0 : index
    %c128_41 = arith.constant 128 : index
    %40 = vector.load %arg12[%c0_40, %c128_41] : memref<8x768xbf16, #tpu.memory_space<vmem>>, vector<8x512xbf16>
    %c0_42 = arith.constant 0 : index
    %c129 = arith.constant 129 : index
    %41 = vector.load %arg12[%c0_42, %c129] : memref<8x768xbf16, #tpu.memory_space<vmem>>, vector<8x512xbf16>
    %c0_43 = arith.constant 0 : index
    %c133 = arith.constant 133 : index
    %42 = vector.load %arg12[%c0_43, %c133] : memref<8x768xbf16, #tpu.memory_space<vmem>>, vector<8x512xbf16>
    %c0_44 = arith.constant 0 : index
    %c134 = arith.constant 134 : index
    %43 = vector.load %arg12[%c0_44, %c134] : memref<8x768xbf16, #tpu.memory_space<vmem>>, vector<8x512xbf16>
    %c0_45 = arith.constant 0 : index
    %c135 = arith.constant 135 : index
    %44 = vector.load %arg12[%c0_45, %c135] : memref<8x768xbf16, #tpu.memory_space<vmem>>, vector<8x512xbf16>
    %c0_46 = arith.constant 0 : index
    %c157 = arith.constant 157 : index
    %45 = vector.load %arg12[%c0_46, %c157] : memref<8x768xbf16, #tpu.memory_space<vmem>>, vector<8x512xbf16>
    %c0_47 = arith.constant 0 : index
    %c158 = arith.constant 158 : index
    %46 = vector.load %arg12[%c0_47, %c158] : memref<8x768xbf16, #tpu.memory_space<vmem>>, vector<8x512xbf16>
    %c0_48 = arith.constant 0 : index
    %c159 = arith.constant 159 : index
    %47 = vector.load %arg12[%c0_48, %c159] : memref<8x768xbf16, #tpu.memory_space<vmem>>, vector<8x512xbf16>
    %c0_49 = arith.constant 0 : index
    %c163 = arith.constant 163 : index
    %48 = vector.load %arg12[%c0_49, %c163] : memref<8x768xbf16, #tpu.memory_space<vmem>>, vector<8x512xbf16>
    %c0_50 = arith.constant 0 : index
    %c164 = arith.constant 164 : index
    %49 = vector.load %arg12[%c0_50, %c164] : memref<8x768xbf16, #tpu.memory_space<vmem>>, vector<8x512xbf16>
    %c0_51 = arith.constant 0 : index
    %c165 = arith.constant 165 : index
    %50 = vector.load %arg12[%c0_51, %c165] : memref<8x768xbf16, #tpu.memory_space<vmem>>, vector<8x512xbf16>
    %c0_52 = arith.constant 0 : index
    %c169 = arith.constant 169 : index
    %51 = vector.load %arg12[%c0_52, %c169] : memref<8x768xbf16, #tpu.memory_space<vmem>>, vector<8x512xbf16>
    %c0_53 = arith.constant 0 : index
    %c170 = arith.constant 170 : index
    %52 = vector.load %arg12[%c0_53, %c170] : memref<8x768xbf16, #tpu.memory_space<vmem>>, vector<8x512xbf16>
    %c0_54 = arith.constant 0 : index
    %c171 = arith.constant 171 : index
    %53 = vector.load %arg12[%c0_54, %c171] : memref<8x768xbf16, #tpu.memory_space<vmem>>, vector<8x512xbf16>
    %54 = tpu.concatenate %27, %28, %29, %30, %31, %32, %33, %34, %35, %36, %37, %38, %39, %40, %41, %42 in 0 : vector<8x512xbf16>, vector<8x512xbf16>, vector<8x512xbf16>, vector<8x512xbf16>, vector<8x512xbf16>, vector<8x512xbf16>, vector<8x512xbf16>, vector<8x512xbf16>, vector<8x512xbf16>, vector<8x512xbf16>, vector<8x512xbf16>, vector<8x512xbf16>, vector<8x512xbf16>, vector<8x512xbf16>, vector<8x512xbf16>, vector<8x512xbf16> -> vector<128x512xbf16>
    %55 = tpu.concatenate %43, %44, %45, %46, %47, %48, %49, %50, %51, %52, %53 in 0 : vector<8x512xbf16>, vector<8x512xbf16>, vector<8x512xbf16>, vector<8x512xbf16>, vector<8x512xbf16>, vector<8x512xbf16>, vector<8x512xbf16>, vector<8x512xbf16>, vector<8x512xbf16>, vector<8x512xbf16>, vector<8x512xbf16> -> vector<88x512xbf16>
    %56 = tpu.concatenate %54, %55 in 0 : vector<128x512xbf16>, vector<88x512xbf16> -> vector<216x512xbf16>
    %c0_55 = arith.constant 0 : index
    %c0_56 = arith.constant 0 : index
    %57 = vector.load %arg3[%c0_55, %c0_56] : memref<16x216xbf16, #tpu.memory_space<vmem>>, vector<16x216xbf16>
    %cst_57 = arith.constant dense<0.000000e+00> : vector<16x512xf32>
    %58 = tpu.matmul %57, %56, %cst_57 {dimension_numbers = #tpu.dot_dimension_numbers<[1], [0], [0], [1], [0, 0, 1, 1], [], []>} : vector<16x216xbf16>, vector<216x512xbf16>, vector<16x512xf32> -> vector<16x512xf32>
    %c0_58 = arith.constant 0 : index
    %c0_59 = arith.constant 0 : index
    %59 = vector.load %arg4[%c0_58, %c0_59] : memref<16x1xf32, #tpu.memory_space<vmem>>, vector<16x1xf32>
    %60 = vector.broadcast %59 : vector<16x1xf32> to vector<16x512xf32>
    %61 = arith.addf %58, %60 : vector<16x512xf32>
    %c0_60 = arith.constant 0 : index
    %c0_61 = arith.constant 0 : index
    %c0_62 = arith.constant 0 : index
    %62 = vector.load %arg5[%c0_60, %c0_61, %c0_62] : memref<1x16x1xf32, #tpu.memory_space<vmem>>, vector<1x16x1xf32>
    %63 = vector.shape_cast %62 : vector<1x16x1xf32> to vector<16x1xf32>
    %c0_63 = arith.constant 0 : index
    %c0_64 = arith.constant 0 : index
    %c0_65 = arith.constant 0 : index
    %64 = vector.load %arg6[%c0_63, %c0_64, %c0_65] : memref<1x16x1xf32, #tpu.memory_space<vmem>>, vector<1x16x1xf32>
    %65 = vector.shape_cast %64 : vector<1x16x1xf32> to vector<16x1xf32>
    %66 = vector.extract_strided_slice %61 {offsets = [0, 0], sizes = [16, 256], strides = [1, 1]} : vector<16x512xf32> to vector<16x256xf32>
    %67 = vector.extract_strided_slice %26 {offsets = [0, 0], sizes = [1, 256], strides = [1, 1]} : vector<1x512xi1> to vector<1x256xi1>
    %cst_66 = arith.constant 0.000000e+00 : f32
    %68 = vector.shape_cast %67 : vector<1x256xi1> to vector<1x256xi1>
    %69 = vector.broadcast %68 : vector<1x256xi1> to vector<16x256xi1>
    %70 = vector.broadcast %cst_66 : f32 to vector<16x256xf32>
    %71 = arith.select %69, %66, %70 : vector<16x256xi1>, vector<16x256xf32>
    %cst_67 = arith.constant dense<0.000000e+00> : vector<16xf32>
    %72 = vector.multi_reduction <add>, %71, %cst_67 [1] : vector<16x256xf32> to vector<16xf32>
    %73 = vector.shape_cast %72 : vector<16xf32> to vector<16x1xf32>
    %c15_i32 = arith.constant 15 : i32
    %74 = tpu.dynamic_rotate %73 by %c15_i32 dim 0 : vector<16x1xf32>, i32 -> vector<16x1xf32>
    %c1_i32 = arith.constant 1 : i32
    %75 = tpu.dynamic_rotate %73 by %c1_i32 dim 0 : vector<16x1xf32>, i32 -> vector<16x1xf32>
    %76 = tpu.iota {dimensions = array<i32: 0>} : vector<16x1xi32>
    %c2_i32 = arith.constant 2 : i32
    %c0_i32 = arith.constant 0 : i32
    %77 = arith.cmpi eq, %c2_i32, %c0_i32 : i32
    %c1_i32_68 = arith.constant 1 : i32
    %78 = arith.select %77, %c1_i32_68, %c2_i32 : i32
    %79 = vector.broadcast %78 : i32 to vector<16x1xi32>
    %80 = arith.remsi %76, %79 : vector<16x1xi32>
    %c0_i32_69 = arith.constant 0 : i32
    %81 = vector.broadcast %c0_i32_69 : i32 to vector<16x1xi32>
    %82 = arith.cmpi ne, %80, %81 : vector<16x1xi32>
    %c0_i32_70 = arith.constant 0 : i32
    %83 = vector.broadcast %c0_i32_70 : i32 to vector<16x1xi32>
    %84 = arith.cmpi slt, %80, %83 : vector<16x1xi32>
    %c0_i32_71 = arith.constant 0 : i32
    %85 = arith.cmpi slt, %78, %c0_i32_71 : i32
    %86 = vector.broadcast %85 : i1 to vector<16x1xi1>
    %87 = vector.broadcast %86 : vector<16x1xi1> to vector<16x1xi1>
    %88 = arith.xori %84, %87 : vector<16x1xi1>
    %89 = arith.andi %88, %82 : vector<16x1xi1>
    %90 = vector.broadcast %78 : i32 to vector<16x1xi32>
    %91 = arith.addi %80, %90 : vector<16x1xi32>
    %92 = arith.select %89, %91, %80 : vector<16x1xi1>, vector<16x1xi32>
    %c0_i32_72 = arith.constant 0 : i32
    %93 = vector.broadcast %c0_i32_72 : i32 to vector<16x1xi32>
    %94 = arith.cmpi eq, %92, %93 : vector<16x1xi32>
    %95 = arith.select %94, %74, %75 : vector<16x1xi1>, vector<16x1xf32>
    %96 = arith.addf %73, %95 : vector<16x1xf32>
    %cst_73 = arith.constant 7.812500e-03 : f32
    %97 = vector.broadcast %cst_73 : f32 to vector<16x1xf32>
    %98 = arith.mulf %96, %97 : vector<16x1xf32>
    %99 = vector.broadcast %98 : vector<16x1xf32> to vector<16x256xf32>
    %100 = arith.subf %66, %99 : vector<16x256xf32>
    %cst_74 = arith.constant 0.000000e+00 : f32
    %101 = vector.shape_cast %67 : vector<1x256xi1> to vector<1x256xi1>
    %102 = vector.broadcast %101 : vector<1x256xi1> to vector<16x256xi1>
    %103 = vector.broadcast %cst_74 : f32 to vector<16x256xf32>
    %104 = arith.select %102, %100, %103 : vector<16x256xi1>, vector<16x256xf32>
    %105 = arith.mulf %104, %104 : vector<16x256xf32>
    %cst_75 = arith.constant dense<0.000000e+00> : vector<16xf32>
    %106 = vector.multi_reduction <add>, %105, %cst_75 [1] : vector<16x256xf32> to vector<16xf32>
    %107 = vector.shape_cast %106 : vector<16xf32> to vector<16x1xf32>
    %c15_i32_76 = arith.constant 15 : i32
    %108 = tpu.dynamic_rotate %107 by %c15_i32_76 dim 0 : vector<16x1xf32>, i32 -> vector<16x1xf32>
    %c1_i32_77 = arith.constant 1 : i32
    %109 = tpu.dynamic_rotate %107 by %c1_i32_77 dim 0 : vector<16x1xf32>, i32 -> vector<16x1xf32>
    %110 = tpu.iota {dimensions = array<i32: 0>} : vector<16x1xi32>
    %c2_i32_78 = arith.constant 2 : i32
    %c0_i32_79 = arith.constant 0 : i32
    %111 = arith.cmpi eq, %c2_i32_78, %c0_i32_79 : i32
    %c1_i32_80 = arith.constant 1 : i32
    %112 = arith.select %111, %c1_i32_80, %c2_i32_78 : i32
    %113 = vector.broadcast %112 : i32 to vector<16x1xi32>
    %114 = arith.remsi %110, %113 : vector<16x1xi32>
    %c0_i32_81 = arith.constant 0 : i32
    %115 = vector.broadcast %c0_i32_81 : i32 to vector<16x1xi32>
    %116 = arith.cmpi ne, %114, %115 : vector<16x1xi32>
    %c0_i32_82 = arith.constant 0 : i32
    %117 = vector.broadcast %c0_i32_82 : i32 to vector<16x1xi32>
    %118 = arith.cmpi slt, %114, %117 : vector<16x1xi32>
    %c0_i32_83 = arith.constant 0 : i32
    %119 = arith.cmpi slt, %112, %c0_i32_83 : i32
    %120 = vector.broadcast %119 : i1 to vector<16x1xi1>
    %121 = vector.broadcast %120 : vector<16x1xi1> to vector<16x1xi1>
    %122 = arith.xori %118, %121 : vector<16x1xi1>
    %123 = arith.andi %122, %116 : vector<16x1xi1>
    %124 = vector.broadcast %112 : i32 to vector<16x1xi32>
    %125 = arith.addi %114, %124 : vector<16x1xi32>
    %126 = arith.select %123, %125, %114 : vector<16x1xi1>, vector<16x1xi32>
    %c0_i32_84 = arith.constant 0 : i32
    %127 = vector.broadcast %c0_i32_84 : i32 to vector<16x1xi32>
    %128 = arith.cmpi eq, %126, %127 : vector<16x1xi32>
    %129 = arith.select %128, %108, %109 : vector<16x1xi1>, vector<16x1xf32>
    %130 = arith.addf %107, %129 : vector<16x1xf32>
    %cst_85 = arith.constant 7.812500e-03 : f32
    %131 = vector.broadcast %cst_85 : f32 to vector<16x1xf32>
    %132 = arith.mulf %130, %131 : vector<16x1xf32>
    %cst_86 = arith.constant 9.99999974E-6 : f32
    %133 = vector.broadcast %cst_86 : f32 to vector<16x1xf32>
    %134 = arith.addf %132, %133 : vector<16x1xf32>
    %135 = math.rsqrt %134 : vector<16x1xf32>
    %136 = vector.broadcast %135 : vector<16x1xf32> to vector<16x256xf32>
    %137 = arith.mulf %100, %136 : vector<16x256xf32>
    %138 = vector.broadcast %63 : vector<16x1xf32> to vector<16x256xf32>
    %139 = arith.mulf %137, %138 : vector<16x256xf32>
    %140 = vector.broadcast %65 : vector<16x1xf32> to vector<16x256xf32>
    %141 = arith.addf %139, %140 : vector<16x256xf32>
    %cst_87 = arith.constant 0.000000e+00 : f32
    %142 = vector.broadcast %cst_87 : f32 to vector<16x256xf32>
    %143 = arith.maximumf %141, %142 : vector<16x256xf32>
    %cst_88 = arith.constant 0.000000e+00 : f32
    %144 = vector.shape_cast %67 : vector<1x256xi1> to vector<1x256xi1>
    %145 = vector.broadcast %144 : vector<1x256xi1> to vector<16x256xi1>
    %146 = vector.broadcast %cst_88 : f32 to vector<16x256xf32>
    %147 = arith.select %145, %143, %146 : vector<16x256xi1>, vector<16x256xf32>
    %148 = arith.truncf %147 : vector<16x256xf32> to vector<16x256xbf16>
    %c0_89 = arith.constant 0 : index
    %c128_90 = arith.constant 128 : index
    %149 = vector.load %arg13[%c0_89, %c128_90] : memref<16x768xbf16, #tpu.memory_space<vmem>>, vector<16x256xbf16>
    tpu.vector_store %arg13[%c0_89, %c128_90], %148 {strides = array<i32>} : memref<16x768xbf16, #tpu.memory_space<vmem>>, vector<16x256xbf16>,
    %150 = vector.extract_strided_slice %61 {offsets = [0, 256], sizes = [16, 256], strides = [1, 1]} : vector<16x512xf32> to vector<16x256xf32>
    %151 = vector.extract_strided_slice %26 {offsets = [0, 256], sizes = [1, 256], strides = [1, 1]} : vector<1x512xi1> to vector<1x256xi1>
    %cst_91 = arith.constant 0.000000e+00 : f32
    %152 = vector.shape_cast %151 : vector<1x256xi1> to vector<1x256xi1>
    %153 = vector.broadcast %152 : vector<1x256xi1> to vector<16x256xi1>
    %154 = vector.broadcast %cst_91 : f32 to vector<16x256xf32>
    %155 = arith.select %153, %150, %154 : vector<16x256xi1>, vector<16x256xf32>
    %cst_92 = arith.constant dense<0.000000e+00> : vector<16xf32>
    %156 = vector.multi_reduction <add>, %155, %cst_92 [1] : vector<16x256xf32> to vector<16xf32>
    %157 = vector.shape_cast %156 : vector<16xf32> to vector<16x1xf32>
    %c15_i32_93 = arith.constant 15 : i32
    %158 = tpu.dynamic_rotate %157 by %c15_i32_93 dim 0 : vector<16x1xf32>, i32 -> vector<16x1xf32>
    %c1_i32_94 = arith.constant 1 : i32
    %159 = tpu.dynamic_rotate %157 by %c1_i32_94 dim 0 : vector<16x1xf32>, i32 -> vector<16x1xf32>
    %160 = tpu.iota {dimensions = array<i32: 0>} : vector<16x1xi32>
    %c2_i32_95 = arith.constant 2 : i32
    %c0_i32_96 = arith.constant 0 : i32
    %161 = arith.cmpi eq, %c2_i32_95, %c0_i32_96 : i32
    %c1_i32_97 = arith.constant 1 : i32
    %162 = arith.select %161, %c1_i32_97, %c2_i32_95 : i32
    %163 = vector.broadcast %162 : i32 to vector<16x1xi32>
    %164 = arith.remsi %160, %163 : vector<16x1xi32>
    %c0_i32_98 = arith.constant 0 : i32
    %165 = vector.broadcast %c0_i32_98 : i32 to vector<16x1xi32>
    %166 = arith.cmpi ne, %164, %165 : vector<16x1xi32>
    %c0_i32_99 = arith.constant 0 : i32
    %167 = vector.broadcast %c0_i32_99 : i32 to vector<16x1xi32>
    %168 = arith.cmpi slt, %164, %167 : vector<16x1xi32>
    %c0_i32_100 = arith.constant 0 : i32
    %169 = arith.cmpi slt, %162, %c0_i32_100 : i32
    %170 = vector.broadcast %169 : i1 to vector<16x1xi1>
    %171 = vector.broadcast %170 : vector<16x1xi1> to vector<16x1xi1>
    %172 = arith.xori %168, %171 : vector<16x1xi1>
    %173 = arith.andi %172, %166 : vector<16x1xi1>
    %174 = vector.broadcast %162 : i32 to vector<16x1xi32>
    %175 = arith.addi %164, %174 : vector<16x1xi32>
    %176 = arith.select %173, %175, %164 : vector<16x1xi1>, vector<16x1xi32>
    %c0_i32_101 = arith.constant 0 : i32
    %177 = vector.broadcast %c0_i32_101 : i32 to vector<16x1xi32>
    %178 = arith.cmpi eq, %176, %177 : vector<16x1xi32>
    %179 = arith.select %178, %158, %159 : vector<16x1xi1>, vector<16x1xf32>
    %180 = arith.addf %157, %179 : vector<16x1xf32>
    %cst_102 = arith.constant 7.812500e-03 : f32
    %181 = vector.broadcast %cst_102 : f32 to vector<16x1xf32>
    %182 = arith.mulf %180, %181 : vector<16x1xf32>
    %183 = vector.broadcast %182 : vector<16x1xf32> to vector<16x256xf32>
    %184 = arith.subf %150, %183 : vector<16x256xf32>
    %cst_103 = arith.constant 0.000000e+00 : f32
    %185 = vector.shape_cast %151 : vector<1x256xi1> to vector<1x256xi1>
    %186 = vector.broadcast %185 : vector<1x256xi1> to vector<16x256xi1>
    %187 = vector.broadcast %cst_103 : f32 to vector<16x256xf32>
    %188 = arith.select %186, %184, %187 : vector<16x256xi1>, vector<16x256xf32>
    %189 = arith.mulf %188, %188 : vector<16x256xf32>
    %cst_104 = arith.constant dense<0.000000e+00> : vector<16xf32>
    %190 = vector.multi_reduction <add>, %189, %cst_104 [1] : vector<16x256xf32> to vector<16xf32>
    %191 = vector.shape_cast %190 : vector<16xf32> to vector<16x1xf32>
    %c15_i32_105 = arith.constant 15 : i32
    %192 = tpu.dynamic_rotate %191 by %c15_i32_105 dim 0 : vector<16x1xf32>, i32 -> vector<16x1xf32>
    %c1_i32_106 = arith.constant 1 : i32
    %193 = tpu.dynamic_rotate %191 by %c1_i32_106 dim 0 : vector<16x1xf32>, i32 -> vector<16x1xf32>
    %194 = tpu.iota {dimensions = array<i32: 0>} : vector<16x1xi32>
    %c2_i32_107 = arith.constant 2 : i32
    %c0_i32_108 = arith.constant 0 : i32
    %195 = arith.cmpi eq, %c2_i32_107, %c0_i32_108 : i32
    %c1_i32_109 = arith.constant 1 : i32
    %196 = arith.select %195, %c1_i32_109, %c2_i32_107 : i32
    %197 = vector.broadcast %196 : i32 to vector<16x1xi32>
    %198 = arith.remsi %194, %197 : vector<16x1xi32>
    %c0_i32_110 = arith.constant 0 : i32
    %199 = vector.broadcast %c0_i32_110 : i32 to vector<16x1xi32>
    %200 = arith.cmpi ne, %198, %199 : vector<16x1xi32>
    %c0_i32_111 = arith.constant 0 : i32
    %201 = vector.broadcast %c0_i32_111 : i32 to vector<16x1xi32>
    %202 = arith.cmpi slt, %198, %201 : vector<16x1xi32>
    %c0_i32_112 = arith.constant 0 : i32
    %203 = arith.cmpi slt, %196, %c0_i32_112 : i32
    %204 = vector.broadcast %203 : i1 to vector<16x1xi1>
    %205 = vector.broadcast %204 : vector<16x1xi1> to vector<16x1xi1>
    %206 = arith.xori %202, %205 : vector<16x1xi1>
    %207 = arith.andi %206, %200 : vector<16x1xi1>
    %208 = vector.broadcast %196 : i32 to vector<16x1xi32>
    %209 = arith.addi %198, %208 : vector<16x1xi32>
    %210 = arith.select %207, %209, %198 : vector<16x1xi1>, vector<16x1xi32>
    %c0_i32_113 = arith.constant 0 : i32
    %211 = vector.broadcast %c0_i32_113 : i32 to vector<16x1xi32>
    %212 = arith.cmpi eq, %210, %211 : vector<16x1xi32>
    %213 = arith.select %212, %192, %193 : vector<16x1xi1>, vector<16x1xf32>
    %214 = arith.addf %191, %213 : vector<16x1xf32>
    %cst_114 = arith.constant 7.812500e-03 : f32
    %215 = vector.broadcast %cst_114 : f32 to vector<16x1xf32>
    %216 = arith.mulf %214, %215 : vector<16x1xf32>
    %cst_115 = arith.constant 9.99999974E-6 : f32
    %217 = vector.broadcast %cst_115 : f32 to vector<16x1xf32>
    %218 = arith.addf %216, %217 : vector<16x1xf32>
    %219 = math.rsqrt %218 : vector<16x1xf32>
    %220 = vector.broadcast %219 : vector<16x1xf32> to vector<16x256xf32>
    %221 = arith.mulf %184, %220 : vector<16x256xf32>
    %222 = vector.broadcast %63 : vector<16x1xf32> to vector<16x256xf32>
    %223 = arith.mulf %221, %222 : vector<16x256xf32>
    %224 = vector.broadcast %65 : vector<16x1xf32> to vector<16x256xf32>
    %225 = arith.addf %223, %224 : vector<16x256xf32>
    %cst_116 = arith.constant 0.000000e+00 : f32
    %226 = vector.broadcast %cst_116 : f32 to vector<16x256xf32>
    %227 = arith.maximumf %225, %226 : vector<16x256xf32>
    %cst_117 = arith.constant 0.000000e+00 : f32
    %228 = vector.shape_cast %151 : vector<1x256xi1> to vector<1x256xi1>
    %229 = vector.broadcast %228 : vector<1x256xi1> to vector<16x256xi1>
    %230 = vector.broadcast %cst_117 : f32 to vector<16x256xf32>
    %231 = arith.select %229, %227, %230 : vector<16x256xi1>, vector<16x256xf32>
    %232 = arith.truncf %231 : vector<16x256xf32> to vector<16x256xbf16>
    %c0_118 = arith.constant 0 : index
    %c384 = arith.constant 384 : index
    %233 = vector.load %arg13[%c0_118, %c384] : memref<16x768xbf16, #tpu.memory_space<vmem>>, vector<16x256xbf16>
    tpu.vector_store %arg13[%c0_118, %c384], %232 {strides = array<i32>} : memref<16x768xbf16, #tpu.memory_space<vmem>>, vector<16x256xbf16>,
    %c0_119 = arith.constant 0 : index
    %c85_120 = arith.constant 85 : index
    %234 = vector.load %arg13[%c0_119, %c85_120] : memref<16x768xbf16, #tpu.memory_space<vmem>>, vector<16x512xbf16>
    %c0_121 = arith.constant 0 : index
    %c86_122 = arith.constant 86 : index
    %235 = vector.load %arg13[%c0_121, %c86_122] : memref<16x768xbf16, #tpu.memory_space<vmem>>, vector<16x512xbf16>
    %c0_123 = arith.constant 0 : index
    %c87_124 = arith.constant 87 : index
    %236 = vector.load %arg13[%c0_123, %c87_124] : memref<16x768xbf16, #tpu.memory_space<vmem>>, vector<16x512xbf16>
    %c0_125 = arith.constant 0 : index
    %c91_126 = arith.constant 91 : index
    %237 = vector.load %arg13[%c0_125, %c91_126] : memref<16x768xbf16, #tpu.memory_space<vmem>>, vector<16x512xbf16>
    %c0_127 = arith.constant 0 : index
    %c92_128 = arith.constant 92 : index
    %238 = vector.load %arg13[%c0_127, %c92_128] : memref<16x768xbf16, #tpu.memory_space<vmem>>, vector<16x512xbf16>
    %c0_129 = arith.constant 0 : index
    %c93_130 = arith.constant 93 : index
    %239 = vector.load %arg13[%c0_129, %c93_130] : memref<16x768xbf16, #tpu.memory_space<vmem>>, vector<16x512xbf16>
    %c0_131 = arith.constant 0 : index
    %c97_132 = arith.constant 97 : index
    %240 = vector.load %arg13[%c0_131, %c97_132] : memref<16x768xbf16, #tpu.memory_space<vmem>>, vector<16x512xbf16>
    %c0_133 = arith.constant 0 : index
    %c98_134 = arith.constant 98 : index
    %241 = vector.load %arg13[%c0_133, %c98_134] : memref<16x768xbf16, #tpu.memory_space<vmem>>, vector<16x512xbf16>
    %c0_135 = arith.constant 0 : index
    %c99_136 = arith.constant 99 : index
    %242 = vector.load %arg13[%c0_135, %c99_136] : memref<16x768xbf16, #tpu.memory_space<vmem>>, vector<16x512xbf16>
    %c0_137 = arith.constant 0 : index
    %c121_138 = arith.constant 121 : index
    %243 = vector.load %arg13[%c0_137, %c121_138] : memref<16x768xbf16, #tpu.memory_space<vmem>>, vector<16x512xbf16>
    %c0_139 = arith.constant 0 : index
    %c122_140 = arith.constant 122 : index
    %244 = vector.load %arg13[%c0_139, %c122_140] : memref<16x768xbf16, #tpu.memory_space<vmem>>, vector<16x512xbf16>
    %c0_141 = arith.constant 0 : index
    %c123_142 = arith.constant 123 : index
    %245 = vector.load %arg13[%c0_141, %c123_142] : memref<16x768xbf16, #tpu.memory_space<vmem>>, vector<16x512xbf16>
    %c0_143 = arith.constant 0 : index
    %c127_144 = arith.constant 127 : index
    %246 = vector.load %arg13[%c0_143, %c127_144] : memref<16x768xbf16, #tpu.memory_space<vmem>>, vector<16x512xbf16>
    %c0_145 = arith.constant 0 : index
    %c128_146 = arith.constant 128 : index
    %247 = vector.load %arg13[%c0_145, %c128_146] : memref<16x768xbf16, #tpu.memory_space<vmem>>, vector<16x512xbf16>
    %c0_147 = arith.constant 0 : index
    %c129_148 = arith.constant 129 : index
    %248 = vector.load %arg13[%c0_147, %c129_148] : memref<16x768xbf16, #tpu.memory_space<vmem>>, vector<16x512xbf16>
    %c0_149 = arith.constant 0 : index
    %c133_150 = arith.constant 133 : index
    %249 = vector.load %arg13[%c0_149, %c133_150] : memref<16x768xbf16, #tpu.memory_space<vmem>>, vector<16x512xbf16>
    %c0_151 = arith.constant 0 : index
    %c134_152 = arith.constant 134 : index
    %250 = vector.load %arg13[%c0_151, %c134_152] : memref<16x768xbf16, #tpu.memory_space<vmem>>, vector<16x512xbf16>
    %c0_153 = arith.constant 0 : index
    %c135_154 = arith.constant 135 : index
    %251 = vector.load %arg13[%c0_153, %c135_154] : memref<16x768xbf16, #tpu.memory_space<vmem>>, vector<16x512xbf16>
    %c0_155 = arith.constant 0 : index
    %c157_156 = arith.constant 157 : index
    %252 = vector.load %arg13[%c0_155, %c157_156] : memref<16x768xbf16, #tpu.memory_space<vmem>>, vector<16x512xbf16>
    %c0_157 = arith.constant 0 : index
    %c158_158 = arith.constant 158 : index
    %253 = vector.load %arg13[%c0_157, %c158_158] : memref<16x768xbf16, #tpu.memory_space<vmem>>, vector<16x512xbf16>
    %c0_159 = arith.constant 0 : index
    %c159_160 = arith.constant 159 : index
    %254 = vector.load %arg13[%c0_159, %c159_160] : memref<16x768xbf16, #tpu.memory_space<vmem>>, vector<16x512xbf16>
    %c0_161 = arith.constant 0 : index
    %c163_162 = arith.constant 163 : index
    %255 = vector.load %arg13[%c0_161, %c163_162] : memref<16x768xbf16, #tpu.memory_space<vmem>>, vector<16x512xbf16>
    %c0_163 = arith.constant 0 : index
    %c164_164 = arith.constant 164 : index
    %256 = vector.load %arg13[%c0_163, %c164_164] : memref<16x768xbf16, #tpu.memory_space<vmem>>, vector<16x512xbf16>
    %c0_165 = arith.constant 0 : index
    %c165_166 = arith.constant 165 : index
    %257 = vector.load %arg13[%c0_165, %c165_166] : memref<16x768xbf16, #tpu.memory_space<vmem>>, vector<16x512xbf16>
    %c0_167 = arith.constant 0 : index
    %c169_168 = arith.constant 169 : index
    %258 = vector.load %arg13[%c0_167, %c169_168] : memref<16x768xbf16, #tpu.memory_space<vmem>>, vector<16x512xbf16>
    %c0_169 = arith.constant 0 : index
    %c170_170 = arith.constant 170 : index
    %259 = vector.load %arg13[%c0_169, %c170_170] : memref<16x768xbf16, #tpu.memory_space<vmem>>, vector<16x512xbf16>
    %c0_171 = arith.constant 0 : index
    %c171_172 = arith.constant 171 : index
    %260 = vector.load %arg13[%c0_171, %c171_172] : memref<16x768xbf16, #tpu.memory_space<vmem>>, vector<16x512xbf16>
    %261 = tpu.concatenate %234, %235, %236, %237, %238, %239, %240, %241, %242, %243, %244, %245, %246, %247, %248, %249 in 0 : vector<16x512xbf16>, vector<16x512xbf16>, vector<16x512xbf16>, vector<16x512xbf16>, vector<16x512xbf16>, vector<16x512xbf16>, vector<16x512xbf16>, vector<16x512xbf16>, vector<16x512xbf16>, vector<16x512xbf16>, vector<16x512xbf16>, vector<16x512xbf16>, vector<16x512xbf16>, vector<16x512xbf16>, vector<16x512xbf16>, vector<16x512xbf16> -> vector<256x512xbf16>
    %262 = tpu.concatenate %250, %251, %252, %253, %254, %255, %256, %257, %258, %259, %260 in 0 : vector<16x512xbf16>, vector<16x512xbf16>, vector<16x512xbf16>, vector<16x512xbf16>, vector<16x512xbf16>, vector<16x512xbf16>, vector<16x512xbf16>, vector<16x512xbf16>, vector<16x512xbf16>, vector<16x512xbf16>, vector<16x512xbf16> -> vector<176x512xbf16>
    %263 = tpu.concatenate %261, %262 in 0 : vector<256x512xbf16>, vector<176x512xbf16> -> vector<432x512xbf16>
    %c0_173 = arith.constant 0 : index
    %c0_174 = arith.constant 0 : index
    %264 = vector.load %arg7[%c0_173, %c0_174] : memref<16x432xbf16, #tpu.memory_space<vmem>>, vector<16x432xbf16>
    %cst_175 = arith.constant dense<0.000000e+00> : vector<16x512xf32>
    %265 = tpu.matmul %264, %263, %cst_175 {dimension_numbers = #tpu.dot_dimension_numbers<[1], [0], [0], [1], [0, 0, 1, 1], [], []>} : vector<16x432xbf16>, vector<432x512xbf16>, vector<16x512xf32> -> vector<16x512xf32>
    %c0_176 = arith.constant 0 : index
    %c0_177 = arith.constant 0 : index
    %266 = vector.load %arg8[%c0_176, %c0_177] : memref<16x1xf32, #tpu.memory_space<vmem>>, vector<16x1xf32>
    %267 = vector.broadcast %266 : vector<16x1xf32> to vector<16x512xf32>
    %268 = arith.addf %265, %267 : vector<16x512xf32>
    %c0_178 = arith.constant 0 : index
    %c0_179 = arith.constant 0 : index
    %c0_180 = arith.constant 0 : index
    %269 = vector.load %arg9[%c0_178, %c0_179, %c0_180] : memref<1x16x1xf32, #tpu.memory_space<vmem>>, vector<1x16x1xf32>
    %270 = vector.shape_cast %269 : vector<1x16x1xf32> to vector<16x1xf32>
    %c0_181 = arith.constant 0 : index
    %c0_182 = arith.constant 0 : index
    %c0_183 = arith.constant 0 : index
    %271 = vector.load %arg10[%c0_181, %c0_182, %c0_183] : memref<1x16x1xf32, #tpu.memory_space<vmem>>, vector<1x16x1xf32>
    %272 = vector.shape_cast %271 : vector<1x16x1xf32> to vector<16x1xf32>
    %273 = vector.extract_strided_slice %268 {offsets = [0, 0], sizes = [16, 256], strides = [1, 1]} : vector<16x512xf32> to vector<16x256xf32>
    %274 = vector.extract_strided_slice %26 {offsets = [0, 0], sizes = [1, 256], strides = [1, 1]} : vector<1x512xi1> to vector<1x256xi1>
    %cst_184 = arith.constant 0.000000e+00 : f32
    %275 = vector.shape_cast %274 : vector<1x256xi1> to vector<1x256xi1>
    %276 = vector.broadcast %275 : vector<1x256xi1> to vector<16x256xi1>
    %277 = vector.broadcast %cst_184 : f32 to vector<16x256xf32>
    %278 = arith.select %276, %273, %277 : vector<16x256xi1>, vector<16x256xf32>
    %cst_185 = arith.constant dense<0.000000e+00> : vector<16xf32>
    %279 = vector.multi_reduction <add>, %278, %cst_185 [1] : vector<16x256xf32> to vector<16xf32>
    %280 = vector.shape_cast %279 : vector<16xf32> to vector<16x1xf32>
    %c15_i32_186 = arith.constant 15 : i32
    %281 = tpu.dynamic_rotate %280 by %c15_i32_186 dim 0 : vector<16x1xf32>, i32 -> vector<16x1xf32>
    %c1_i32_187 = arith.constant 1 : i32
    %282 = tpu.dynamic_rotate %280 by %c1_i32_187 dim 0 : vector<16x1xf32>, i32 -> vector<16x1xf32>
    %283 = tpu.iota {dimensions = array<i32: 0>} : vector<16x1xi32>
    %c2_i32_188 = arith.constant 2 : i32
    %c0_i32_189 = arith.constant 0 : i32
    %284 = arith.cmpi eq, %c2_i32_188, %c0_i32_189 : i32
    %c1_i32_190 = arith.constant 1 : i32
    %285 = arith.select %284, %c1_i32_190, %c2_i32_188 : i32
    %286 = vector.broadcast %285 : i32 to vector<16x1xi32>
    %287 = arith.remsi %283, %286 : vector<16x1xi32>
    %c0_i32_191 = arith.constant 0 : i32
    %288 = vector.broadcast %c0_i32_191 : i32 to vector<16x1xi32>
    %289 = arith.cmpi ne, %287, %288 : vector<16x1xi32>
    %c0_i32_192 = arith.constant 0 : i32
    %290 = vector.broadcast %c0_i32_192 : i32 to vector<16x1xi32>
    %291 = arith.cmpi slt, %287, %290 : vector<16x1xi32>
    %c0_i32_193 = arith.constant 0 : i32
    %292 = arith.cmpi slt, %285, %c0_i32_193 : i32
    %293 = vector.broadcast %292 : i1 to vector<16x1xi1>
    %294 = vector.broadcast %293 : vector<16x1xi1> to vector<16x1xi1>
    %295 = arith.xori %291, %294 : vector<16x1xi1>
    %296 = arith.andi %295, %289 : vector<16x1xi1>
    %297 = vector.broadcast %285 : i32 to vector<16x1xi32>
    %298 = arith.addi %287, %297 : vector<16x1xi32>
    %299 = arith.select %296, %298, %287 : vector<16x1xi1>, vector<16x1xi32>
    %c0_i32_194 = arith.constant 0 : i32
    %300 = vector.broadcast %c0_i32_194 : i32 to vector<16x1xi32>
    %301 = arith.cmpi eq, %299, %300 : vector<16x1xi32>
    %302 = arith.select %301, %281, %282 : vector<16x1xi1>, vector<16x1xf32>
    %303 = arith.addf %280, %302 : vector<16x1xf32>
    %cst_195 = arith.constant 7.812500e-03 : f32
    %304 = vector.broadcast %cst_195 : f32 to vector<16x1xf32>
    %305 = arith.mulf %303, %304 : vector<16x1xf32>
    %306 = vector.broadcast %305 : vector<16x1xf32> to vector<16x256xf32>
    %307 = arith.subf %273, %306 : vector<16x256xf32>
    %cst_196 = arith.constant 0.000000e+00 : f32
    %308 = vector.shape_cast %274 : vector<1x256xi1> to vector<1x256xi1>
    %309 = vector.broadcast %308 : vector<1x256xi1> to vector<16x256xi1>
    %310 = vector.broadcast %cst_196 : f32 to vector<16x256xf32>
    %311 = arith.select %309, %307, %310 : vector<16x256xi1>, vector<16x256xf32>
    %312 = arith.mulf %311, %311 : vector<16x256xf32>
    %cst_197 = arith.constant dense<0.000000e+00> : vector<16xf32>
    %313 = vector.multi_reduction <add>, %312, %cst_197 [1] : vector<16x256xf32> to vector<16xf32>
    %314 = vector.shape_cast %313 : vector<16xf32> to vector<16x1xf32>
    %c15_i32_198 = arith.constant 15 : i32
    %315 = tpu.dynamic_rotate %314 by %c15_i32_198 dim 0 : vector<16x1xf32>, i32 -> vector<16x1xf32>
    %c1_i32_199 = arith.constant 1 : i32
    %316 = tpu.dynamic_rotate %314 by %c1_i32_199 dim 0 : vector<16x1xf32>, i32 -> vector<16x1xf32>
    %317 = tpu.iota {dimensions = array<i32: 0>} : vector<16x1xi32>
    %c2_i32_200 = arith.constant 2 : i32
    %c0_i32_201 = arith.constant 0 : i32
    %318 = arith.cmpi eq, %c2_i32_200, %c0_i32_201 : i32
    %c1_i32_202 = arith.constant 1 : i32
    %319 = arith.select %318, %c1_i32_202, %c2_i32_200 : i32
    %320 = vector.broadcast %319 : i32 to vector<16x1xi32>
    %321 = arith.remsi %317, %320 : vector<16x1xi32>
    %c0_i32_203 = arith.constant 0 : i32
    %322 = vector.broadcast %c0_i32_203 : i32 to vector<16x1xi32>
    %323 = arith.cmpi ne, %321, %322 : vector<16x1xi32>
    %c0_i32_204 = arith.constant 0 : i32
    %324 = vector.broadcast %c0_i32_204 : i32 to vector<16x1xi32>
    %325 = arith.cmpi slt, %321, %324 : vector<16x1xi32>
    %c0_i32_205 = arith.constant 0 : i32
    %326 = arith.cmpi slt, %319, %c0_i32_205 : i32
    %327 = vector.broadcast %326 : i1 to vector<16x1xi1>
    %328 = vector.broadcast %327 : vector<16x1xi1> to vector<16x1xi1>
    %329 = arith.xori %325, %328 : vector<16x1xi1>
    %330 = arith.andi %329, %323 : vector<16x1xi1>
    %331 = vector.broadcast %319 : i32 to vector<16x1xi32>
    %332 = arith.addi %321, %331 : vector<16x1xi32>
    %333 = arith.select %330, %332, %321 : vector<16x1xi1>, vector<16x1xi32>
    %c0_i32_206 = arith.constant 0 : i32
    %334 = vector.broadcast %c0_i32_206 : i32 to vector<16x1xi32>
    %335 = arith.cmpi eq, %333, %334 : vector<16x1xi32>
    %336 = arith.select %335, %315, %316 : vector<16x1xi1>, vector<16x1xf32>
    %337 = arith.addf %314, %336 : vector<16x1xf32>
    %cst_207 = arith.constant 7.812500e-03 : f32
    %338 = vector.broadcast %cst_207 : f32 to vector<16x1xf32>
    %339 = arith.mulf %337, %338 : vector<16x1xf32>
    %cst_208 = arith.constant 9.99999974E-6 : f32
    %340 = vector.broadcast %cst_208 : f32 to vector<16x1xf32>
    %341 = arith.addf %339, %340 : vector<16x1xf32>
    %342 = math.rsqrt %341 : vector<16x1xf32>
    %343 = vector.broadcast %342 : vector<16x1xf32> to vector<16x256xf32>
    %344 = arith.mulf %307, %343 : vector<16x256xf32>
    %345 = vector.broadcast %270 : vector<16x1xf32> to vector<16x256xf32>
    %346 = arith.mulf %344, %345 : vector<16x256xf32>
    %347 = vector.broadcast %272 : vector<16x1xf32> to vector<16x256xf32>
    %348 = arith.addf %346, %347 : vector<16x256xf32>
    %cst_209 = arith.constant 0.000000e+00 : f32
    %349 = vector.broadcast %cst_209 : f32 to vector<16x256xf32>
    %350 = arith.maximumf %348, %349 : vector<16x256xf32>
    %cst_210 = arith.constant 0.000000e+00 : f32
    %351 = vector.shape_cast %274 : vector<1x256xi1> to vector<1x256xi1>
    %352 = vector.broadcast %351 : vector<1x256xi1> to vector<16x256xi1>
    %353 = vector.broadcast %cst_210 : f32 to vector<16x256xf32>
    %354 = arith.select %352, %350, %353 : vector<16x256xi1>, vector<16x256xf32>
    %c0_211 = arith.constant 0 : index
    %c0_212 = arith.constant 0 : index
    %c0_213 = arith.constant 0 : index
    %355 = vector.load %arg11[%c0_211, %c0_212, %c0_213] : memref<1x16x512xf32, #tpu.memory_space<vmem>>, vector<1x16x256xf32>
    %356 = vector.shape_cast %355 : vector<1x16x256xf32> to vector<16x256xf32>
    %357 = vector.shape_cast %354 : vector<16x256xf32> to vector<1x16x256xf32>
    tpu.vector_store %arg11[%c0_211, %c0_212, %c0_213], %357 {strides = array<i32>} : memref<1x16x512xf32, #tpu.memory_space<vmem>>, vector<1x16x256xf32>,
    %358 = vector.extract_strided_slice %268 {offsets = [0, 256], sizes = [16, 256], strides = [1, 1]} : vector<16x512xf32> to vector<16x256xf32>
    %359 = vector.extract_strided_slice %26 {offsets = [0, 256], sizes = [1, 256], strides = [1, 1]} : vector<1x512xi1> to vector<1x256xi1>
    %cst_214 = arith.constant 0.000000e+00 : f32
    %360 = vector.shape_cast %359 : vector<1x256xi1> to vector<1x256xi1>
    %361 = vector.broadcast %360 : vector<1x256xi1> to vector<16x256xi1>
    %362 = vector.broadcast %cst_214 : f32 to vector<16x256xf32>
    %363 = arith.select %361, %358, %362 : vector<16x256xi1>, vector<16x256xf32>
    %cst_215 = arith.constant dense<0.000000e+00> : vector<16xf32>
    %364 = vector.multi_reduction <add>, %363, %cst_215 [1] : vector<16x256xf32> to vector<16xf32>
    %365 = vector.shape_cast %364 : vector<16xf32> to vector<16x1xf32>
    %c15_i32_216 = arith.constant 15 : i32
    %366 = tpu.dynamic_rotate %365 by %c15_i32_216 dim 0 : vector<16x1xf32>, i32 -> vector<16x1xf32>
    %c1_i32_217 = arith.constant 1 : i32
    %367 = tpu.dynamic_rotate %365 by %c1_i32_217 dim 0 : vector<16x1xf32>, i32 -> vector<16x1xf32>
    %368 = tpu.iota {dimensions = array<i32: 0>} : vector<16x1xi32>
    %c2_i32_218 = arith.constant 2 : i32
    %c0_i32_219 = arith.constant 0 : i32
    %369 = arith.cmpi eq, %c2_i32_218, %c0_i32_219 : i32
    %c1_i32_220 = arith.constant 1 : i32
    %370 = arith.select %369, %c1_i32_220, %c2_i32_218 : i32
    %371 = vector.broadcast %370 : i32 to vector<16x1xi32>
    %372 = arith.remsi %368, %371 : vector<16x1xi32>
    %c0_i32_221 = arith.constant 0 : i32
    %373 = vector.broadcast %c0_i32_221 : i32 to vector<16x1xi32>
    %374 = arith.cmpi ne, %372, %373 : vector<16x1xi32>
    %c0_i32_222 = arith.constant 0 : i32
    %375 = vector.broadcast %c0_i32_222 : i32 to vector<16x1xi32>
    %376 = arith.cmpi slt, %372, %375 : vector<16x1xi32>
    %c0_i32_223 = arith.constant 0 : i32
    %377 = arith.cmpi slt, %370, %c0_i32_223 : i32
    %378 = vector.broadcast %377 : i1 to vector<16x1xi1>
    %379 = vector.broadcast %378 : vector<16x1xi1> to vector<16x1xi1>
    %380 = arith.xori %376, %379 : vector<16x1xi1>
    %381 = arith.andi %380, %374 : vector<16x1xi1>
    %382 = vector.broadcast %370 : i32 to vector<16x1xi32>
    %383 = arith.addi %372, %382 : vector<16x1xi32>
    %384 = arith.select %381, %383, %372 : vector<16x1xi1>, vector<16x1xi32>
    %c0_i32_224 = arith.constant 0 : i32
    %385 = vector.broadcast %c0_i32_224 : i32 to vector<16x1xi32>
    %386 = arith.cmpi eq, %384, %385 : vector<16x1xi32>
    %387 = arith.select %386, %366, %367 : vector<16x1xi1>, vector<16x1xf32>
    %388 = arith.addf %365, %387 : vector<16x1xf32>
    %cst_225 = arith.constant 7.812500e-03 : f32
    %389 = vector.broadcast %cst_225 : f32 to vector<16x1xf32>
    %390 = arith.mulf %388, %389 : vector<16x1xf32>
    %391 = vector.broadcast %390 : vector<16x1xf32> to vector<16x256xf32>
    %392 = arith.subf %358, %391 : vector<16x256xf32>
    %cst_226 = arith.constant 0.000000e+00 : f32
    %393 = vector.shape_cast %359 : vector<1x256xi1> to vector<1x256xi1>
    %394 = vector.broadcast %393 : vector<1x256xi1> to vector<16x256xi1>
    %395 = vector.broadcast %cst_226 : f32 to vector<16x256xf32>
    %396 = arith.select %394, %392, %395 : vector<16x256xi1>, vector<16x256xf32>
    %397 = arith.mulf %396, %396 : vector<16x256xf32>
    %cst_227 = arith.constant dense<0.000000e+00> : vector<16xf32>
    %398 = vector.multi_reduction <add>, %397, %cst_227 [1] : vector<16x256xf32> to vector<16xf32>
    %399 = vector.shape_cast %398 : vector<16xf32> to vector<16x1xf32>
    %c15_i32_228 = arith.constant 15 : i32
    %400 = tpu.dynamic_rotate %399 by %c15_i32_228 dim 0 : vector<16x1xf32>, i32 -> vector<16x1xf32>
    %c1_i32_229 = arith.constant 1 : i32
    %401 = tpu.dynamic_rotate %399 by %c1_i32_229 dim 0 : vector<16x1xf32>, i32 -> vector<16x1xf32>
    %402 = tpu.iota {dimensions = array<i32: 0>} : vector<16x1xi32>
    %c2_i32_230 = arith.constant 2 : i32
    %c0_i32_231 = arith.constant 0 : i32
    %403 = arith.cmpi eq, %c2_i32_230, %c0_i32_231 : i32
    %c1_i32_232 = arith.constant 1 : i32
    %404 = arith.select %403, %c1_i32_232, %c2_i32_230 : i32
    %405 = vector.broadcast %404 : i32 to vector<16x1xi32>
    %406 = arith.remsi %402, %405 : vector<16x1xi32>
    %c0_i32_233 = arith.constant 0 : i32
    %407 = vector.broadcast %c0_i32_233 : i32 to vector<16x1xi32>
    %408 = arith.cmpi ne, %406, %407 : vector<16x1xi32>
    %c0_i32_234 = arith.constant 0 : i32
    %409 = vector.broadcast %c0_i32_234 : i32 to vector<16x1xi32>
    %410 = arith.cmpi slt, %406, %409 : vector<16x1xi32>
    %c0_i32_235 = arith.constant 0 : i32
    %411 = arith.cmpi slt, %404, %c0_i32_235 : i32
    %412 = vector.broadcast %411 : i1 to vector<16x1xi1>
    %413 = vector.broadcast %412 : vector<16x1xi1> to vector<16x1xi1>
    %414 = arith.xori %410, %413 : vector<16x1xi1>
    %415 = arith.andi %414, %408 : vector<16x1xi1>
    %416 = vector.broadcast %404 : i32 to vector<16x1xi32>
    %417 = arith.addi %406, %416 : vector<16x1xi32>
    %418 = arith.select %415, %417, %406 : vector<16x1xi1>, vector<16x1xi32>
    %c0_i32_236 = arith.constant 0 : i32
    %419 = vector.broadcast %c0_i32_236 : i32 to vector<16x1xi32>
    %420 = arith.cmpi eq, %418, %419 : vector<16x1xi32>
    %421 = arith.select %420, %400, %401 : vector<16x1xi1>, vector<16x1xf32>
    %422 = arith.addf %399, %421 : vector<16x1xf32>
    %cst_237 = arith.constant 7.812500e-03 : f32
    %423 = vector.broadcast %cst_237 : f32 to vector<16x1xf32>
    %424 = arith.mulf %422, %423 : vector<16x1xf32>
    %cst_238 = arith.constant 9.99999974E-6 : f32
    %425 = vector.broadcast %cst_238 : f32 to vector<16x1xf32>
    %426 = arith.addf %424, %425 : vector<16x1xf32>
    %427 = math.rsqrt %426 : vector<16x1xf32>
    %428 = vector.broadcast %427 : vector<16x1xf32> to vector<16x256xf32>
    %429 = arith.mulf %392, %428 : vector<16x256xf32>
    %430 = vector.broadcast %270 : vector<16x1xf32> to vector<16x256xf32>
    %431 = arith.mulf %429, %430 : vector<16x256xf32>
    %432 = vector.broadcast %272 : vector<16x1xf32> to vector<16x256xf32>
    %433 = arith.addf %431, %432 : vector<16x256xf32>
    %cst_239 = arith.constant 0.000000e+00 : f32
    %434 = vector.broadcast %cst_239 : f32 to vector<16x256xf32>
    %435 = arith.maximumf %433, %434 : vector<16x256xf32>
    %cst_240 = arith.constant 0.000000e+00 : f32
    %436 = vector.shape_cast %359 : vector<1x256xi1> to vector<1x256xi1>
    %437 = vector.broadcast %436 : vector<1x256xi1> to vector<16x256xi1>
    %438 = vector.broadcast %cst_240 : f32 to vector<16x256xf32>
    %439 = arith.select %437, %435, %438 : vector<16x256xi1>, vector<16x256xf32>
    %c0_241 = arith.constant 0 : index
    %c0_242 = arith.constant 0 : index
    %c256 = arith.constant 256 : index
    %440 = vector.load %arg11[%c0_241, %c0_242, %c256] : memref<1x16x512xf32, #tpu.memory_space<vmem>>, vector<1x16x256xf32>
    %441 = vector.shape_cast %440 : vector<1x16x256xf32> to vector<16x256xf32>
    %442 = vector.shape_cast %439 : vector<16x256xf32> to vector<1x16x256xf32>
    tpu.vector_store %arg11[%c0_241, %c0_242, %c256], %442 {strides = array<i32>} : memref<1x16x512xf32, #tpu.memory_space<vmem>>, vector<1x16x256xf32>,
    return
  }
  func.func @transform_0(%arg0: i32) -> (i32, i32, i32, i32) {
    %c0_i32 = arith.constant 0 : i32
    %c0_i32_0 = arith.constant 0 : i32
    %c0_i32_1 = arith.constant 0 : i32
    %c0_i32_2 = arith.constant 0 : i32
    return %arg0, %c0_i32, %c0_i32_0, %c0_i32_1 : i32, i32, i32, i32
  }
  func.func @transform_1(%arg0: i32) -> (i32, i32) {
    %c0_i32 = arith.constant 0 : i32
    %c0_i32_0 = arith.constant 0 : i32
    %c0_i32_1 = arith.constant 0 : i32
    return %c0_i32, %c0_i32_0 : i32, i32
  }
  func.func @transform_2(%arg0: i32) -> (i32, i32) {
    %c0_i32 = arith.constant 0 : i32
    %c0_i32_0 = arith.constant 0 : i32
    %c0_i32_1 = arith.constant 0 : i32
    return %c0_i32, %c0_i32_0 : i32, i32
  }
  func.func @transform_3(%arg0: i32) -> (i32, i32) {
    %c0_i32 = arith.constant 0 : i32
    %c0_i32_0 = arith.constant 0 : i32
    %c0_i32_1 = arith.constant 0 : i32
    return %c0_i32, %c0_i32_0 : i32, i32
  }
  func.func @transform_4(%arg0: i32) -> (i32, i32, i32) {
    %c0_i32 = arith.constant 0 : i32
    %c0_i32_0 = arith.constant 0 : i32
    %c0_i32_1 = arith.constant 0 : i32
    return %arg0, %c0_i32, %c0_i32_0 : i32, i32, i32
  }
  func.func @transform_5(%arg0: i32) -> (i32, i32, i32) {
    %c0_i32 = arith.constant 0 : i32
    %c0_i32_0 = arith.constant 0 : i32
    %c0_i32_1 = arith.constant 0 : i32
    return %arg0, %c0_i32, %c0_i32_0 : i32, i32, i32
  }
  func.func @transform_6(%arg0: i32) -> (i32, i32) {
    %c0_i32 = arith.constant 0 : i32
    %c0_i32_0 = arith.constant 0 : i32
    %c0_i32_1 = arith.constant 0 : i32
    return %c0_i32, %c0_i32_0 : i32, i32
  }
  func.func @transform_7(%arg0: i32) -> (i32, i32) {
    %c0_i32 = arith.constant 0 : i32
    %c0_i32_0 = arith.constant 0 : i32
    %c0_i32_1 = arith.constant 0 : i32
    return %c0_i32, %c0_i32_0 : i32, i32
  }
  func.func @transform_8(%arg0: i32) -> (i32, i32, i32) {
    %c0_i32 = arith.constant 0 : i32
    %c0_i32_0 = arith.constant 0 : i32
    %c0_i32_1 = arith.constant 0 : i32
    return %arg0, %c0_i32, %c0_i32_0 : i32, i32, i32
  }
  func.func @transform_9(%arg0: i32) -> (i32, i32, i32) {
    %c0_i32 = arith.constant 0 : i32
    %c0_i32_0 = arith.constant 0 : i32
    %c0_i32_1 = arith.constant 0 : i32
    return %arg0, %c0_i32, %c0_i32_0 : i32, i32, i32
  }
  func.func @transform_10(%arg0: i32) -> (i32, i32, i32) {
    %c0_i32 = arith.constant 0 : i32
    %c0_i32_0 = arith.constant 0 : i32
    %c0_i32_1 = arith.constant 0 : i32
    return %arg0, %c0_i32, %c0_i32_0 : i32, i32, i32
  }
}

</mosaic_0001>

<llo_original>
// kernel: down_forward.1
$region0: #{down_forward.1}
  #allocation0 [shape = 'u32[]', space=smem, size = 0x4, offset = 0x4, fixed_abs, tag = 'smem constant byte address 0x4 - core index']
  #allocation1 [shape = 'u32[72,128]{1,0:T(1,128)}', space=vmem, size = 0x9000, scoped, tag = 'internal scratch']
  #allocation2 [shape = 'bf16[8,768]{1,0:T(8,128)(2,1)}', space=vmem, size = 0x3000, scoped, tag = 'scratch operand']
  #allocation3 [shape = 'bf16[16,768]{1,0:T(8,128)(2,1)}', space=vmem, size = 0x6000, scoped, tag = 'scratch operand']
  %s0 = inlined_call_operand.vmem [shape: bf16[2,8,8,512], index: 0, kind: input, shape index: {}]
  %s1 = inlined_call_operand.vmem [shape: f32[1,512], index: 1, kind: input, shape index: {}]
  %s2 = inlined_call_operand.vmem [shape: bf16[16,216], index: 2, kind: input, shape index: {}]
  %s3 = inlined_call_operand.vmem [shape: f32[16,1], index: 3, kind: input, shape index: {}]
  %s4 = inlined_call_operand.vmem [shape: f32[2,16,1], index: 4, kind: input, shape index: {}]
  %s5 = inlined_call_operand.vmem [shape: f32[2,16,1], index: 5, kind: input, shape index: {}]
  %s6 = inlined_call_operand.vmem [shape: bf16[16,432], index: 6, kind: input, shape index: {}]
  %s7 = inlined_call_operand.vmem [shape: f32[16,1], index: 7, kind: input, shape index: {}]
  %s8 = inlined_call_operand.vmem [shape: f32[2,16,1], index: 8, kind: input, shape index: {}]
  %s9 = inlined_call_operand.vmem [shape: f32[2,16,1], index: 9, kind: input, shape index: {}]
  %s10 = inlined_call_operand.vmem [shape: f32[2,16,512], index: 10, kind: output, shape index: {}]
  %s11 = sld [smem:[#allocation0]]
  $region73: #{down_forward.1} parent=0
    _
  %s13 = ssub.s32 1, %s11
  %s14 = scalar_select 0, %s13, %s11
  loop: start=0, step=1, limit=4
  $region2: #{down_forward.1} parent=0 // loop_pre_header
    _
  $region3: #{down_forward.1} parent=0 // loop_header
    %s16 = sphi 0, %s20
    %p17 = scmp.ge.s32.totalorder %s16, 4
    %s26 = sphi 0, %s28
    %s29 = sphi 0, %s26
    %s30 = sphi 0, %s29
    %s46 = sphi 0, %s30
    %s50 = sphi 0, %s50
    %s52 = sphi 0, %s50
    %s53 = sphi 0, %s52
    %s67 = sphi 0, %s53
    %s71 = sphi 0, %s71
    %s73 = sphi 0, %s71
    %s74 = sphi 0, %s73
    %s88 = sphi 0, %s74
    %s92 = sphi 0, %s92
    %s94 = sphi 0, %s92
    %s95 = sphi 0, %s94
    %s109 = sphi 0, %s95
    %s115 = sphi 0, %s117
    %s118 = sphi 0, %s115
    %s119 = sphi 0, %s118
    %s135 = sphi 0, %s119
    %s141 = sphi 0, %s143
    %s144 = sphi 0, %s141
    %s145 = sphi 0, %s144
    %s161 = sphi 0, %s145
    %s165 = sphi 0, %s165
    %s167 = sphi 0, %s165
    %s168 = sphi 0, %s167
    %s182 = sphi 0, %s168
    %s186 = sphi 0, %s186
    %s188 = sphi 0, %s186
    %s189 = sphi 0, %s188
    %s203 = sphi 0, %s189
    %s209 = sphi 0, %s211
    %s212 = sphi 0, %s209
    %s213 = sphi 0, %s212
    %s229 = sphi 0, %s213
    %s235 = sphi 0, %s237
    %s238 = sphi 0, %s235
    %s239 = sphi 0, %s238
    %s255 = sphi 0, %s239
    %s261 = sphi 0, %s263
    %s264 = sphi 0, %s261
    %s265 = sphi 0, %s264
    %s281 = sphi 0, %s265
  $region4: #{down_forward.1} parent=0 // loop_header_branch
    %19 = sbr.rel (%p17) target = $region8
  $region5: #{down_forward.1} parent=0 // loop_body
    %s21 = ssub.s32 %s16, 1
    %s22 = ssub.s32 %s16, 2
    %s23 = sadd.s32 %s16, 1
    %s24 = ssub.s32 %s16, %s23
    %p25 = scmp.eq.s32.totalorder %s24, 0
    %s27 = sadd.s32 %s26, 1
    %s28 = scalar_select %p25, %s26, %s27
    %p31 = pneg %p25
    %p32 = scmp.eq.s32.totalorder %s16, 1
    %p33 = por %p31, %p32
    %p34 = scmp.ne.s32.totalorder %s26, %s29
    %p35 = scmp.eq.s32.totalorder %s16, 0
    %p36 = por %p34, %p35
    %p37 = scmp.ne.s32.totalorder %s26, %s29
    %p38 = scmp.eq.s32.totalorder %s21, 1
    %p39 = por %p37, %p38
    %p40 = scmp.ne.s32.totalorder %s29, %s30
    %p41 = scmp.eq.s32.totalorder %s21, 0
    %p42 = por %p40, %p41
    %p43 = scmp.ne.s32.totalorder %s29, %s30
    %p44 = scmp.eq.s32.totalorder %s22, 1
    %p45 = por %p43, %p44
    %p47 = scmp.ne.s32.totalorder %s30, %s46
    %p48 = scmp.eq.s32.totalorder %s22, 0
    %p49 = por %p47, %p48
    %s51 = sadd.s32 %s50, 1
    %p54 = scmp.eq.s32.totalorder %s16, 1
    %p55 = scmp.ne.s32.totalorder %s50, %s52
    %p56 = scmp.eq.s32.totalorder %s16, 0
    %p57 = por %p55, %p56
    %p58 = scmp.ne.s32.totalorder %s50, %s52
    %p59 = scmp.eq.s32.totalorder %s21, 1
    %p60 = por %p58, %p59
    %p61 = scmp.ne.s32.totalorder %s52, %s53
    %p62 = scmp.eq.s32.totalorder %s21, 0
    %p63 = por %p61, %p62
    %p64 = scmp.ne.s32.totalorder %s52, %s53
    %p65 = scmp.eq.s32.totalorder %s22, 1
    %p66 = por %p64, %p65
    %p68 = scmp.ne.s32.totalorder %s53, %s67
    %p69 = scmp.eq.s32.totalorder %s22, 0
    %p70 = por %p68, %p69
    %s72 = sadd.s32 %s71, 1
    %p75 = scmp.eq.s32.totalorder %s16, 1
    %p76 = scmp.ne.s32.totalorder %s71, %s73
    %p77 = scmp.eq.s32.totalorder %s16, 0
    %p78 = por %p76, %p77
    %p79 = scmp.ne.s32.totalorder %s71, %s73
    %p80 = scmp.eq.s32.totalorder %s21, 1
    %p81 = por %p79, %p80
    %p82 = scmp.ne.s32.totalorder %s73, %s74
    %p83 = scmp.eq.s32.totalorder %s21, 0
    %p84 = por %p82, %p83
    %p85 = scmp.ne.s32.totalorder %s73, %s74
    %p86 = scmp.eq.s32.totalorder %s22, 1
    %p87 = por %p85, %p86
    %p89 = scmp.ne.s32.totalorder %s74, %s88
    %p90 = scmp.eq.s32.totalorder %s22, 0
    %p91 = por %p89, %p90
    %s93 = sadd.s32 %s92, 1
    %p96 = scmp.eq.s32.totalorder %s16, 1
    %p97 = scmp.ne.s32.totalorder %s92, %s94
    %p98 = scmp.eq.s32.totalorder %s16, 0
    %p99 = por %p97, %p98
    %p100 = scmp.ne.s32.totalorder %s92, %s94
    %p101 = scmp.eq.s32.totalorder %s21, 1
    %p102 = por %p100, %p101
    %p103 = scmp.ne.s32.totalorder %s94, %s95
    %p104 = scmp.eq.s32.totalorder %s21, 0
    %p105 = por %p103, %p104
    %p106 = scmp.ne.s32.totalorder %s94, %s95
    %p107 = scmp.eq.s32.totalorder %s22, 1
    %p108 = por %p106, %p107
    %p110 = scmp.ne.s32.totalorder %s95, %s109
    %p111 = scmp.eq.s32.totalorder %s22, 0
    %p112 = por %p110, %p111
    %s113 = ssub.s32 %s16, %s23
    %p114 = scmp.eq.s32.totalorder %s113, 0
    %s116 = sadd.s32 %s115, 1
    %s117 = scalar_select %p114, %s115, %s116
    %p120 = pneg %p114
    %p121 = scmp.eq.s32.totalorder %s16, 1
    %p122 = por %p120, %p121
    %p123 = scmp.ne.s32.totalorder %s115, %s118
    %p124 = scmp.eq.s32.totalorder %s16, 0
    %p125 = por %p123, %p124
    %p126 = scmp.ne.s32.totalorder %s115, %s118
    %p127 = scmp.eq.s32.totalorder %s21, 1
    %p128 = por %p126, %p127
    %p129 = scmp.ne.s32.totalorder %s118, %s119
    %p130 = scmp.eq.s32.totalorder %s21, 0
    %p131 = por %p129, %p130
    %p132 = scmp.ne.s32.totalorder %s118, %s119
    %p133 = scmp.eq.s32.totalorder %s22, 1
    %p134 = por %p132, %p133
    %p136 = scmp.ne.s32.totalorder %s119, %s135
    %p137 = scmp.eq.s32.totalorder %s22, 0
    %p138 = por %p136, %p137
    %s139 = ssub.s32 %s16, %s23
    %p140 = scmp.eq.s32.totalorder %s139, 0
    %s142 = sadd.s32 %s141, 1
    %s143 = scalar_select %p140, %s141, %s142
    %p146 = pneg %p140
    %p147 = scmp.eq.s32.totalorder %s16, 1
    %p148 = por %p146, %p147
    %p149 = scmp.ne.s32.totalorder %s141, %s144
    %p150 = scmp.eq.s32.totalorder %s16, 0
    %p151 = por %p149, %p150
    %p152 = scmp.ne.s32.totalorder %s141, %s144
    %p153 = scmp.eq.s32.totalorder %s21, 1
    %p154 = por %p152, %p153
    %p155 = scmp.ne.s32.totalorder %s144, %s145
    %p156 = scmp.eq.s32.totalorder %s21, 0
    %p157 = por %p155, %p156
    %p158 = scmp.ne.s32.totalorder %s144, %s145
    %p159 = scmp.eq.s32.totalorder %s22, 1
    %p160 = por %p158, %p159
    %p162 = scmp.ne.s32.totalorder %s145, %s161
    %p163 = scmp.eq.s32.totalorder %s22, 0
    %p164 = por %p162, %p163
    %s166 = sadd.s32 %s165, 1
    %p169 = scmp.eq.s32.totalorder %s16, 1
    %p170 = scmp.ne.s32.totalorder %s165, %s167
    %p171 = scmp.eq.s32.totalorder %s16, 0
    %p172 = por %p170, %p171
    %p173 = scmp.ne.s32.totalorder %s165, %s167
    %p174 = scmp.eq.s32.totalorder %s21, 1
    %p175 = por %p173, %p174
    %p176 = scmp.ne.s32.totalorder %s167, %s168
    %p177 = scmp.eq.s32.totalorder %s21, 0
    %p178 = por %p176, %p177
    %p179 = scmp.ne.s32.totalorder %s167, %s168
    %p180 = scmp.eq.s32.totalorder %s22, 1
    %p181 = por %p179, %p180
    %p183 = scmp.ne.s32.totalorder %s168, %s182
    %p184 = scmp.eq.s32.totalorder %s22, 0
    %p185 = por %p183, %p184
    %s187 = sadd.s32 %s186, 1
    %p190 = scmp.eq.s32.totalorder %s16, 1
    %p191 = scmp.ne.s32.totalorder %s186, %s188
    %p192 = scmp.eq.s32.totalorder %s16, 0
    %p193 = por %p191, %p192
    %p194 = scmp.ne.s32.totalorder %s186, %s188
    %p195 = scmp.eq.s32.totalorder %s21, 1
    %p196 = por %p194, %p195
    %p197 = scmp.ne.s32.totalorder %s188, %s189
    %p198 = scmp.eq.s32.totalorder %s21, 0
    %p199 = por %p197, %p198
    %p200 = scmp.ne.s32.totalorder %s188, %s189
    %p201 = scmp.eq.s32.totalorder %s22, 1
    %p202 = por %p200, %p201
    %p204 = scmp.ne.s32.totalorder %s189, %s203
    %p205 = scmp.eq.s32.totalorder %s22, 0
    %p206 = por %p204, %p205
    %s207 = ssub.s32 %s16, %s23
    %p208 = scmp.eq.s32.totalorder %s207, 0
    %s210 = sadd.s32 %s209, 1
    %s211 = scalar_select %p208, %s209, %s210
    %p214 = pneg %p208
    %p215 = scmp.eq.s32.totalorder %s16, 1
    %p216 = por %p214, %p215
    %p217 = scmp.ne.s32.totalorder %s209, %s212
    %p218 = scmp.eq.s32.totalorder %s16, 0
    %p219 = por %p217, %p218
    %p220 = scmp.ne.s32.totalorder %s209, %s212
    %p221 = scmp.eq.s32.totalorder %s21, 1
    %p222 = por %p220, %p221
    %p223 = scmp.ne.s32.totalorder %s212, %s213
    %p224 = scmp.eq.s32.totalorder %s21, 0
    %p225 = por %p223, %p224
    %p226 = scmp.ne.s32.totalorder %s212, %s213
    %p227 = scmp.eq.s32.totalorder %s22, 1
    %p228 = por %p226, %p227
    %p230 = scmp.ne.s32.totalorder %s213, %s229
    %p231 = scmp.eq.s32.totalorder %s22, 0
    %p232 = por %p230, %p231
    %s233 = ssub.s32 %s16, %s23
    %p234 = scmp.eq.s32.totalorder %s233, 0
    %s236 = sadd.s32 %s235, 1
    %s237 = scalar_select %p234, %s235, %s236
    %p240 = pneg %p234
    %p241 = scmp.eq.s32.totalorder %s16, 1
    %p242 = por %p240, %p241
    %p243 = scmp.ne.s32.totalorder %s235, %s238
    %p244 = scmp.eq.s32.totalorder %s16, 0
    %p245 = por %p243, %p244
    %p246 = scmp.ne.s32.totalorder %s235, %s238
    %p247 = scmp.eq.s32.totalorder %s21, 1
    %p248 = por %p246, %p247
    %p249 = scmp.ne.s32.totalorder %s238, %s239
    %p250 = scmp.eq.s32.totalorder %s21, 0
    %p251 = por %p249, %p250
    %p252 = scmp.ne.s32.totalorder %s238, %s239
    %p253 = scmp.eq.s32.totalorder %s22, 1
    %p254 = por %p252, %p253
    %p256 = scmp.ne.s32.totalorder %s239, %s255
    %p257 = scmp.eq.s32.totalorder %s22, 0
    %p258 = por %p256, %p257
    %s259 = ssub.s32 %s16, %s23
    %p260 = scmp.eq.s32.totalorder %s259, 0
    %s262 = sadd.s32 %s261, 1
    %s263 = scalar_select %p260, %s261, %s262
    %p266 = pneg %p260
    %p267 = scmp.eq.s32.totalorder %s16, 1
    %p268 = por %p266, %p267
    %p269 = scmp.ne.s32.totalorder %s261, %s264
    %p270 = scmp.eq.s32.totalorder %s16, 0
    %p271 = por %p269, %p270
    %p272 = scmp.ne.s32.totalorder %s261, %s264
    %p273 = scmp.eq.s32.totalorder %s21, 1
    %p274 = por %p272, %p273
    %p275 = scmp.ne.s32.totalorder %s264, %s265
    %p276 = scmp.eq.s32.totalorder %s21, 0
    %p277 = por %p275, %p276
    %p278 = scmp.ne.s32.totalorder %s264, %s265
    %p279 = scmp.eq.s32.totalorder %s22, 1
    %p280 = por %p278, %p279
    %p282 = scmp.ne.s32.totalorder %s265, %s281
    %p283 = scmp.eq.s32.totalorder %s22, 0
    %p284 = por %p282, %p283
    %p285 = scmp.le.s32.totalorder 1, %s16
    %p286 = scmp.lt.s32.totalorder %s16, 3
    %p287 = pnand %p285, %p286
    %p288 = pneg %p287
    // Predicated region
    $region9: #{down_forward.1} parent=5 // pred_check
      _
    $region10: #{down_forward.1} parent=5 // pred_check_branch
      %290 = sbr.rel (%p287) target = $region12
    $region11: #{down_forward.1} parent=5 // pred_region
      %s291 = ssub.s32 %s16, 1
      // Predicated region
      $region13: #{down_forward.1} parent=11 // pred_check
        %p292 = pneg %p63
      $region14: #{down_forward.1} parent=11 // pred_check_branch
        %294 = sbr.rel (%p292) target = $region16
      $region15: #{down_forward.1} parent=11 // pred_region
        _
      $region16: #{down_forward.1} parent=11 // pred_fallthru
        _
      // Predicated region
      $region17: #{down_forward.1} parent=11 // pred_check
        %p295 = pneg %p84
      $region18: #{down_forward.1} parent=11 // pred_check_branch
        %297 = sbr.rel (%p295) target = $region20
      $region19: #{down_forward.1} parent=11 // pred_region
        _
      $region20: #{down_forward.1} parent=11 // pred_fallthru
        _
      // Predicated region
      $region21: #{down_forward.1} parent=11 // pred_check
        %p298 = pneg %p105
      $region22: #{down_forward.1} parent=11 // pred_check_branch
        %300 = sbr.rel (%p298) target = $region24
      $region23: #{down_forward.1} parent=11 // pred_region
        _
      $region24: #{down_forward.1} parent=11 // pred_fallthru
        _
      // Predicated region
      $region25: #{down_forward.1} parent=11 // pred_check
        %p301 = pneg %p178
      $region26: #{down_forward.1} parent=11 // pred_check_branch
        %303 = sbr.rel (%p301) target = $region28
      $region27: #{down_forward.1} parent=11 // pred_region
        _
      $region28: #{down_forward.1} parent=11 // pred_fallthru
        _
      // Predicated region
      $region29: #{down_forward.1} parent=11 // pred_check
        %p304 = pneg %p199
      $region30: #{down_forward.1} parent=11 // pred_check_branch
        %306 = sbr.rel (%p304) target = $region32
      $region31: #{down_forward.1} parent=11 // pred_region
        _
      $region32: #{down_forward.1} parent=11 // pred_fallthru
        _
    $region12: #{down_forward.1} parent=5 // pred_fallthru
      _
    %p307 = scmp.lt.s32.totalorder %s16, 2
    // Predicated region
    $region33: #{down_forward.1} parent=5 // pred_check
      %p308 = pneg %p307
    $region34: #{down_forward.1} parent=5 // pred_check_branch
      %310 = sbr.rel (%p308) target = $region36
    $region35: #{down_forward.1} parent=5 // pred_region
      // Predicated region
      $region37: #{down_forward.1} parent=35 // pred_check
        %p311 = pneg %p36
      $region38: #{down_forward.1} parent=35 // pred_check_branch
        %313 = sbr.rel (%p311) target = $region40
      $region39: #{down_forward.1} parent=35 // pred_region
        %p314 = scmp.lt.s32.totalorder %s16, 1
        %s315 = scalar_select %p314, %s16, 1
        %s316 = smul.addr %s315, 32
        %s317 = smul.addr %s316, 4
        %s318 = scalar_lea.vmem %s0, %s317
      $region40: #{down_forward.1} parent=35 // pred_fallthru
        _
      // Predicated region
      $region41: #{down_forward.1} parent=35 // pred_check
        %p319 = pneg %p125
      $region42: #{down_forward.1} parent=35 // pred_check_branch
        %321 = sbr.rel (%p319) target = $region44
      $region43: #{down_forward.1} parent=35 // pred_region
        %p322 = scmp.lt.s32.totalorder %s16, 1
        %s323 = scalar_select %p322, %s16, 1
        %s324 = smul.addr %s323, 2
        %s325 = smul.addr %s324, 8
        %s326 = scalar_lea.vmem %s4, %s325
      $region44: #{down_forward.1} parent=35 // pred_fallthru
        _
      // Predicated region
      $region45: #{down_forward.1} parent=35 // pred_check
        %p327 = pneg %p151
      $region46: #{down_forward.1} parent=35 // pred_check_branch
        %329 = sbr.rel (%p327) target = $region48
      $region47: #{down_forward.1} parent=35 // pred_region
        %p330 = scmp.lt.s32.totalorder %s16, 1
        %s331 = scalar_select %p330, %s16, 1
        %s332 = smul.addr %s331, 2
        %s333 = smul.addr %s332, 8
        %s334 = scalar_lea.vmem %s5, %s333
      $region48: #{down_forward.1} parent=35 // pred_fallthru
        _
      // Predicated region
      $region49: #{down_forward.1} parent=35 // pred_check
        %p335 = pneg %p219
      $region50: #{down_forward.1} parent=35 // pred_check_branch
        %337 = sbr.rel (%p335) target = $region52
      $region51: #{down_forward.1} parent=35 // pred_region
        %p338 = scmp.lt.s32.totalorder %s16, 1
        %s339 = scalar_select %p338, %s16, 1
        %s340 = smul.addr %s339, 2
        %s341 = smul.addr %s340, 8
        %s342 = scalar_lea.vmem %s8, %s341
      $region52: #{down_forward.1} parent=35 // pred_fallthru
        _
      // Predicated region
      $region53: #{down_forward.1} parent=35 // pred_check
        %p343 = pneg %p245
      $region54: #{down_forward.1} parent=35 // pred_check_branch
        %345 = sbr.rel (%p343) target = $region56
      $region55: #{down_forward.1} parent=35 // pred_region
        %p346 = scmp.lt.s32.totalorder %s16, 1
        %s347 = scalar_select %p346, %s16, 1
        %s348 = smul.addr %s347, 2
        %s349 = smul.addr %s348, 8
        %s350 = scalar_lea.vmem %s9, %s349
      $region56: #{down_forward.1} parent=35 // pred_fallthru
        _
    $region36: #{down_forward.1} parent=5 // pred_fallthru
      _
    %p351 = scmp.le.s32.totalorder 1, %s16
    %p352 = scmp.lt.s32.totalorder %s16, 3
    %p353 = pnand %p351, %p352
    %p354 = pneg %p353
    // Predicated region
    $region57: #{down_forward.1} parent=5 // pred_check
      _
    $region58: #{down_forward.1} parent=5 // pred_check_branch
      %356 = sbr.rel (%p353) target = $region60
    $region59: #{down_forward.1} parent=5 // pred_region
      %s357 = ssub.s32 %s16, 1
      %p358 = scmp.lt.s32.totalorder %s21, 1
      %s359 = scalar_select %p358, %s21, 1
      %s360 = smul.addr %s359, 32
      %s361 = smul.addr %s360, 4
      %s362 = scalar_lea.vmem %s0, %s361
      %p363 = pneg %p42
      %p364 = pneg %p39
      %p365 = pneg %p63
      %p366 = pneg %p60
      %p367 = pneg %p84
      %p368 = pneg %p81
      %p369 = pneg %p105
      %p370 = pneg %p102
      %p371 = scmp.lt.s32.totalorder %s21, 1
      %s372 = scalar_select %p371, %s21, 1
      %s373 = smul.addr %s372, 2
      %s374 = smul.addr %s373, 8
      %s375 = scalar_lea.vmem %s4, %s374
      %p376 = pneg %p131
      %p377 = pneg %p128
      %p378 = scmp.lt.s32.totalorder %s21, 1
      %s379 = scalar_select %p378, %s21, 1
      %s380 = smul.addr %s379, 2
      %s381 = smul.addr %s380, 8
      %s382 = scalar_lea.vmem %s5, %s381
      %p383 = pneg %p157
      %p384 = pneg %p154
      %p385 = pneg %p178
      %p386 = pneg %p175
      %p387 = pneg %p199
      %p388 = pneg %p196
      %p389 = scmp.lt.s32.totalorder %s21, 1
      %s390 = scalar_select %p389, %s21, 1
      %s391 = smul.addr %s390, 2
      %s392 = smul.addr %s391, 8
      %s393 = scalar_lea.vmem %s8, %s392
      %p394 = pneg %p225
      %p395 = pneg %p222
      %p396 = scmp.lt.s32.totalorder %s21, 1
      %s397 = scalar_select %p396, %s21, 1
      %s398 = smul.addr %s397, 2
      %s399 = smul.addr %s398, 8
      %s400 = scalar_lea.vmem %s9, %s399
      %p401 = pneg %p251
      %p402 = pneg %p248
      %p403 = pneg %p277
      %p404 = pneg %p274
      %p405 = scmp.lt.s32.totalorder %s21, 1
      %s406 = scalar_select %p405, %s21, 1
      %s407 = smul.addr %s406, 8
      %s408 = smul.addr %s407, 8
      %s409 = scalar_lea.vmem %s10, %s408
      %p410 = scmp.lt.s32.totalorder %s21, 1
      %s411 = scalar_select %p410, %s21, 1
      %s412 = smul.addr %s411, 32
      %s413 = smul.addr %s412, 4
      %s414 = scalar_lea.vmem %s0, %s413
      %p415 = scmp.lt.s32.totalorder %s21, 1
      %s416 = scalar_select %p415, %s21, 1
      %s417 = smul.addr %s416, 2
      %s418 = smul.addr %s417, 8
      %s419 = scalar_lea.vmem %s4, %s418
      %p420 = scmp.lt.s32.totalorder %s21, 1
      %s421 = scalar_select %p420, %s21, 1
      %s422 = smul.addr %s421, 2
      %s423 = smul.addr %s422, 8
      %s424 = scalar_lea.vmem %s5, %s423
      %p425 = scmp.lt.s32.totalorder %s21, 1
      %s426 = scalar_select %p425, %s21, 1
      %s427 = smul.addr %s426, 2
      %s428 = smul.addr %s427, 8
      %s429 = scalar_lea.vmem %s8, %s428
      %p430 = scmp.lt.s32.totalorder %s21, 1
      %s431 = scalar_select %p430, %s21, 1
      %s432 = smul.addr %s431, 2
      %s433 = smul.addr %s432, 8
      %s434 = scalar_lea.vmem %s9, %s433
      %p435 = scmp.lt.s32.totalorder %s21, 1
      %s436 = scalar_select %p435, %s21, 1
      %s437 = smul.addr %s436, 8
      %s438 = smul.addr %s437, 8
      %s439 = scalar_lea.vmem %s10, %s438
      %v441 = vld [vmem:[%s414] sm:$0xff]
      %v442 = vld [vmem:[%s414 + $0x8] sm:$0xff]
      %s443 = scalar_lea.vmem %s414, 16
      %v444 = vld [vmem:[%s443] sm:$0xff]
      %v445 = vld [vmem:[%s443 + $0x8] sm:$0xff]
      %v446 = vunpack.c.l.bf16 %v441
      %v447 = vunpack.c.h.bf16 %v441
      %v448 = vunpack.c.l.bf16 %v442
      %v449 = vunpack.c.h.bf16 %v442
      %v450 = vunpack.c.l.bf16 %v444
      %v451 = vunpack.c.h.bf16 %v444
      %v452 = vunpack.c.l.bf16 %v445
      %v453 = vunpack.c.h.bf16 %v445
      %v454 = vmax.f32 %v446, %v450
      %v455 = vmax.f32 %v447, %v451
      %v456 = vmax.f32 %v448, %v452
      %v457 = vmax.f32 %v449, %v453
      %v458 = vpack.c.bf16 %v455, %v454
      %v459 = vpack.c.bf16 %v457, %v456
      %s460 = scalar_lea.vmem %s414, 32
      %v461 = vld [vmem:[%s460] sm:$0xff]
      %v462 = vld [vmem:[%s460 + $0x8] sm:$0xff]
      %v463 = vunpack.c.l.bf16 %v458
      %v464 = vunpack.c.h.bf16 %v458
      %v465 = vunpack.c.l.bf16 %v459
      %v466 = vunpack.c.h.bf16 %v459
      %v467 = vunpack.c.l.bf16 %v461
      %v468 = vunpack.c.h.bf16 %v461
      %v469 = vunpack.c.l.bf16 %v462
      %v470 = vunpack.c.h.bf16 %v462
      %v471 = vmax.f32 %v463, %v467
      %v472 = vmax.f32 %v464, %v468
      %v473 = vmax.f32 %v465, %v469
      %v474 = vmax.f32 %v466, %v470
      %v475 = vpack.c.bf16 %v472, %v471
      %v476 = vpack.c.bf16 %v474, %v473
      %s477 = scalar_lea.vmem %s414, 48
      %v478 = vld [vmem:[%s477] sm:$0xff]
      %v479 = vld [vmem:[%s477 + $0x8] sm:$0xff]
      %v480 = vunpack.c.l.bf16 %v475
      %v481 = vunpack.c.h.bf16 %v475
      %v482 = vunpack.c.l.bf16 %v476
      %v483 = vunpack.c.h.bf16 %v476
      %v484 = vunpack.c.l.bf16 %v478
      %v485 = vunpack.c.h.bf16 %v478
      %v486 = vunpack.c.l.bf16 %v479
      %v487 = vunpack.c.h.bf16 %v479
      %v488 = vmax.f32 %v480, %v484
      %v489 = vmax.f32 %v481, %v485
      %v490 = vmax.f32 %v482, %v486
      %v491 = vmax.f32 %v483, %v487
      %v492 = vpack.c.bf16 %v489, %v488
      %v493 = vpack.c.bf16 %v491, %v490
      %s494 = scalar_lea.vmem %s414, 64
      %v495 = vld [vmem:[%s494] sm:$0xff]
      %v496 = vld [vmem:[%s494 + $0x8] sm:$0xff]
      %v497 = vunpack.c.l.bf16 %v492
      %v498 = vunpack.c.h.bf16 %v492
      %v499 = vunpack.c.l.bf16 %v493
      %v500 = vunpack.c.h.bf16 %v493
      %v501 = vunpack.c.l.bf16 %v495
      %v502 = vunpack.c.h.bf16 %v495
      %v503 = vunpack.c.l.bf16 %v496
      %v504 = vunpack.c.h.bf16 %v496
      %v505 = vmax.f32 %v497, %v501
      %v506 = vmax.f32 %v498, %v502
      %v507 = vmax.f32 %v499, %v503
      %v508 = vmax.f32 %v500, %v504
      %v509 = vpack.c.bf16 %v506, %v505
      %v510 = vpack.c.bf16 %v508, %v507
      %s511 = scalar_lea.vmem %s414, 80
      %v512 = vld [vmem:[%s511] sm:$0xff]
      %v513 = vld [vmem:[%s511 + $0x8] sm:$0xff]
      %v514 = vunpack.c.l.bf16 %v509
      %v515 = vunpack.c.h.bf16 %v509
      %v516 = vunpack.c.l.bf16 %v510
      %v517 = vunpack.c.h.bf16 %v510
      %v518 = vunpack.c.l.bf16 %v512
      %v519 = vunpack.c.h.bf16 %v512
      %v520 = vunpack.c.l.bf16 %v513
      %v521 = vunpack.c.h.bf16 %v513
      %v522 = vmax.f32 %v514, %v518
      %v523 = vmax.f32 %v515, %v519
      %v524 = vmax.f32 %v516, %v520
      %v525 = vmax.f32 %v517, %v521
      %v526 = vpack.c.bf16 %v523, %v522
      %v527 = vpack.c.bf16 %v525, %v524
      %s528 = scalar_lea.vmem %s414, 96
      %v529 = vld [vmem:[%s528] sm:$0xff]
      %v530 = vld [vmem:[%s528 + $0x8] sm:$0xff]
      %v531 = vunpack.c.l.bf16 %v526
      %v532 = vunpack.c.h.bf16 %v526
      %v533 = vunpack.c.l.bf16 %v527
      %v534 = vunpack.c.h.bf16 %v527
      %v535 = vunpack.c.l.bf16 %v529
      %v536 = vunpack.c.h.bf16 %v529
      %v537 = vunpack.c.l.bf16 %v530
      %v538 = vunpack.c.h.bf16 %v530
      %v539 = vmax.f32 %v531, %v535
      %v540 = vmax.f32 %v532, %v536
      %v541 = vmax.f32 %v533, %v537
      %v542 = vmax.f32 %v534, %v538
      %v543 = vpack.c.bf16 %v540, %v539
      %v544 = vpack.c.bf16 %v542, %v541
      %s545 = scalar_lea.vmem %s414, 112
      %v546 = vld [vmem:[%s545] sm:$0xff]
      %v547 = vld [vmem:[%s545 + $0x8] sm:$0xff]
      %v548 = vunpack.c.l.bf16 %v543
      %v549 = vunpack.c.h.bf16 %v543
      %v550 = vunpack.c.l.bf16 %v544
      %v551 = vunpack.c.h.bf16 %v544
      %v552 = vunpack.c.l.bf16 %v546
      %v553 = vunpack.c.h.bf16 %v546
      %v554 = vunpack.c.l.bf16 %v547
      %v555 = vunpack.c.h.bf16 %v547
      %v556 = vmax.f32 %v548, %v552
      %v557 = vmax.f32 %v549, %v553
      %v558 = vmax.f32 %v550, %v554
      %v559 = vmax.f32 %v551, %v555
      %v560 = vpack.c.bf16 %v557, %v556
      %v561 = vpack.c.bf16 %v559, %v558
      %562 = vst [vmem:[#allocation2 + $0x4] sm:$0xff] %v560
      %563 = vst [vmem:[#allocation2 + $0xc] sm:$0xff] %v561
      %v564 = vld [vmem:[%s1] sm:$0xf]
      %vm565 = vcmp.gt.f32.partialorder %v564, 0.5
      %v566 = vld [vmem:[#allocation2] sm:$0xff]
      %v567 = vld [vmem:[#allocation2 + $0x8] sm:$0xff]
      %v568 = vld [vmem:[#allocation2 + $0x10] sm:$0xf]
      %v569 = vld [vmem:[#allocation2 + $0x4] sm:$0xff]
      %v570 = vld [vmem:[#allocation2 + $0xc] sm:$0xff]
      %v571 = vld [vmem:[#allocation2 + $0x4] sm:$0xff]
      %v572 = vld [vmem:[#allocation2 + $0xc] sm:$0xff]
      %v573 = vld [vmem:[#allocation2 + $0x14] sm:$0xf]
      %v577 = vunpack.c.l.b16 %v566
      %v578 = vunpack.c.h.b16 %v566
      %v579 = vunpack.c.l.b16 %v567
      %v580 = vunpack.c.h.b16 %v567
      %v581 = vunpack.c.l.b16 %v568
      %v582 = vpack.c.b16 %v577, %v577
      %v583 = vpack.c.b16 %v578, %v578
      %v584 = vpack.c.b16 %v579, %v579
      %v585 = vpack.c.b16 %v580, %v580
      %v586 = vpack.c.b16 %v581, %v581
      %587 = vrot.lane.b32.xlu0 %v582, 127
      %v588 = vpop.permute.xlu0 %587
      %589 = vrot.lane.b32.xlu0 %v583, 127
      %v590 = vpop.permute.xlu0 %589
      %591 = vrot.lane.b32.xlu0 %v584, 127
      %v592 = vpop.permute.xlu0 %591
      %593 = vrot.lane.b32.xlu0 %v585, 127
      %v594 = vpop.permute.xlu0 %593
      %595 = vrot.lane.b32.xlu0 %v586, 127
      %v596 = vpop.permute.xlu0 %595
      %vm597 = vcmask 1039360
      %v598 = vsel %vm597, %v588, %v590
      %v599 = vsel %vm597, %v590, %v592
      %v600 = vsel %vm597, %v592, %v594
      %v601 = vsel %vm597, %v594, %v596
      %602 = vrot.lane.b32.xlu0 %v582, 126
      %v603 = vpop.permute.xlu0 %602
      %604 = vrot.lane.b32.xlu0 %v583, 126
      %v605 = vpop.permute.xlu0 %604
      %606 = vrot.lane.b32.xlu0 %v584, 126
      %v607 = vpop.permute.xlu0 %606
      %608 = vrot.lane.b32.xlu0 %v585, 126
      %v609 = vpop.permute.xlu0 %608
      %610 = vrot.lane.b32.xlu0 %v586, 126
      %v611 = vpop.permute.xlu0 %610
      %vm612 = vcmask 1031168
      %v613 = vsel %vm612, %v603, %v605
      %v614 = vsel %vm612, %v605, %v607
      %v615 = vsel %vm612, %v607, %v609
      %v616 = vsel %vm612, %v609, %v611
      %617 = vrot.lane.b32.xlu0 %v582, 122
      %v618 = vpop.permute.xlu0 %617
      %619 = vrot.lane.b32.xlu0 %v583, 122
      %v620 = vpop.permute.xlu0 %619
      %621 = vrot.lane.b32.xlu0 %v584, 122
      %v622 = vpop.permute.xlu0 %621
      %623 = vrot.lane.b32.xlu0 %v585, 122
      %v624 = vpop.permute.xlu0 %623
      %625 = vrot.lane.b32.xlu0 %v586, 122
      %v626 = vpop.permute.xlu0 %625
      %vm627 = vcmask 998400
      %v628 = vsel %vm627, %v618, %v620
      %v629 = vsel %vm627, %v620, %v622
      %v630 = vsel %vm627, %v622, %v624
      %v631 = vsel %vm627, %v624, %v626
      %632 = vrot.lane.b32.xlu0 %v582, 121
      %v633 = vpop.permute.xlu0 %632
      %634 = vrot.lane.b32.xlu0 %v583, 121
      %v635 = vpop.permute.xlu0 %634
      %636 = vrot.lane.b32.xlu0 %v584, 121
      %v637 = vpop.permute.xlu0 %636
      %638 = vrot.lane.b32.xlu0 %v585, 121
      %v639 = vpop.permute.xlu0 %638
      %640 = vrot.lane.b32.xlu0 %v586, 121
      %v641 = vpop.permute.xlu0 %640
      %vm642 = vcmask 990208
      %v643 = vsel %vm642, %v633, %v635
      %v644 = vsel %vm642, %v635, %v637
      %v645 = vsel %vm642, %v637, %v639
      %v646 = vsel %vm642, %v639, %v641
      %647 = vrot.lane.b32.xlu0 %v582, 120
      %v648 = vpop.permute.xlu0 %647
      %649 = vrot.lane.b32.xlu0 %v583, 120
      %v650 = vpop.permute.xlu0 %649
      %651 = vrot.lane.b32.xlu0 %v584, 120
      %v652 = vpop.permute.xlu0 %651
      %653 = vrot.lane.b32.xlu0 %v585, 120
      %v654 = vpop.permute.xlu0 %653
      %655 = vrot.lane.b32.xlu0 %v586, 120
      %v656 = vpop.permute.xlu0 %655
      %vm657 = vcmask 982016
      %v658 = vsel %vm657, %v648, %v650
      %v659 = vsel %vm657, %v650, %v652
      %v660 = vsel %vm657, %v652, %v654
      %v661 = vsel %vm657, %v654, %v656
      %662 = vrot.lane.b32.xlu0 %v582, 116
      %v663 = vpop.permute.xlu0 %662
      %664 = vrot.lane.b32.xlu0 %v583, 116
      %v665 = vpop.permute.xlu0 %664
      %666 = vrot.lane.b32.xlu0 %v584, 116
      %v667 = vpop.permute.xlu0 %666
      %668 = vrot.lane.b32.xlu0 %v585, 116
      %v669 = vpop.permute.xlu0 %668
      %670 = vrot.lane.b32.xlu0 %v586, 116
      %v671 = vpop.permute.xlu0 %670
      %vm672 = vcmask 949248
      %v673 = vsel %vm672, %v663, %v665
      %v674 = vsel %vm672, %v665, %v667
      %v675 = vsel %vm672, %v667, %v669
      %v676 = vsel %vm672, %v669, %v671
      %677 = vrot.lane.b32.xlu0 %v582, 115
      %v678 = vpop.permute.xlu0 %677
      %679 = vrot.lane.b32.xlu0 %v583, 115
      %v680 = vpop.permute.xlu0 %679
      %681 = vrot.lane.b32.xlu0 %v584, 115
      %v682 = vpop.permute.xlu0 %681
      %683 = vrot.lane.b32.xlu0 %v585, 115
      %v684 = vpop.permute.xlu0 %683
      %685 = vrot.lane.b32.xlu0 %v586, 115
      %v686 = vpop.permute.xlu0 %685
      %vm687 = vcmask 941056
      %v688 = vsel %vm687, %v678, %v680
      %v689 = vsel %vm687, %v680, %v682
      %v690 = vsel %vm687, %v682, %v684
      %v691 = vsel %vm687, %v684, %v686
      %692 = vrot.lane.b32.xlu0 %v582, 114
      %v693 = vpop.permute.xlu0 %692
      %694 = vrot.lane.b32.xlu0 %v583, 114
      %v695 = vpop.permute.xlu0 %694
      %696 = vrot.lane.b32.xlu0 %v584, 114
      %v697 = vpop.permute.xlu0 %696
      %698 = vrot.lane.b32.xlu0 %v585, 114
      %v699 = vpop.permute.xlu0 %698
      %700 = vrot.lane.b32.xlu0 %v586, 114
      %v701 = vpop.permute.xlu0 %700
      %vm702 = vcmask 932864
      %v703 = vsel %vm702, %v693, %v695
      %v704 = vsel %vm702, %v695, %v697
      %v705 = vsel %vm702, %v697, %v699
      %v706 = vsel %vm702, %v699, %v701
      %707 = vrot.lane.b32.xlu0 %v582, 92
      %v708 = vpop.permute.xlu0 %707
      %709 = vrot.lane.b32.xlu0 %v583, 92
      %v710 = vpop.permute.xlu0 %709
      %711 = vrot.lane.b32.xlu0 %v584, 92
      %v712 = vpop.permute.xlu0 %711
      %713 = vrot.lane.b32.xlu0 %v585, 92
      %v714 = vpop.permute.xlu0 %713
      %715 = vrot.lane.b32.xlu0 %v586, 92
      %v716 = vpop.permute.xlu0 %715
      %vm717 = vcmask 752640
      %v718 = vsel %vm717, %v708, %v710
      %v719 = vsel %vm717, %v710, %v712
      %v720 = vsel %vm717, %v712, %v714
      %v721 = vsel %vm717, %v714, %v716
      %722 = vrot.lane.b32.xlu0 %v582, 91
      %v723 = vpop.permute.xlu0 %722
      %724 = vrot.lane.b32.xlu0 %v583, 91
      %v725 = vpop.permute.xlu0 %724
      %726 = vrot.lane.b32.xlu0 %v584, 91
      %v727 = vpop.permute.xlu0 %726
      %728 = vrot.lane.b32.xlu0 %v585, 91
      %v729 = vpop.permute.xlu0 %728
      %730 = vrot.lane.b32.xlu0 %v586, 91
      %v731 = vpop.permute.xlu0 %730
      %vm732 = vcmask 744448
      %v733 = vsel %vm732, %v723, %v725
      %v734 = vsel %vm732, %v725, %v727
      %v735 = vsel %vm732, %v727, %v729
      %v736 = vsel %vm732, %v729, %v731
      %737 = vrot.lane.b32.xlu0 %v582, 90
      %v738 = vpop.permute.xlu0 %737
      %739 = vrot.lane.b32.xlu0 %v583, 90
      %v740 = vpop.permute.xlu0 %739
      %741 = vrot.lane.b32.xlu0 %v584, 90
      %v742 = vpop.permute.xlu0 %741
      %743 = vrot.lane.b32.xlu0 %v585, 90
      %v744 = vpop.permute.xlu0 %743
      %745 = vrot.lane.b32.xlu0 %v586, 90
      %v746 = vpop.permute.xlu0 %745
      %vm747 = vcmask 736256
      %v748 = vsel %vm747, %v738, %v740
      %v749 = vsel %vm747, %v740, %v742
      %v750 = vsel %vm747, %v742, %v744
      %v751 = vsel %vm747, %v744, %v746
      %752 = vrot.lane.b32.xlu0 %v582, 86
      %v753 = vpop.permute.xlu0 %752
      %754 = vrot.lane.b32.xlu0 %v583, 86
      %v755 = vpop.permute.xlu0 %754
      %756 = vrot.lane.b32.xlu0 %v584, 86
      %v757 = vpop.permute.xlu0 %756
      %758 = vrot.lane.b32.xlu0 %v585, 86
      %v759 = vpop.permute.xlu0 %758
      %760 = vrot.lane.b32.xlu0 %v586, 86
      %v761 = vpop.permute.xlu0 %760
      %vm762 = vcmask 703488
      %v763 = vsel %vm762, %v753, %v755
      %v764 = vsel %vm762, %v755, %v757
      %v765 = vsel %vm762, %v757, %v759
      %v766 = vsel %vm762, %v759, %v761
      %v769 = vunpack.c.l.b16 %v569
      %v770 = vunpack.c.h.b16 %v569
      %v771 = vunpack.c.l.b16 %v570
      %v772 = vunpack.c.h.b16 %v570
      %v773 = vpack.c.b16 %v769, %v769
      %v774 = vpack.c.b16 %v770, %v770
      %v775 = vpack.c.b16 %v771, %v771
      %v776 = vpack.c.b16 %v772, %v772
      %777 = vrot.lane.b32.xlu0 %v773, 85
      %v778 = vpop.permute.xlu0 %777
      %779 = vrot.lane.b32.xlu0 %v774, 85
      %v780 = vpop.permute.xlu0 %779
      %781 = vrot.lane.b32.xlu0 %v775, 85
      %v782 = vpop.permute.xlu0 %781
      %783 = vrot.lane.b32.xlu0 %v776, 85
      %v784 = vpop.permute.xlu0 %783
      %vm785 = vcmask 695296
      %v786 = vsel %vm785, %v778, %v780
      %v787 = vsel %vm785, %v780, %v782
      %v788 = vsel %vm785, %v782, %v784
      %v792 = vunpack.c.l.b16 %v571
      %v793 = vunpack.c.h.b16 %v571
      %v794 = vunpack.c.l.b16 %v572
      %v795 = vunpack.c.h.b16 %v572
      %v796 = vunpack.c.l.b16 %v573
      %v797 = vpack.c.b16 %v792, %v792
      %v798 = vpack.c.b16 %v793, %v793
      %v799 = vpack.c.b16 %v794, %v794
      %v800 = vpack.c.b16 %v795, %v795
      %v801 = vpack.c.b16 %v796, %v796
      %802 = vrot.lane.b32.xlu0 %v797, 84
      %v803 = vpop.permute.xlu0 %802
      %804 = vrot.lane.b32.xlu0 %v798, 84
      %v805 = vpop.permute.xlu0 %804
      %806 = vrot.lane.b32.xlu0 %v799, 84
      %v807 = vpop.permute.xlu0 %806
      %808 = vrot.lane.b32.xlu0 %v800, 84
      %v809 = vpop.permute.xlu0 %808
      %810 = vrot.lane.b32.xlu0 %v801, 84
      %v811 = vpop.permute.xlu0 %810
      %vm812 = vcmask 687104
      %v813 = vsel %vm812, %v803, %v805
      %v814 = vsel %vm812, %v805, %v807
      %v815 = vsel %vm812, %v807, %v809
      %v816 = vsel %vm812, %v809, %v811
      %817 = vrot.lane.b32.xlu0 %v797, 80
      %v818 = vpop.permute.xlu0 %817
      %819 = vrot.lane.b32.xlu0 %v798, 80
      %v820 = vpop.permute.xlu0 %819
      %821 = vrot.lane.b32.xlu0 %v799, 80
      %v822 = vpop.permute.xlu0 %821
      %823 = vrot.lane.b32.xlu0 %v800, 80
      %v824 = vpop.permute.xlu0 %823
      %825 = vrot.lane.b32.xlu0 %v801, 80
      %v826 = vpop.permute.xlu0 %825
      %vm827 = vcmask 654336
      %v828 = vsel %vm827, %v818, %v820
      %v829 = vsel %vm827, %v820, %v822
      %v830 = vsel %vm827, %v822, %v824
      %v831 = vsel %vm827, %v824, %v826
      %vm832 = vcmask 1043456
      %v835 = vsel %vm832, %v582, %v598
      %v838 = vsel %vm832, %v583, %v599
      %v841 = vsel %vm832, %v584, %v600
      %v844 = vsel %vm832, %v585, %v601
      %v847 = vsel %vm832, %v586, %v596
      %v850 = vsel %vm832, %v613, %v628
      %v853 = vsel %vm832, %v614, %v629
      %v856 = vsel %vm832, %v615, %v630
      %v859 = vsel %vm832, %v616, %v631
      %v862 = vsel %vm832, %v611, %v626
      %v865 = vsel %vm832, %v643, %v658
      %v868 = vsel %vm832, %v644, %v659
      %v871 = vsel %vm832, %v645, %v660
      %v874 = vsel %vm832, %v646, %v661
      %v877 = vsel %vm832, %v641, %v656
      %v880 = vsel %vm832, %v673, %v688
      %v883 = vsel %vm832, %v674, %v689
      %v886 = vsel %vm832, %v675, %v690
      %v889 = vsel %vm832, %v676, %v691
      %v892 = vsel %vm832, %v671, %v686
      %v895 = vsel %vm832, %v703, %v718
      %v898 = vsel %vm832, %v704, %v719
      %v901 = vsel %vm832, %v705, %v720
      %v904 = vsel %vm832, %v706, %v721
      %v907 = vsel %vm832, %v701, %v716
      %v910 = vsel %vm832, %v733, %v748
      %v913 = vsel %vm832, %v734, %v749
      %v916 = vsel %vm832, %v735, %v750
      %v919 = vsel %vm832, %v736, %v751
      %v922 = vsel %vm832, %v731, %v746
      %v925 = vsel %vm832, %v763, %v778
      %v928 = vsel %vm832, %v764, %v786
      %v931 = vsel %vm832, %v765, %v787
      %v934 = vsel %vm832, %v766, %v788
      %v937 = vsel %vm832, %v761, %v784
      %v940 = vsel %vm832, %v803, %v818
      %v943 = vsel %vm832, %v813, %v828
      %v946 = vsel %vm832, %v814, %v829
      %v949 = vsel %vm832, %v815, %v830
      %v952 = vsel %vm832, %v816, %v831
      %953 = vrot.lane.b32.xlu0 %v797, 127
      %v954 = vpop.permute.xlu0 %953
      %955 = vrot.lane.b32.xlu0 %v798, 127
      %v956 = vpop.permute.xlu0 %955
      %957 = vrot.lane.b32.xlu0 %v799, 127
      %v958 = vpop.permute.xlu0 %957
      %959 = vrot.lane.b32.xlu0 %v800, 127
      %v960 = vpop.permute.xlu0 %959
      %961 = vrot.lane.b32.xlu0 %v801, 127
      %v962 = vpop.permute.xlu0 %961
      %v963 = vsel %vm597, %v954, %v956
      %v964 = vsel %vm597, %v956, %v958
      %v965 = vsel %vm597, %v958, %v960
      %v966 = vsel %vm597, %v960, %v962
      %967 = vrot.lane.b32.xlu0 %v797, 105
      %v968 = vpop.permute.xlu0 %967
      %969 = vrot.lane.b32.xlu0 %v798, 105
      %v970 = vpop.permute.xlu0 %969
      %971 = vrot.lane.b32.xlu0 %v799, 105
      %v972 = vpop.permute.xlu0 %971
      %973 = vrot.lane.b32.xlu0 %v800, 105
      %v974 = vpop.permute.xlu0 %973
      %975 = vrot.lane.b32.xlu0 %v801, 105
      %v976 = vpop.permute.xlu0 %975
      %vm977 = vcmask 859136
      %v978 = vsel %vm977, %v968, %v970
      %v979 = vsel %vm977, %v970, %v972
      %v980 = vsel %vm977, %v972, %v974
      %v981 = vsel %vm977, %v974, %v976
      %982 = vrot.lane.b32.xlu0 %v797, 104
      %v983 = vpop.permute.xlu0 %982
      %984 = vrot.lane.b32.xlu0 %v798, 104
      %v985 = vpop.permute.xlu0 %984
      %986 = vrot.lane.b32.xlu0 %v799, 104
      %v987 = vpop.permute.xlu0 %986
      %988 = vrot.lane.b32.xlu0 %v800, 104
      %v989 = vpop.permute.xlu0 %988
      %990 = vrot.lane.b32.xlu0 %v801, 104
      %v991 = vpop.permute.xlu0 %990
      %vm992 = vcmask 850944
      %v993 = vsel %vm992, %v983, %v985
      %v994 = vsel %vm992, %v985, %v987
      %v995 = vsel %vm992, %v987, %v989
      %v996 = vsel %vm992, %v989, %v991
      %997 = vrot.lane.b32.xlu0 %v797, 103
      %v998 = vpop.permute.xlu0 %997
      %999 = vrot.lane.b32.xlu0 %v798, 103
      %v1000 = vpop.permute.xlu0 %999
      %1001 = vrot.lane.b32.xlu0 %v799, 103
      %v1002 = vpop.permute.xlu0 %1001
      %1003 = vrot.lane.b32.xlu0 %v800, 103
      %v1004 = vpop.permute.xlu0 %1003
      %1005 = vrot.lane.b32.xlu0 %v801, 103
      %v1006 = vpop.permute.xlu0 %1005
      %vm1007 = vcmask 842752
      %v1008 = vsel %vm1007, %v998, %v1000
      %v1009 = vsel %vm1007, %v1000, %v1002
      %v1010 = vsel %vm1007, %v1002, %v1004
      %v1011 = vsel %vm1007, %v1004, %v1006
      %1012 = vrot.lane.b32.xlu0 %v797, 99
      %v1013 = vpop.permute.xlu0 %1012
      %1014 = vrot.lane.b32.xlu0 %v798, 99
      %v1015 = vpop.permute.xlu0 %1014
      %1016 = vrot.lane.b32.xlu0 %v799, 99
      %v1017 = vpop.permute.xlu0 %1016
      %1018 = vrot.lane.b32.xlu0 %v800, 99
      %v1019 = vpop.permute.xlu0 %1018
      %1020 = vrot.lane.b32.xlu0 %v801, 99
      %v1021 = vpop.permute.xlu0 %1020
      %vm1022 = vcmask 809984
      %v1023 = vsel %vm1022, %v1013, %v1015
      %v1024 = vsel %vm1022, %v1015, %v1017
      %v1025 = vsel %vm1022, %v1017, %v1019
      %v1026 = vsel %vm1022, %v1019, %v1021
      %1027 = vrot.lane.b32.xlu0 %v797, 98
      %v1028 = vpop.permute.xlu0 %1027
      %1029 = vrot.lane.b32.xlu0 %v798, 98
      %v1030 = vpop.permute.xlu0 %1029
      %1031 = vrot.lane.b32.xlu0 %v799, 98
      %v1032 = vpop.permute.xlu0 %1031
      %1033 = vrot.lane.b32.xlu0 %v800, 98
      %v1034 = vpop.permute.xlu0 %1033
      %1035 = vrot.lane.b32.xlu0 %v801, 98
      %v1036 = vpop.permute.xlu0 %1035
      %vm1037 = vcmask 801792
      %v1038 = vsel %vm1037, %v1028, %v1030
      %v1039 = vsel %vm1037, %v1030, %v1032
      %v1040 = vsel %vm1037, %v1032, %v1034
      %v1041 = vsel %vm1037, %v1034, %v1036
      %1042 = vrot.lane.b32.xlu0 %v797, 97
      %v1043 = vpop.permute.xlu0 %1042
      %1044 = vrot.lane.b32.xlu0 %v798, 97
      %v1045 = vpop.permute.xlu0 %1044
      %1046 = vrot.lane.b32.xlu0 %v799, 97
      %v1047 = vpop.permute.xlu0 %1046
      %1048 = vrot.lane.b32.xlu0 %v800, 97
      %v1049 = vpop.permute.xlu0 %1048
      %1050 = vrot.lane.b32.xlu0 %v801, 97
      %v1051 = vpop.permute.xlu0 %1050
      %vm1052 = vcmask 793600
      %v1053 = vsel %vm1052, %v1043, %v1045
      %v1054 = vsel %vm1052, %v1045, %v1047
      %v1055 = vsel %vm1052, %v1047, %v1049
      %v1056 = vsel %vm1052, %v1049, %v1051
      %1057 = vrot.lane.b32.xlu0 %v797, 93
      %v1058 = vpop.permute.xlu0 %1057
      %1059 = vrot.lane.b32.xlu0 %v798, 93
      %v1060 = vpop.permute.xlu0 %1059
      %1061 = vrot.lane.b32.xlu0 %v799, 93
      %v1062 = vpop.permute.xlu0 %1061
      %1063 = vrot.lane.b32.xlu0 %v800, 93
      %v1064 = vpop.permute.xlu0 %1063
      %1065 = vrot.lane.b32.xlu0 %v801, 93
      %v1066 = vpop.permute.xlu0 %1065
      %vm1067 = vcmask 760832
      %v1068 = vsel %vm1067, %v1058, %v1060
      %v1069 = vsel %vm1067, %v1060, %v1062
      %v1070 = vsel %vm1067, %v1062, %v1064
      %v1071 = vsel %vm1067, %v1064, %v1066
      %1072 = vrot.lane.b32.xlu0 %v797, 92
      %v1073 = vpop.permute.xlu0 %1072
      %1074 = vrot.lane.b32.xlu0 %v798, 92
      %v1075 = vpop.permute.xlu0 %1074
      %1076 = vrot.lane.b32.xlu0 %v799, 92
      %v1077 = vpop.permute.xlu0 %1076
      %1078 = vrot.lane.b32.xlu0 %v800, 92
      %v1079 = vpop.permute.xlu0 %1078
      %1080 = vrot.lane.b32.xlu0 %v801, 92
      %v1081 = vpop.permute.xlu0 %1080
      %v1082 = vsel %vm717, %v1073, %v1075
      %v1083 = vsel %vm717, %v1075, %v1077
      %v1084 = vsel %vm717, %v1077, %v1079
      %v1085 = vsel %vm717, %v1079, %v1081
      %1086 = vrot.lane.b32.xlu0 %v797, 91
      %v1087 = vpop.permute.xlu0 %1086
      %1088 = vrot.lane.b32.xlu0 %v798, 91
      %v1089 = vpop.permute.xlu0 %1088
      %1090 = vrot.lane.b32.xlu0 %v799, 91
      %v1091 = vpop.permute.xlu0 %1090
      %1092 = vrot.lane.b32.xlu0 %v800, 91
      %v1093 = vpop.permute.xlu0 %1092
      %1094 = vrot.lane.b32.xlu0 %v801, 91
      %v1095 = vpop.permute.xlu0 %1094
      %v1096 = vsel %vm732, %v1087, %v1089
      %v1097 = vsel %vm732, %v1089, %v1091
      %v1098 = vsel %vm732, %v1091, %v1093
      %v1099 = vsel %vm732, %v1093, %v1095
      %v1102 = vsel %vm832, %v797, %v963
      %v1105 = vsel %vm832, %v798, %v964
      %v1108 = vsel %vm832, %v799, %v965
      %v1111 = vsel %vm832, %v800, %v966
      %v1114 = vsel %vm832, %v801, %v962
      %v1117 = vsel %vm832, %v978, %v993
      %v1120 = vsel %vm832, %v979, %v994
      %v1123 = vsel %vm832, %v980, %v995
      %v1126 = vsel %vm832, %v981, %v996
      %v1129 = vsel %vm832, %v976, %v991
      %v1132 = vsel %vm832, %v1008, %v1023
      %v1135 = vsel %vm832, %v1009, %v1024
      %v1138 = vsel %vm832, %v1010, %v1025
      %v1141 = vsel %vm832, %v1011, %v1026
      %v1144 = vsel %vm832, %v1006, %v1021
      %v1147 = vsel %vm832, %v1038, %v1053
      %v1150 = vsel %vm832, %v1039, %v1054
      %v1153 = vsel %vm832, %v1040, %v1055
      %v1156 = vsel %vm832, %v1041, %v1056
      %v1159 = vsel %vm832, %v1036, %v1051
      %v1162 = vsel %vm832, %v1068, %v1082
      %v1165 = vsel %vm832, %v1069, %v1083
      %v1168 = vsel %vm832, %v1070, %v1084
      %v1171 = vsel %vm832, %v1071, %v1085
      %v1174 = vsel %vm832, %v1066, %v1081
      %1200 = vrot.lane.b32.xlu0 %v1102, 79
      %v1201 = vpop.permute.xlu0 %1200
      %1202 = vrot.lane.b32.xlu0 %v1105, 79
      %v1203 = vpop.permute.xlu0 %1202
      %1204 = vrot.lane.b32.xlu0 %v1108, 79
      %v1205 = vpop.permute.xlu0 %1204
      %1206 = vrot.lane.b32.xlu0 %v1111, 79
      %v1207 = vpop.permute.xlu0 %1206
      %1208 = vrot.lane.b32.xlu0 %v1114, 79
      %v1209 = vpop.permute.xlu0 %1208
      %1210 = vrot.lane.b32.xlu0 %v1117, 79
      %v1211 = vpop.permute.xlu0 %1210
      %1212 = vrot.lane.b32.xlu0 %v1120, 79
      %v1213 = vpop.permute.xlu0 %1212
      %1214 = vrot.lane.b32.xlu0 %v1123, 79
      %v1215 = vpop.permute.xlu0 %1214
      %1216 = vrot.lane.b32.xlu0 %v1126, 79
      %v1217 = vpop.permute.xlu0 %1216
      %1218 = vrot.lane.b32.xlu0 %v1129, 79
      %v1219 = vpop.permute.xlu0 %1218
      %1220 = vrot.lane.b32.xlu0 %v1132, 79
      %v1221 = vpop.permute.xlu0 %1220
      %1222 = vrot.lane.b32.xlu0 %v1135, 79
      %v1223 = vpop.permute.xlu0 %1222
      %1224 = vrot.lane.b32.xlu0 %v1138, 79
      %v1225 = vpop.permute.xlu0 %1224
      %1226 = vrot.lane.b32.xlu0 %v1141, 79
      %v1227 = vpop.permute.xlu0 %1226
      %1228 = vrot.lane.b32.xlu0 %v1144, 79
      %v1229 = vpop.permute.xlu0 %1228
      %1230 = vrot.lane.b32.xlu0 %v1147, 79
      %v1231 = vpop.permute.xlu0 %1230
      %1232 = vrot.lane.b32.xlu0 %v1150, 79
      %v1233 = vpop.permute.xlu0 %1232
      %1234 = vrot.lane.b32.xlu0 %v1153, 79
      %v1235 = vpop.permute.xlu0 %1234
      %1236 = vrot.lane.b32.xlu0 %v1156, 79
      %v1237 = vpop.permute.xlu0 %1236
      %1238 = vrot.lane.b32.xlu0 %v1159, 79
      %v1239 = vpop.permute.xlu0 %1238
      %1240 = vrot.lane.b32.xlu0 %v1162, 79
      %v1241 = vpop.permute.xlu0 %1240
      %1242 = vrot.lane.b32.xlu0 %v1165, 79
      %v1243 = vpop.permute.xlu0 %1242
      %1244 = vrot.lane.b32.xlu0 %v1168, 79
      %v1245 = vpop.permute.xlu0 %1244
      %1246 = vrot.lane.b32.xlu0 %v1171, 79
      %v1247 = vpop.permute.xlu0 %1246
      %1248 = vrot.lane.b32.xlu0 %v1174, 79
      %v1249 = vpop.permute.xlu0 %1248
      %1250 = vrot.lane.b32.xlu0 %v1096, 79
      %v1251 = vpop.permute.xlu0 %1250
      %1252 = vrot.lane.b32.xlu0 %v1097, 79
      %v1253 = vpop.permute.xlu0 %1252
      %1254 = vrot.lane.b32.xlu0 %v1098, 79
      %v1255 = vpop.permute.xlu0 %1254
      %1256 = vrot.lane.b32.xlu0 %v1099, 79
      %v1257 = vpop.permute.xlu0 %1256
      %1258 = vrot.lane.b32.xlu0 %v1095, 79
      %v1259 = vpop.permute.xlu0 %1258
      %vm1260 = vcmask 646144
      %v1261 = vsel %vm1260, %v1201, %v1203
      %v1262 = vsel %vm1260, %v1203, %v1205
      %v1263 = vsel %vm1260, %v1205, %v1207
      %v1264 = vsel %vm1260, %v1207, %v1209
      %v1265 = vsel %vm1260, %v1211, %v1213
      %v1266 = vsel %vm1260, %v1213, %v1215
      %v1267 = vsel %vm1260, %v1215, %v1217
      %v1268 = vsel %vm1260, %v1217, %v1219
      %v1269 = vsel %vm1260, %v1221, %v1223
      %v1270 = vsel %vm1260, %v1223, %v1225
      %v1271 = vsel %vm1260, %v1225, %v1227
      %v1272 = vsel %vm1260, %v1227, %v1229
      %v1273 = vsel %vm1260, %v1231, %v1233
      %v1274 = vsel %vm1260, %v1233, %v1235
      %v1275 = vsel %vm1260, %v1235, %v1237
      %v1276 = vsel %vm1260, %v1237, %v1239
      %v1277 = vsel %vm1260, %v1241, %v1243
      %v1278 = vsel %vm1260, %v1243, %v1245
      %v1279 = vsel %vm1260, %v1245, %v1247
      %v1280 = vsel %vm1260, %v1247, %v1249
      %v1281 = vsel %vm1260, %v1251, %v1253
      %v1282 = vsel %vm1260, %v1253, %v1255
      %v1283 = vsel %vm1260, %v1255, %v1257
      %v1284 = vsel %vm1260, %v1257, %v1259
      %v1285 = vld [vmem:[%s2] sm:$0xff]
      %v1286 = vld [vmem:[%s2 + $0x8] sm:$0xff]
      %v1287 = vld [vmem:[%s3] sm:$0xff]
      %v1288 = vld [vmem:[%s3 + $0x8] sm:$0xff]
      %1290 = vset.pattern.permute.xlu0 0
      %1291 = vperm.xlu0 %1290, %v1287
      %v1292 = vpop.permute.xlu0 %1291
      %1295 = vset.pattern.permute.xlu0 0
      %1296 = vperm.xlu0 %1295, %v1288
      %v1297 = vpop.permute.xlu0 %1296
      %v1301 = vunpack.c.l.b16 %v1285
      %v1302 = vunpack.c.h.b16 %v1285
      %v1303 = vunpack.c.l.b16 %v1286
      %v1304 = vunpack.c.h.b16 %v1286
      %v1305 = vpack.c.b16 %v1303, %v1301
      %v1306 = vpack.c.b16 %v1304, %v1302
      %1348 = vrot.lane.b32.xlu0 %v835, 43
      %v1349 = vpop.permute.xlu0 %1348
      %1350 = vrot.lane.b32.xlu0 %v838, 43
      %v1351 = vpop.permute.xlu0 %1350
      %1352 = vrot.lane.b32.xlu0 %v841, 43
      %v1353 = vpop.permute.xlu0 %1352
      %1354 = vrot.lane.b32.xlu0 %v844, 43
      %v1355 = vpop.permute.xlu0 %1354
      %1356 = vrot.lane.b32.xlu0 %v847, 43
      %v1357 = vpop.permute.xlu0 %1356
      %1358 = vrot.lane.b32.xlu0 %v850, 43
      %v1359 = vpop.permute.xlu0 %1358
      %1360 = vrot.lane.b32.xlu0 %v853, 43
      %v1361 = vpop.permute.xlu0 %1360
      %1362 = vrot.lane.b32.xlu0 %v856, 43
      %v1363 = vpop.permute.xlu0 %1362
      %1364 = vrot.lane.b32.xlu0 %v859, 43
      %v1365 = vpop.permute.xlu0 %1364
      %1366 = vrot.lane.b32.xlu0 %v862, 43
      %v1367 = vpop.permute.xlu0 %1366
      %1368 = vrot.lane.b32.xlu0 %v865, 43
      %v1369 = vpop.permute.xlu0 %1368
      %1370 = vrot.lane.b32.xlu0 %v868, 43
      %v1371 = vpop.permute.xlu0 %1370
      %1372 = vrot.lane.b32.xlu0 %v871, 43
      %v1373 = vpop.permute.xlu0 %1372
      %1374 = vrot.lane.b32.xlu0 %v874, 43
      %v1375 = vpop.permute.xlu0 %1374
      %1376 = vrot.lane.b32.xlu0 %v877, 43
      %v1377 = vpop.permute.xlu0 %1376
      %1378 = vrot.lane.b32.xlu0 %v880, 43
      %v1379 = vpop.permute.xlu0 %1378
      %1380 = vrot.lane.b32.xlu0 %v883, 43
      %v1381 = vpop.permute.xlu0 %1380
      %1382 = vrot.lane.b32.xlu0 %v886, 43
      %v1383 = vpop.permute.xlu0 %1382
      %1384 = vrot.lane.b32.xlu0 %v889, 43
      %v1385 = vpop.permute.xlu0 %1384
      %1386 = vrot.lane.b32.xlu0 %v892, 43
      %v1387 = vpop.permute.xlu0 %1386
      %1388 = vrot.lane.b32.xlu0 %v895, 43
      %v1389 = vpop.permute.xlu0 %1388
      %1390 = vrot.lane.b32.xlu0 %v898, 43
      %v1391 = vpop.permute.xlu0 %1390
      %1392 = vrot.lane.b32.xlu0 %v901, 43
      %v1393 = vpop.permute.xlu0 %1392
      %1394 = vrot.lane.b32.xlu0 %v904, 43
      %v1395 = vpop.permute.xlu0 %1394
      %1396 = vrot.lane.b32.xlu0 %v907, 43
      %v1397 = vpop.permute.xlu0 %1396
      %1398 = vrot.lane.b32.xlu0 %v910, 43
      %v1399 = vpop.permute.xlu0 %1398
      %1400 = vrot.lane.b32.xlu0 %v913, 43
      %v1401 = vpop.permute.xlu0 %1400
      %1402 = vrot.lane.b32.xlu0 %v916, 43
      %v1403 = vpop.permute.xlu0 %1402
      %1404 = vrot.lane.b32.xlu0 %v919, 43
      %v1405 = vpop.permute.xlu0 %1404
      %1406 = vrot.lane.b32.xlu0 %v922, 43
      %v1407 = vpop.permute.xlu0 %1406
      %1408 = vrot.lane.b32.xlu0 %v925, 43
      %v1409 = vpop.permute.xlu0 %1408
      %1410 = vrot.lane.b32.xlu0 %v928, 43
      %v1411 = vpop.permute.xlu0 %1410
      %1412 = vrot.lane.b32.xlu0 %v931, 43
      %v1413 = vpop.permute.xlu0 %1412
      %1414 = vrot.lane.b32.xlu0 %v934, 43
      %v1415 = vpop.permute.xlu0 %1414
      %1416 = vrot.lane.b32.xlu0 %v937, 43
      %v1417 = vpop.permute.xlu0 %1416
      %1418 = vrot.lane.b32.xlu0 %v940, 43
      %v1419 = vpop.permute.xlu0 %1418
      %1420 = vrot.lane.b32.xlu0 %v943, 43
      %v1421 = vpop.permute.xlu0 %1420
      %1422 = vrot.lane.b32.xlu0 %v946, 43
      %v1423 = vpop.permute.xlu0 %1422
      %1424 = vrot.lane.b32.xlu0 %v949, 43
      %v1425 = vpop.permute.xlu0 %1424
      %1426 = vrot.lane.b32.xlu0 %v952, 43
      %v1427 = vpop.permute.xlu0 %1426
      %1428 = vrot.lane.b32.xlu0 %v1201, 43
      %v1429 = vpop.permute.xlu0 %1428
      %1430 = vrot.lane.b32.xlu0 %v1261, 43
      %v1431 = vpop.permute.xlu0 %1430
      %1432 = vrot.lane.b32.xlu0 %v1262, 43
      %v1433 = vpop.permute.xlu0 %1432
      %1434 = vrot.lane.b32.xlu0 %v1263, 43
      %v1435 = vpop.permute.xlu0 %1434
      %1436 = vrot.lane.b32.xlu0 %v1264, 43
      %v1437 = vpop.permute.xlu0 %1436
      %1438 = vrot.lane.b32.xlu0 %v1211, 43
      %v1439 = vpop.permute.xlu0 %1438
      %1440 = vrot.lane.b32.xlu0 %v1265, 43
      %v1441 = vpop.permute.xlu0 %1440
      %1442 = vrot.lane.b32.xlu0 %v1266, 43
      %v1443 = vpop.permute.xlu0 %1442
      %1444 = vrot.lane.b32.xlu0 %v1267, 43
      %v1445 = vpop.permute.xlu0 %1444
      %1446 = vrot.lane.b32.xlu0 %v1268, 43
      %v1447 = vpop.permute.xlu0 %1446
      %1448 = vrot.lane.b32.xlu0 %v1221, 43
      %v1449 = vpop.permute.xlu0 %1448
      %1450 = vrot.lane.b32.xlu0 %v1269, 43
      %v1451 = vpop.permute.xlu0 %1450
      %1452 = vrot.lane.b32.xlu0 %v1270, 43
      %v1453 = vpop.permute.xlu0 %1452
      %1454 = vrot.lane.b32.xlu0 %v1271, 43
      %v1455 = vpop.permute.xlu0 %1454
      %1456 = vrot.lane.b32.xlu0 %v1272, 43
      %v1457 = vpop.permute.xlu0 %1456
      %1458 = vrot.lane.b32.xlu0 %v1231, 43
      %v1459 = vpop.permute.xlu0 %1458
      %1460 = vrot.lane.b32.xlu0 %v1273, 43
      %v1461 = vpop.permute.xlu0 %1460
      %1462 = vrot.lane.b32.xlu0 %v1274, 43
      %v1463 = vpop.permute.xlu0 %1462
      %1464 = vrot.lane.b32.xlu0 %v1275, 43
      %v1465 = vpop.permute.xlu0 %1464
      %1466 = vrot.lane.b32.xlu0 %v1276, 43
      %v1467 = vpop.permute.xlu0 %1466
      %1468 = vrot.lane.b32.xlu0 %v1241, 43
      %v1469 = vpop.permute.xlu0 %1468
      %1470 = vrot.lane.b32.xlu0 %v1277, 43
      %v1471 = vpop.permute.xlu0 %1470
      %1472 = vrot.lane.b32.xlu0 %v1278, 43
      %v1473 = vpop.permute.xlu0 %1472
      %1474 = vrot.lane.b32.xlu0 %v1279, 43
      %v1475 = vpop.permute.xlu0 %1474
      %1476 = vrot.lane.b32.xlu0 %v1280, 43
      %v1477 = vpop.permute.xlu0 %1476
      %1478 = vrot.lane.b32.xlu0 %v1251, 43
      %v1479 = vpop.permute.xlu0 %1478
      %1480 = vrot.lane.b32.xlu0 %v1281, 43
      %v1481 = vpop.permute.xlu0 %1480
      %1482 = vrot.lane.b32.xlu0 %v1282, 43
      %v1483 = vpop.permute.xlu0 %1482
      %1484 = vrot.lane.b32.xlu0 %v1283, 43
      %v1485 = vpop.permute.xlu0 %1484
      %1486 = vrot.lane.b32.xlu0 %v1284, 43
      %v1487 = vpop.permute.xlu0 %1486
      %vm1488 = vcmask 351232
      %v1489 = vsel %vm1488, %v1349, %v1351
      %v1490 = vsel %vm1488, %v1351, %v1353
      %v1491 = vsel %vm1488, %v1353, %v1355
      %v1492 = vsel %vm1488, %v1355, %v1357
      %v1493 = vsel %vm1488, %v1359, %v1361
      %v1494 = vsel %vm1488, %v1361, %v1363
      %v1495 = vsel %vm1488, %v1363, %v1365
      %v1496 = vsel %vm1488, %v1365, %v1367
      %v1497 = vsel %vm1488, %v1369, %v1371
      %v1498 = vsel %vm1488, %v1371, %v1373
      %v1499 = vsel %vm1488, %v1373, %v1375
      %v1500 = vsel %vm1488, %v1375, %v1377
      %v1501 = vsel %vm1488, %v1379, %v1381
      %v1502 = vsel %vm1488, %v1381, %v1383
      %v1503 = vsel %vm1488, %v1383, %v1385
      %v1504 = vsel %vm1488, %v1385, %v1387
      %v1505 = vsel %vm1488, %v1389, %v1391
      %v1506 = vsel %vm1488, %v1391, %v1393
      %v1507 = vsel %vm1488, %v1393, %v1395
      %v1508 = vsel %vm1488, %v1395, %v1397
      %v1509 = vsel %vm1488, %v1399, %v1401
      %v1510 = vsel %vm1488, %v1401, %v1403
      %v1511 = vsel %vm1488, %v1403, %v1405
      %v1512 = vsel %vm1488, %v1405, %v1407
      %v1513 = vsel %vm1488, %v1409, %v1411
      %v1514 = vsel %vm1488, %v1411, %v1413
      %v1515 = vsel %vm1488, %v1413, %v1415
      %v1516 = vsel %vm1488, %v1415, %v1417
      %v1517 = vsel %vm1488, %v1419, %v1421
      %v1518 = vsel %vm1488, %v1421, %v1423
      %v1519 = vsel %vm1488, %v1423, %v1425
      %v1520 = vsel %vm1488, %v1425, %v1427
      %v1521 = vsel %vm1488, %v1429, %v1431
      %v1522 = vsel %vm1488, %v1431, %v1433
      %v1523 = vsel %vm1488, %v1433, %v1435
      %v1524 = vsel %vm1488, %v1435, %v1437
      %v1525 = vsel %vm1488, %v1439, %v1441
      %v1526 = vsel %vm1488, %v1441, %v1443
      %v1527 = vsel %vm1488, %v1443, %v1445
      %v1528 = vsel %vm1488, %v1445, %v1447
      %v1529 = vsel %vm1488, %v1449, %v1451
      %v1530 = vsel %vm1488, %v1451, %v1453
      %v1531 = vsel %vm1488, %v1453, %v1455
      %v1532 = vsel %vm1488, %v1455, %v1457
      %v1533 = vsel %vm1488, %v1459, %v1461
      %v1534 = vsel %vm1488, %v1461, %v1463
      %v1535 = vsel %vm1488, %v1463, %v1465
      %v1536 = vsel %vm1488, %v1465, %v1467
      %v1537 = vsel %vm1488, %v1469, %v1471
      %v1538 = vsel %vm1488, %v1471, %v1473
      %v1539 = vsel %vm1488, %v1473, %v1475
      %v1540 = vsel %vm1488, %v1475, %v1477
      %v1541 = vsel %vm1488, %v1479, %v1481
      %v1542 = vsel %vm1488, %v1481, %v1483
      %v1543 = vsel %vm1488, %v1483, %v1485
      %v1544 = vsel %vm1488, %v1485, %v1487
      %vm1597 = vcmask 719872
      %v1599 = vsel %vm1597, %v1306, 0
      %v1602 = vsel %vm832, %v1541, 0
      %v1605 = vsel %vm832, %v1542, 0
      %v1608 = vsel %vm832, %v1543, 0
      %v1611 = vsel %vm832, %v1544, 0
      %1613 = vmatpush.bf16.msra.mxu0 %v1517
      %1614 = vmatpush.bf16.msra.mxu0 %v1513
      %1615 = vmatpush.bf16.msra.mxu0 %v1509
      %1616 = vmatpush.bf16.msra.mxu0 %v1505
      %1617 = vmatpush.bf16.msra.mxu0 %v1501
      %1618 = vmatpush.bf16.msra.mxu0 %v1497
      %1619 = vmatpush.bf16.msra.mxu0 %v1493
      %1620 = vmatpush.bf16.msra.mxu0 %v1489
      %1621 = vmatmul.bf16.gmra.mxu0 %v1305
      %v1622 = vpop.f32.mrf.mxu0
      %v1623 = vadd.f32 %v1292, %v1622
      %v1624 = vpop.f32.mrf.mxu0
      %v1625 = vadd.f32 %v1297, %v1624
      %1626 = vdwg.mxu0
      %1627 = vmatpush.bf16.msra.mxu0 0
      %1628 = vmatpush.bf16.msra.mxu0 0
      %1629 = vmatpush.bf16.msra.mxu0 %v1602
      %1630 = vmatpush.bf16.msra.mxu0 %v1537
      %1631 = vmatpush.bf16.msra.mxu0 %v1533
      %1632 = vmatpush.bf16.msra.mxu0 %v1529
      %1633 = vmatpush.bf16.msra.mxu0 %v1525
      %1634 = vmatpush.bf16.msra.mxu0 %v1521
      %1635 = vmatmul.bf16.gmra.mxu0 %v1599
      %v1636 = vpop.f32.mrf.mxu0
      %v1637 = vadd.f32 %v1623, %v1636
      %v1638 = vpop.f32.mrf.mxu0
      %v1639 = vadd.f32 %v1625, %v1638
      %1640 = vdwg.mxu0
      %1641 = vmatpush.bf16.msra.mxu0 %v1518
      %1642 = vmatpush.bf16.msra.mxu0 %v1514
      %1643 = vmatpush.bf16.msra.mxu0 %v1510
      %1644 = vmatpush.bf16.msra.mxu0 %v1506
      %1645 = vmatpush.bf16.msra.mxu0 %v1502
      %1646 = vmatpush.bf16.msra.mxu0 %v1498
      %1647 = vmatpush.bf16.msra.mxu0 %v1494
      %1648 = vmatpush.bf16.msra.mxu0 %v1490
      %1649 = vmatmul.bf16.gmra.mxu0 %v1305
      %v1650 = vpop.f32.mrf.mxu0
      %v1651 = vadd.f32 %v1292, %v1650
      %v1652 = vpop.f32.mrf.mxu0
      %v1653 = vadd.f32 %v1297, %v1652
      %1654 = vdwg.mxu0
      %1655 = vmatpush.bf16.msra.mxu0 0
      %1656 = vmatpush.bf16.msra.mxu0 0
      %1657 = vmatpush.bf16.msra.mxu0 %v1605
      %1658 = vmatpush.bf16.msra.mxu0 %v1538
      %1659 = vmatpush.bf16.msra.mxu0 %v1534
      %1660 = vmatpush.bf16.msra.mxu0 %v1530
      %1661 = vmatpush.bf16.msra.mxu0 %v1526
      %1662 = vmatpush.bf16.msra.mxu0 %v1522
      %1663 = vmatmul.bf16.gmra.mxu0 %v1599
      %v1664 = vpop.f32.mrf.mxu0
      %v1665 = vadd.f32 %v1651, %v1664
      %v1666 = vpop.f32.mrf.mxu0
      %v1667 = vadd.f32 %v1653, %v1666
      %1668 = vdwg.mxu0
      %1669 = vmatpush.bf16.msra.mxu0 %v1519
      %1670 = vmatpush.bf16.msra.mxu0 %v1515
      %1671 = vmatpush.bf16.msra.mxu0 %v1511
      %1672 = vmatpush.bf16.msra.mxu0 %v1507
      %1673 = vmatpush.bf16.msra.mxu0 %v1503
      %1674 = vmatpush.bf16.msra.mxu0 %v1499
      %1675 = vmatpush.bf16.msra.mxu0 %v1495
      %1676 = vmatpush.bf16.msra.mxu0 %v1491
      %1677 = vmatmul.bf16.gmra.mxu0 %v1305
      %v1678 = vpop.f32.mrf.mxu0
      %v1679 = vadd.f32 %v1292, %v1678
      %v1680 = vpop.f32.mrf.mxu0
      %v1681 = vadd.f32 %v1297, %v1680
      %1682 = vdwg.mxu0
      %1683 = vmatpush.bf16.msra.mxu0 0
      %1684 = vmatpush.bf16.msra.mxu0 0
      %1685 = vmatpush.bf16.msra.mxu0 %v1608
      %1686 = vmatpush.bf16.msra.mxu0 %v1539
      %1687 = vmatpush.bf16.msra.mxu0 %v1535
      %1688 = vmatpush.bf16.msra.mxu0 %v1531
      %1689 = vmatpush.bf16.msra.mxu0 %v1527
      %1690 = vmatpush.bf16.msra.mxu0 %v1523
      %1691 = vmatmul.bf16.gmra.mxu0 %v1599
      %v1692 = vpop.f32.mrf.mxu0
      %v1693 = vadd.f32 %v1679, %v1692
      %v1694 = vpop.f32.mrf.mxu0
      %v1695 = vadd.f32 %v1681, %v1694
      %1696 = vdwg.mxu0
      %1697 = vmatpush.bf16.msra.mxu0 %v1520
      %1698 = vmatpush.bf16.msra.mxu0 %v1516
      %1699 = vmatpush.bf16.msra.mxu0 %v1512
      %1700 = vmatpush.bf16.msra.mxu0 %v1508
      %1701 = vmatpush.bf16.msra.mxu0 %v1504
      %1702 = vmatpush.bf16.msra.mxu0 %v1500
      %1703 = vmatpush.bf16.msra.mxu0 %v1496
      %1704 = vmatpush.bf16.msra.mxu0 %v1492
      %1705 = vmatmul.bf16.gmra.mxu0 %v1305
      %v1706 = vpop.f32.mrf.mxu0
      %v1707 = vadd.f32 %v1292, %v1706
      %v1708 = vpop.f32.mrf.mxu0
      %v1709 = vadd.f32 %v1297, %v1708
      %1710 = vdwg.mxu0
      %1711 = vmatpush.bf16.msra.mxu0 0
      %1712 = vmatpush.bf16.msra.mxu0 0
      %1713 = vmatpush.bf16.msra.mxu0 %v1611
      %1714 = vmatpush.bf16.msra.mxu0 %v1540
      %1715 = vmatpush.bf16.msra.mxu0 %v1536
      %1716 = vmatpush.bf16.msra.mxu0 %v1532
      %1717 = vmatpush.bf16.msra.mxu0 %v1528
      %1718 = vmatpush.bf16.msra.mxu0 %v1524
      %1719 = vmatmul.bf16.gmra.mxu0 %v1599
      %v1720 = vpop.f32.mrf.mxu0
      %v1721 = vadd.f32 %v1707, %v1720
      %v1722 = vpop.f32.mrf.mxu0
      %v1723 = vadd.f32 %v1709, %v1722
      %1724 = vdwg.mxu0
      %v1725 = vld [vmem:[%s419] sm:$0xff]
      %v1726 = vld [vmem:[%s419 + $0x8] sm:$0xff]
      %v1727 = vld [vmem:[%s424] sm:$0xff]
      %v1728 = vld [vmem:[%s424 + $0x8] sm:$0xff]
      %v1729 = vsel %vm565, 1, 0
      %v1730 = vperm.slane %v1729, 0
      %v1731 = vperm.slane %v1729, 1
      %vm1732 = vcmp.eq.s32.totalorder %v1730, 1
      %vm1733 = vcmp.eq.s32.totalorder %v1731, 1
      %v1734 = vsel %vm1732, %v1637, 0.0
      %v1735 = vsel %vm1733, %v1665, 0.0
      %v1736 = vsel %vm1732, %v1639, 0.0
      %v1737 = vsel %vm1733, %v1667, 0.0
      %v1738 = vadd.f32 %v1734, %v1735
      %1739 = vadd.xlane.f32.xlu0 %v1738
      %v1740 = vpop.xlane.xlu0 %1739
      %v1741 = vadd.f32 %v1736, %v1737
      %1742 = vadd.xlane.f32.xlu0 %v1741
      %v1743 = vpop.xlane.xlu0 %1742
      %v1744 = vrot.slane %v1740, 1
      %v1745 = vrot.slane %v1743, 1
      %v1746 = vlaneseq
      %v1747 = vshrl.u32 %v1746, 7
      %vm1748 = vcmp.lt.s32.totalorder %v1747, 7
      %v1749 = vsel %vm1748, %v1744, %v1745
      %v1750 = vsel %vm1748, %v1745, %v1744
      %v1751 = vrot.slane %v1740, 7
      %v1752 = vrot.slane %v1743, 7
      %vm1753 = vcmp.lt.s32.totalorder %v1747, 1
      %v1754 = vsel %vm1753, %v1751, %v1752
      %v1755 = vsel %vm1753, %v1752, %v1751
      %v1756 = vadd.s32 %v1747, 8
      %vm1757 = vcmp.lt.s32.totalorder %v1747, 0
      %v1758 = vsub.s32 0, %v1747
      %v1759 = vsel %vm1757, %v1758, %v1747
      %v1760 = vshrl.u32 %v1759, 1
      %v1761 = vand.u32 %v1759, 1
      %v1762 = vsub.s32 0, %v1761
      %v1763 = vsel %vm1757, %v1762, %v1761
      %vm1764 = vcmp.lt.s32.totalorder %v1756, 0
      %v1765 = vsub.s32 0, %v1756
      %v1766 = vsel %vm1764, %v1765, %v1756
      %v1767 = vshrl.u32 %v1766, 1
      %v1768 = vand.u32 %v1766, 1
      %v1769 = vsub.s32 0, %v1768
      %v1770 = vsel %vm1764, %v1769, %v1768
      %vm1771 = vcmp.ne.s32.totalorder %v1763, 0
      %vm1772 = vcmp.ne.s32.totalorder %v1770, 0
      %vm1773 = vcmp.lt.s32.totalorder %v1763, 0
      %vm1774 = vcmp.lt.s32.totalorder %v1770, 0
      %vm1775 = vmand %vm1773, %vm1771
      %vm1776 = vmand %vm1774, %vm1772
      %v1777 = vadd.s32 %v1763, 2
      %v1778 = vadd.s32 %v1770, 2
      %v1779 = vsel %vm1775, %v1777, %v1763
      %v1780 = vsel %vm1776, %v1778, %v1770
      %vm1781 = vcmp.eq.s32.totalorder %v1779, 0
      %vm1782 = vcmp.eq.s32.totalorder %v1780, 0
      %v1783 = vsel %vm1781, %v1749, %v1755
      %v1784 = vsel %vm1782, %v1750, %v1754
      %v1785 = vadd.f32 %v1740, %v1783
      %v1786 = vadd.f32 %v1743, %v1784
      %v1787 = vmul.f32 %v1785, 0.0078125
      %v1788 = vmul.f32 %v1786, 0.0078125
      %1790 = vset.pattern.permute.xlu0 0
      %1791 = vperm.xlu0 %1790, %v1787
      %v1792 = vpop.permute.xlu0 %1791
      %1795 = vset.pattern.permute.xlu0 0
      %1796 = vperm.xlu0 %1795, %v1788
      %v1797 = vpop.permute.xlu0 %1796
      %v1799 = vsub.f32 %v1637, %v1792
      %v1800 = vsub.f32 %v1665, %v1792
      %v1801 = vsub.f32 %v1639, %v1797
      %v1802 = vsub.f32 %v1667, %v1797
      %v1803 = vsel %vm1732, %v1799, 0.0
      %v1804 = vsel %vm1733, %v1800, 0.0
      %v1805 = vsel %vm1732, %v1801, 0.0
      %v1806 = vsel %vm1733, %v1802, 0.0
      %v1807 = vmul.f32 %v1803, %v1803
      %v1808 = vmul.f32 %v1804, %v1804
      %v1809 = vmul.f32 %v1805, %v1805
      %v1810 = vmul.f32 %v1806, %v1806
      %v1811 = vadd.f32 %v1807, %v1808
      %1812 = vadd.xlane.f32.xlu0 %v1811
      %v1813 = vpop.xlane.xlu0 %1812
      %v1814 = vadd.f32 %v1809, %v1810
      %1815 = vadd.xlane.f32.xlu0 %v1814
      %v1816 = vpop.xlane.xlu0 %1815
      %v1817 = vrot.slane %v1813, 1
      %v1818 = vrot.slane %v1816, 1
      %v1819 = vsel %vm1748, %v1817, %v1818
      %v1820 = vsel %vm1748, %v1818, %v1817
      %v1821 = vrot.slane %v1813, 7
      %v1822 = vrot.slane %v1816, 7
      %v1823 = vsel %vm1753, %v1821, %v1822
      %v1824 = vsel %vm1753, %v1822, %v1821
      %v1825 = vsel %vm1781, %v1819, %v1824
      %v1826 = vsel %vm1782, %v1820, %v1823
      %v1827 = vadd.f32 %v1813, %v1825
      %v1828 = vadd.f32 %v1816, %v1826
      %v1829 = vmul.f32 %v1827, 0.0078125
      %v1830 = vmul.f32 %v1828, 0.0078125
      %v1831 = vadd.f32 %v1829, 1e-05
      %v1832 = vadd.f32 %v1830, 1e-05
      %v1833 = vrsqrt.pop %v1831
      %v1834 = vmul.f32 %v1833, %v1831
      %v1835 = vmul.f32 %v1834, %v1833
      %v1836 = vmul.f32 0.5, %v1835
      %v1837 = vsub.f32 1.5, %v1836
      %v1838 = vmul.f32 %v1833, %v1837
      %vm1839 = vweird.f32 %v1831
      %vm1840 = vweird.f32 %v1833
      %vm1841 = vmor %vm1839, %vm1840
      %v1842 = vsel %vm1841, %v1833, %v1838
      %v1843 = vrsqrt.pop %v1832
      %v1844 = vmul.f32 %v1843, %v1832
      %v1845 = vmul.f32 %v1844, %v1843
      %v1846 = vmul.f32 0.5, %v1845
      %v1847 = vsub.f32 1.5, %v1846
      %v1848 = vmul.f32 %v1843, %v1847
      %vm1849 = vweird.f32 %v1832
      %vm1850 = vweird.f32 %v1843
      %vm1851 = vmor %vm1849, %vm1850
      %v1852 = vsel %vm1851, %v1843, %v1848
      %1854 = vset.pattern.permute.xlu0 0
      %1855 = vperm.xlu0 %1854, %v1842
      %v1856 = vpop.permute.xlu0 %1855
      %1859 = vset.pattern.permute.xlu0 0
      %1860 = vperm.xlu0 %1859, %v1852
      %v1861 = vpop.permute.xlu0 %1860
      %v1863 = vmul.f32 %v1799, %v1856
      %v1864 = vmul.f32 %v1800, %v1856
      %v1865 = vmul.f32 %v1801, %v1861
      %v1866 = vmul.f32 %v1802, %v1861
      %1868 = vset.pattern.permute.xlu0 0
      %1869 = vperm.xlu0 %1868, %v1725
      %v1870 = vpop.permute.xlu0 %1869
      %1873 = vset.pattern.permute.xlu0 0
      %1874 = vperm.xlu0 %1873, %v1726
      %v1875 = vpop.permute.xlu0 %1874
      %v1877 = vmul.f32 %v1863, %v1870
      %v1878 = vmul.f32 %v1864, %v1870
      %v1879 = vmul.f32 %v1865, %v1875
      %v1880 = vmul.f32 %v1866, %v1875
      %1882 = vset.pattern.permute.xlu0 0
      %1883 = vperm.xlu0 %1882, %v1727
      %v1884 = vpop.permute.xlu0 %1883
      %1887 = vset.pattern.permute.xlu0 0
      %1888 = vperm.xlu0 %1887, %v1728
      %v1889 = vpop.permute.xlu0 %1888
      %v1891 = vadd.f32 %v1877, %v1884
      %v1892 = vadd.f32 %v1878, %v1884
      %v1893 = vadd.f32 %v1879, %v1889
      %v1894 = vadd.f32 %v1880, %v1889
      %v1895 = vmax.f32 %v1891, 0.0
      %v1896 = vmax.f32 %v1892, 0.0
      %v1897 = vmax.f32 %v1893, 0.0
      %v1898 = vmax.f32 %v1894, 0.0
      %v1899 = vsel %vm1732, %v1895, 0.0
      %v1900 = vsel %vm1733, %v1896, 0.0
      %v1901 = vsel %vm1732, %v1897, 0.0
      %v1902 = vsel %vm1733, %v1898, 0.0
      %v1903 = vpack.c.bf16 %v1900, %v1899
      %v1904 = vpack.c.bf16 %v1902, %v1901
      %1905 = vst [vmem:[#allocation3 + $0x4] sm:$0xff] %v1903
      %1906 = vst [vmem:[#allocation3 + $0x1c] sm:$0xff] %v1904
      %v1907 = vrot.slane %v1729, 2
      %vm1908 = vcmp.ne.s32.totalorder %v1907, 0
      %v1909 = vsel %vm1908, 1, 0
      %v1910 = vperm.slane %v1909, 0
      %v1911 = vperm.slane %v1909, 1
      %vm1912 = vcmp.eq.s32.totalorder %v1910, 1
      %vm1913 = vcmp.eq.s32.totalorder %v1911, 1
      %v1914 = vsel %vm1912, %v1693, 0.0
      %v1915 = vsel %vm1913, %v1721, 0.0
      %v1916 = vsel %vm1912, %v1695, 0.0
      %v1917 = vsel %vm1913, %v1723, 0.0
      %v1918 = vadd.f32 %v1914, %v1915
      %1919 = vadd.xlane.f32.xlu0 %v1918
      %v1920 = vpop.xlane.xlu0 %1919
      %v1921 = vadd.f32 %v1916, %v1917
      %1922 = vadd.xlane.f32.xlu0 %v1921
      %v1923 = vpop.xlane.xlu0 %1922
      %v1924 = vrot.slane %v1920, 1
      %v1925 = vrot.slane %v1923, 1
      %v1926 = vsel %vm1748, %v1924, %v1925
      %v1927 = vsel %vm1748, %v1925, %v1924
      %v1928 = vrot.slane %v1920, 7
      %v1929 = vrot.slane %v1923, 7
      %v1930 = vsel %vm1753, %v1928, %v1929
      %v1931 = vsel %vm1753, %v1929, %v1928
      %v1932 = vsel %vm1781, %v1926, %v1931
      %v1933 = vsel %vm1782, %v1927, %v1930
      %v1934 = vadd.f32 %v1920, %v1932
      %v1935 = vadd.f32 %v1923, %v1933
      %v1936 = vmul.f32 %v1934, 0.0078125
      %v1937 = vmul.f32 %v1935, 0.0078125
      %1939 = vset.pattern.permute.xlu0 0
      %1940 = vperm.xlu0 %1939, %v1936
      %v1941 = vpop.permute.xlu0 %1940
      %1944 = vset.pattern.permute.xlu0 0
      %1945 = vperm.xlu0 %1944, %v1937
      %v1946 = vpop.permute.xlu0 %1945
      %v1948 = vsub.f32 %v1693, %v1941
      %v1949 = vsub.f32 %v1721, %v1941
      %v1950 = vsub.f32 %v1695, %v1946
      %v1951 = vsub.f32 %v1723, %v1946
      %v1952 = vsel %vm1912, %v1948, 0.0
      %v1953 = vsel %vm1913, %v1949, 0.0
      %v1954 = vsel %vm1912, %v1950, 0.0
      %v1955 = vsel %vm1913, %v1951, 0.0
      %v1956 = vmul.f32 %v1952, %v1952
      %v1957 = vmul.f32 %v1953, %v1953
      %v1958 = vmul.f32 %v1954, %v1954
      %v1959 = vmul.f32 %v1955, %v1955
      %v1960 = vadd.f32 %v1956, %v1957
      %1961 = vadd.xlane.f32.xlu0 %v1960
      %v1962 = vpop.xlane.xlu0 %1961
      %v1963 = vadd.f32 %v1958, %v1959
      %1964 = vadd.xlane.f32.xlu0 %v1963
      %v1965 = vpop.xlane.xlu0 %1964
      %v1966 = vrot.slane %v1962, 1
      %v1967 = vrot.slane %v1965, 1
      %v1968 = vsel %vm1748, %v1966, %v1967
      %v1969 = vsel %vm1748, %v1967, %v1966
      %v1970 = vrot.slane %v1962, 7
      %v1971 = vrot.slane %v1965, 7
      %v1972 = vsel %vm1753, %v1970, %v1971
      %v1973 = vsel %vm1753, %v1971, %v1970
      %v1974 = vsel %vm1781, %v1968, %v1973
      %v1975 = vsel %vm1782, %v1969, %v1972
      %v1976 = vadd.f32 %v1962, %v1974
      %v1977 = vadd.f32 %v1965, %v1975
      %v1978 = vmul.f32 %v1976, 0.0078125
      %v1979 = vmul.f32 %v1977, 0.0078125
      %v1980 = vadd.f32 %v1978, 1e-05
      %v1981 = vadd.f32 %v1979, 1e-05
      %v1982 = vrsqrt.pop %v1980
      %v1983 = vmul.f32 %v1982, %v1980
      %v1984 = vmul.f32 %v1983, %v1982
      %v1985 = vmul.f32 0.5, %v1984
      %v1986 = vsub.f32 1.5, %v1985
      %v1987 = vmul.f32 %v1982, %v1986
      %vm1988 = vweird.f32 %v1980
      %vm1989 = vweird.f32 %v1982
      %vm1990 = vmor %vm1988, %vm1989
      %v1991 = vsel %vm1990, %v1982, %v1987
      %v1992 = vrsqrt.pop %v1981
      %v1993 = vmul.f32 %v1992, %v1981
      %v1994 = vmul.f32 %v1993, %v1992
      %v1995 = vmul.f32 0.5, %v1994
      %v1996 = vsub.f32 1.5, %v1995
      %v1997 = vmul.f32 %v1992, %v1996
      %vm1998 = vweird.f32 %v1981
      %vm1999 = vweird.f32 %v1992
      %vm2000 = vmor %vm1998, %vm1999
      %v2001 = vsel %vm2000, %v1992, %v1997
      %2003 = vset.pattern.permute.xlu0 0
      %2004 = vperm.xlu0 %2003, %v1991
      %v2005 = vpop.permute.xlu0 %2004
      %2008 = vset.pattern.permute.xlu0 0
      %2009 = vperm.xlu0 %2008, %v2001
      %v2010 = vpop.permute.xlu0 %2009
      %v2012 = vmul.f32 %v1948, %v2005
      %v2013 = vmul.f32 %v1949, %v2005
      %v2014 = vmul.f32 %v1950, %v2010
      %v2015 = vmul.f32 %v1951, %v2010
      %v2016 = vmul.f32 %v2012, %v1870
      %v2017 = vmul.f32 %v2013, %v1870
      %v2018 = vmul.f32 %v2014, %v1875
      %v2019 = vmul.f32 %v2015, %v1875
      %v2020 = vadd.f32 %v2016, %v1884
      %v2021 = vadd.f32 %v2017, %v1884
      %v2022 = vadd.f32 %v2018, %v1889
      %v2023 = vadd.f32 %v2019, %v1889
      %v2024 = vmax.f32 %v2020, 0.0
      %v2025 = vmax.f32 %v2021, 0.0
      %v2026 = vmax.f32 %v2022, 0.0
      %v2027 = vmax.f32 %v2023, 0.0
      %v2028 = vsel %vm1912, %v2024, 0.0
      %v2029 = vsel %vm1913, %v2025, 0.0
      %v2030 = vsel %vm1912, %v2026, 0.0
      %v2031 = vsel %vm1913, %v2027, 0.0
      %v2032 = vpack.c.bf16 %v2029, %v2028
      %v2033 = vpack.c.bf16 %v2031, %v2030
      %2034 = vst [vmem:[#allocation3 + $0xc] sm:$0xff] %v2032
      %2035 = vst [vmem:[#allocation3 + $0x24] sm:$0xff] %v2033
      %v2036 = vld [vmem:[#allocation3] sm:$0xff]
      %v2037 = vld [vmem:[#allocation3 + $0x8] sm:$0xff]
      %v2038 = vld [vmem:[#allocation3 + $0x10] sm:$0xf]
      %v2039 = vld [vmem:[#allocation3 + $0x18] sm:$0xff]
      %v2040 = vld [vmem:[#allocation3 + $0x20] sm:$0xff]
      %v2041 = vld [vmem:[#allocation3 + $0x28] sm:$0xf]
      %v2042 = vld [vmem:[#allocation3 + $0x4] sm:$0xff]
      %v2043 = vld [vmem:[#allocation3 + $0xc] sm:$0xff]
      %v2044 = vld [vmem:[#allocation3 + $0x1c] sm:$0xff]
      %v2045 = vld [vmem:[#allocation3 + $0x24] sm:$0xff]
      %v2046 = vld [vmem:[#allocation3 + $0x4] sm:$0xff]
      %v2047 = vld [vmem:[#allocation3 + $0xc] sm:$0xff]
      %v2048 = vld [vmem:[#allocation3 + $0x14] sm:$0xf]
      %v2049 = vld [vmem:[#allocation3 + $0x1c] sm:$0xff]
      %v2050 = vld [vmem:[#allocation3 + $0x24] sm:$0xff]
      %v2051 = vld [vmem:[#allocation3 + $0x2c] sm:$0xf]
      %v2058 = vunpack.c.l.b16 %v2036
      %v2059 = vunpack.c.h.b16 %v2036
      %v2060 = vunpack.c.l.b16 %v2037
      %v2061 = vunpack.c.h.b16 %v2037
      %v2062 = vunpack.c.l.b16 %v2038
      %v2063 = vunpack.c.l.b16 %v2039
      %v2064 = vunpack.c.h.b16 %v2039
      %v2065 = vunpack.c.l.b16 %v2040
      %v2066 = vunpack.c.h.b16 %v2040
      %v2067 = vunpack.c.l.b16 %v2041
      %v2068 = vpack.c.b16 %v2063, %v2058
      %v2069 = vpack.c.b16 %v2064, %v2059
      %v2070 = vpack.c.b16 %v2065, %v2060
      %v2071 = vpack.c.b16 %v2066, %v2061
      %v2072 = vpack.c.b16 %v2067, %v2062
      %2073 = vrot.lane.b32.xlu0 %v2068, 127
      %v2074 = vpop.permute.xlu0 %2073
      %2075 = vrot.lane.b32.xlu0 %v2069, 127
      %v2076 = vpop.permute.xlu0 %2075
      %2077 = vrot.lane.b32.xlu0 %v2070, 127
      %v2078 = vpop.permute.xlu0 %2077
      %2079 = vrot.lane.b32.xlu0 %v2071, 127
      %v2080 = vpop.permute.xlu0 %2079
      %2081 = vrot.lane.b32.xlu0 %v2072, 127
      %v2082 = vpop.permute.xlu0 %2081
      %v2083 = vsel %vm597, %v2074, %v2076
      %v2084 = vsel %vm597, %v2076, %v2078
      %v2085 = vsel %vm597, %v2078, %v2080
      %v2086 = vsel %vm597, %v2080, %v2082
      %2087 = vrot.lane.b32.xlu0 %v2068, 126
      %v2088 = vpop.permute.xlu0 %2087
      %2089 = vrot.lane.b32.xlu0 %v2069, 126
      %v2090 = vpop.permute.xlu0 %2089
      %2091 = vrot.lane.b32.xlu0 %v2070, 126
      %v2092 = vpop.permute.xlu0 %2091
      %2093 = vrot.lane.b32.xlu0 %v2071, 126
      %v2094 = vpop.permute.xlu0 %2093
      %2095 = vrot.lane.b32.xlu0 %v2072, 126
      %v2096 = vpop.permute.xlu0 %2095
      %v2097 = vsel %vm612, %v2088, %v2090
      %v2098 = vsel %vm612, %v2090, %v2092
      %v2099 = vsel %vm612, %v2092, %v2094
      %v2100 = vsel %vm612, %v2094, %v2096
      %2101 = vrot.lane.b32.xlu0 %v2068, 122
      %v2102 = vpop.permute.xlu0 %2101
      %2103 = vrot.lane.b32.xlu0 %v2069, 122
      %v2104 = vpop.permute.xlu0 %2103
      %2105 = vrot.lane.b32.xlu0 %v2070, 122
      %v2106 = vpop.permute.xlu0 %2105
      %2107 = vrot.lane.b32.xlu0 %v2071, 122
      %v2108 = vpop.permute.xlu0 %2107
      %2109 = vrot.lane.b32.xlu0 %v2072, 122
      %v2110 = vpop.permute.xlu0 %2109
      %v2111 = vsel %vm627, %v2102, %v2104
      %v2112 = vsel %vm627, %v2104, %v2106
      %v2113 = vsel %vm627, %v2106, %v2108
      %v2114 = vsel %vm627, %v2108, %v2110
      %2115 = vrot.lane.b32.xlu0 %v2068, 121
      %v2116 = vpop.permute.xlu0 %2115
      %2117 = vrot.lane.b32.xlu0 %v2069, 121
      %v2118 = vpop.permute.xlu0 %2117
      %2119 = vrot.lane.b32.xlu0 %v2070, 121
      %v2120 = vpop.permute.xlu0 %2119
      %2121 = vrot.lane.b32.xlu0 %v2071, 121
      %v2122 = vpop.permute.xlu0 %2121
      %2123 = vrot.lane.b32.xlu0 %v2072, 121
      %v2124 = vpop.permute.xlu0 %2123
      %v2125 = vsel %vm642, %v2116, %v2118
      %v2126 = vsel %vm642, %v2118, %v2120
      %v2127 = vsel %vm642, %v2120, %v2122
      %v2128 = vsel %vm642, %v2122, %v2124
      %2129 = vrot.lane.b32.xlu0 %v2068, 120
      %v2130 = vpop.permute.xlu0 %2129
      %2131 = vrot.lane.b32.xlu0 %v2069, 120
      %v2132 = vpop.permute.xlu0 %2131
      %2133 = vrot.lane.b32.xlu0 %v2070, 120
      %v2134 = vpop.permute.xlu0 %2133
      %2135 = vrot.lane.b32.xlu0 %v2071, 120
      %v2136 = vpop.permute.xlu0 %2135
      %2137 = vrot.lane.b32.xlu0 %v2072, 120
      %v2138 = vpop.permute.xlu0 %2137
      %v2139 = vsel %vm657, %v2130, %v2132
      %v2140 = vsel %vm657, %v2132, %v2134
      %v2141 = vsel %vm657, %v2134, %v2136
      %v2142 = vsel %vm657, %v2136, %v2138
      %2143 = vrot.lane.b32.xlu0 %v2068, 116
      %v2144 = vpop.permute.xlu0 %2143
      %2145 = vrot.lane.b32.xlu0 %v2069, 116
      %v2146 = vpop.permute.xlu0 %2145
      %2147 = vrot.lane.b32.xlu0 %v2070, 116
      %v2148 = vpop.permute.xlu0 %2147
      %2149 = vrot.lane.b32.xlu0 %v2071, 116
      %v2150 = vpop.permute.xlu0 %2149
      %2151 = vrot.lane.b32.xlu0 %v2072, 116
      %v2152 = vpop.permute.xlu0 %2151
      %v2153 = vsel %vm672, %v2144, %v2146
      %v2154 = vsel %vm672, %v2146, %v2148
      %v2155 = vsel %vm672, %v2148, %v2150
      %v2156 = vsel %vm672, %v2150, %v2152
      %2157 = vrot.lane.b32.xlu0 %v2068, 115
      %v2158 = vpop.permute.xlu0 %2157
      %2159 = vrot.lane.b32.xlu0 %v2069, 115
      %v2160 = vpop.permute.xlu0 %2159
      %2161 = vrot.lane.b32.xlu0 %v2070, 115
      %v2162 = vpop.permute.xlu0 %2161
      %2163 = vrot.lane.b32.xlu0 %v2071, 115
      %v2164 = vpop.permute.xlu0 %2163
      %2165 = vrot.lane.b32.xlu0 %v2072, 115
      %v2166 = vpop.permute.xlu0 %2165
      %v2167 = vsel %vm687, %v2158, %v2160
      %v2168 = vsel %vm687, %v2160, %v2162
      %v2169 = vsel %vm687, %v2162, %v2164
      %v2170 = vsel %vm687, %v2164, %v2166
      %2171 = vrot.lane.b32.xlu0 %v2068, 114
      %v2172 = vpop.permute.xlu0 %2171
      %2173 = vrot.lane.b32.xlu0 %v2069, 114
      %v2174 = vpop.permute.xlu0 %2173
      %2175 = vrot.lane.b32.xlu0 %v2070, 114
      %v2176 = vpop.permute.xlu0 %2175
      %2177 = vrot.lane.b32.xlu0 %v2071, 114
      %v2178 = vpop.permute.xlu0 %2177
      %2179 = vrot.lane.b32.xlu0 %v2072, 114
      %v2180 = vpop.permute.xlu0 %2179
      %v2181 = vsel %vm702, %v2172, %v2174
      %v2182 = vsel %vm702, %v2174, %v2176
      %v2183 = vsel %vm702, %v2176, %v2178
      %v2184 = vsel %vm702, %v2178, %v2180
      %2185 = vrot.lane.b32.xlu0 %v2068, 92
      %v2186 = vpop.permute.xlu0 %2185
      %2187 = vrot.lane.b32.xlu0 %v2069, 92
      %v2188 = vpop.permute.xlu0 %2187
      %2189 = vrot.lane.b32.xlu0 %v2070, 92
      %v2190 = vpop.permute.xlu0 %2189
      %2191 = vrot.lane.b32.xlu0 %v2071, 92
      %v2192 = vpop.permute.xlu0 %2191
      %2193 = vrot.lane.b32.xlu0 %v2072, 92
      %v2194 = vpop.permute.xlu0 %2193
      %v2195 = vsel %vm717, %v2186, %v2188
      %v2196 = vsel %vm717, %v2188, %v2190
      %v2197 = vsel %vm717, %v2190, %v2192
      %v2198 = vsel %vm717, %v2192, %v2194
      %2199 = vrot.lane.b32.xlu0 %v2068, 91
      %v2200 = vpop.permute.xlu0 %2199
      %2201 = vrot.lane.b32.xlu0 %v2069, 91
      %v2202 = vpop.permute.xlu0 %2201
      %2203 = vrot.lane.b32.xlu0 %v2070, 91
      %v2204 = vpop.permute.xlu0 %2203
      %2205 = vrot.lane.b32.xlu0 %v2071, 91
      %v2206 = vpop.permute.xlu0 %2205
      %2207 = vrot.lane.b32.xlu0 %v2072, 91
      %v2208 = vpop.permute.xlu0 %2207
      %v2209 = vsel %vm732, %v2200, %v2202
      %v2210 = vsel %vm732, %v2202, %v2204
      %v2211 = vsel %vm732, %v2204, %v2206
      %v2212 = vsel %vm732, %v2206, %v2208
      %2213 = vrot.lane.b32.xlu0 %v2068, 90
      %v2214 = vpop.permute.xlu0 %2213
      %2215 = vrot.lane.b32.xlu0 %v2069, 90
      %v2216 = vpop.permute.xlu0 %2215
      %2217 = vrot.lane.b32.xlu0 %v2070, 90
      %v2218 = vpop.permute.xlu0 %2217
      %2219 = vrot.lane.b32.xlu0 %v2071, 90
      %v2220 = vpop.permute.xlu0 %2219
      %2221 = vrot.lane.b32.xlu0 %v2072, 90
      %v2222 = vpop.permute.xlu0 %2221
      %v2223 = vsel %vm747, %v2214, %v2216
      %v2224 = vsel %vm747, %v2216, %v2218
      %v2225 = vsel %vm747, %v2218, %v2220
      %v2226 = vsel %vm747, %v2220, %v2222
      %2227 = vrot.lane.b32.xlu0 %v2068, 86
      %v2228 = vpop.permute.xlu0 %2227
      %2229 = vrot.lane.b32.xlu0 %v2069, 86
      %v2230 = vpop.permute.xlu0 %2229
      %2231 = vrot.lane.b32.xlu0 %v2070, 86
      %v2232 = vpop.permute.xlu0 %2231
      %2233 = vrot.lane.b32.xlu0 %v2071, 86
      %v2234 = vpop.permute.xlu0 %2233
      %2235 = vrot.lane.b32.xlu0 %v2072, 86
      %v2236 = vpop.permute.xlu0 %2235
      %v2237 = vsel %vm762, %v2228, %v2230
      %v2238 = vsel %vm762, %v2230, %v2232
      %v2239 = vsel %vm762, %v2232, %v2234
      %v2240 = vsel %vm762, %v2234, %v2236
      %v2245 = vunpack.c.l.b16 %v2042
      %v2246 = vunpack.c.h.b16 %v2042
      %v2247 = vunpack.c.l.b16 %v2043
      %v2248 = vunpack.c.h.b16 %v2043
      %v2249 = vunpack.c.l.b16 %v2044
      %v2250 = vunpack.c.h.b16 %v2044
      %v2251 = vunpack.c.l.b16 %v2045
      %v2252 = vunpack.c.h.b16 %v2045
      %v2253 = vpack.c.b16 %v2249, %v2245
      %v2254 = vpack.c.b16 %v2250, %v2246
      %v2255 = vpack.c.b16 %v2251, %v2247
      %v2256 = vpack.c.b16 %v2252, %v2248
      %2257 = vrot.lane.b32.xlu0 %v2253, 85
      %v2258 = vpop.permute.xlu0 %2257
      %2259 = vrot.lane.b32.xlu0 %v2254, 85
      %v2260 = vpop.permute.xlu0 %2259
      %2261 = vrot.lane.b32.xlu0 %v2255, 85
      %v2262 = vpop.permute.xlu0 %2261
      %2263 = vrot.lane.b32.xlu0 %v2256, 85
      %v2264 = vpop.permute.xlu0 %2263
      %v2265 = vsel %vm785, %v2258, %v2260
      %v2266 = vsel %vm785, %v2260, %v2262
      %v2267 = vsel %vm785, %v2262, %v2264
      %v2274 = vunpack.c.l.b16 %v2046
      %v2275 = vunpack.c.h.b16 %v2046
      %v2276 = vunpack.c.l.b16 %v2047
      %v2277 = vunpack.c.h.b16 %v2047
      %v2278 = vunpack.c.l.b16 %v2048
      %v2279 = vunpack.c.l.b16 %v2049
      %v2280 = vunpack.c.h.b16 %v2049
      %v2281 = vunpack.c.l.b16 %v2050
      %v2282 = vunpack.c.h.b16 %v2050
      %v2283 = vunpack.c.l.b16 %v2051
      %v2284 = vpack.c.b16 %v2279, %v2274
      %v2285 = vpack.c.b16 %v2280, %v2275
      %v2286 = vpack.c.b16 %v2281, %v2276
      %v2287 = vpack.c.b16 %v2282, %v2277
      %v2288 = vpack.c.b16 %v2283, %v2278
      %2289 = vrot.lane.b32.xlu0 %v2284, 84
      %v2290 = vpop.permute.xlu0 %2289
      %2291 = vrot.lane.b32.xlu0 %v2285, 84
      %v2292 = vpop.permute.xlu0 %2291
      %2293 = vrot.lane.b32.xlu0 %v2286, 84
      %v2294 = vpop.permute.xlu0 %2293
      %2295 = vrot.lane.b32.xlu0 %v2287, 84
      %v2296 = vpop.permute.xlu0 %2295
      %2297 = vrot.lane.b32.xlu0 %v2288, 84
      %v2298 = vpop.permute.xlu0 %2297
      %v2299 = vsel %vm812, %v2290, %v2292
      %v2300 = vsel %vm812, %v2292, %v2294
      %v2301 = vsel %vm812, %v2294, %v2296
      %v2302 = vsel %vm812, %v2296, %v2298
      %2303 = vrot.lane.b32.xlu0 %v2284, 80
      %v2304 = vpop.permute.xlu0 %2303
      %2305 = vrot.lane.b32.xlu0 %v2285, 80
      %v2306 = vpop.permute.xlu0 %2305
      %2307 = vrot.lane.b32.xlu0 %v2286, 80
      %v2308 = vpop.permute.xlu0 %2307
      %2309 = vrot.lane.b32.xlu0 %v2287, 80
      %v2310 = vpop.permute.xlu0 %2309
      %2311 = vrot.lane.b32.xlu0 %v2288, 80
      %v2312 = vpop.permute.xlu0 %2311
      %v2313 = vsel %vm827, %v2304, %v2306
      %v2314 = vsel %vm827, %v2306, %v2308
      %v2315 = vsel %vm827, %v2308, %v2310
      %v2316 = vsel %vm827, %v2310, %v2312
      %2317 = vrot.lane.b32.xlu0 %v2284, 127
      %v2318 = vpop.permute.xlu0 %2317
      %2319 = vrot.lane.b32.xlu0 %v2285, 127
      %v2320 = vpop.permute.xlu0 %2319
      %2321 = vrot.lane.b32.xlu0 %v2286, 127
      %v2322 = vpop.permute.xlu0 %2321
      %2323 = vrot.lane.b32.xlu0 %v2287, 127
      %v2324 = vpop.permute.xlu0 %2323
      %2325 = vrot.lane.b32.xlu0 %v2288, 127
      %v2326 = vpop.permute.xlu0 %2325
      %v2327 = vsel %vm597, %v2318, %v2320
      %v2328 = vsel %vm597, %v2320, %v2322
      %v2329 = vsel %vm597, %v2322, %v2324
      %v2330 = vsel %vm597, %v2324, %v2326
      %2331 = vrot.lane.b32.xlu0 %v2284, 105
      %v2332 = vpop.permute.xlu0 %2331
      %2333 = vrot.lane.b32.xlu0 %v2285, 105
      %v2334 = vpop.permute.xlu0 %2333
      %2335 = vrot.lane.b32.xlu0 %v2286, 105
      %v2336 = vpop.permute.xlu0 %2335
      %2337 = vrot.lane.b32.xlu0 %v2287, 105
      %v2338 = vpop.permute.xlu0 %2337
      %2339 = vrot.lane.b32.xlu0 %v2288, 105
      %v2340 = vpop.permute.xlu0 %2339
      %v2341 = vsel %vm977, %v2332, %v2334
      %v2342 = vsel %vm977, %v2334, %v2336
      %v2343 = vsel %vm977, %v2336, %v2338
      %v2344 = vsel %vm977, %v2338, %v2340
      %2345 = vrot.lane.b32.xlu0 %v2284, 104
      %v2346 = vpop.permute.xlu0 %2345
      %2347 = vrot.lane.b32.xlu0 %v2285, 104
      %v2348 = vpop.permute.xlu0 %2347
      %2349 = vrot.lane.b32.xlu0 %v2286, 104
      %v2350 = vpop.permute.xlu0 %2349
      %2351 = vrot.lane.b32.xlu0 %v2287, 104
      %v2352 = vpop.permute.xlu0 %2351
      %2353 = vrot.lane.b32.xlu0 %v2288, 104
      %v2354 = vpop.permute.xlu0 %2353
      %v2355 = vsel %vm992, %v2346, %v2348
      %v2356 = vsel %vm992, %v2348, %v2350
      %v2357 = vsel %vm992, %v2350, %v2352
      %v2358 = vsel %vm992, %v2352, %v2354
      %2359 = vrot.lane.b32.xlu0 %v2284, 103
      %v2360 = vpop.permute.xlu0 %2359
      %2361 = vrot.lane.b32.xlu0 %v2285, 103
      %v2362 = vpop.permute.xlu0 %2361
      %2363 = vrot.lane.b32.xlu0 %v2286, 103
      %v2364 = vpop.permute.xlu0 %2363
      %2365 = vrot.lane.b32.xlu0 %v2287, 103
      %v2366 = vpop.permute.xlu0 %2365
      %2367 = vrot.lane.b32.xlu0 %v2288, 103
      %v2368 = vpop.permute.xlu0 %2367
      %v2369 = vsel %vm1007, %v2360, %v2362
      %v2370 = vsel %vm1007, %v2362, %v2364
      %v2371 = vsel %vm1007, %v2364, %v2366
      %v2372 = vsel %vm1007, %v2366, %v2368
      %2373 = vrot.lane.b32.xlu0 %v2284, 99
      %v2374 = vpop.permute.xlu0 %2373
      %2375 = vrot.lane.b32.xlu0 %v2285, 99
      %v2376 = vpop.permute.xlu0 %2375
      %2377 = vrot.lane.b32.xlu0 %v2286, 99
      %v2378 = vpop.permute.xlu0 %2377
      %2379 = vrot.lane.b32.xlu0 %v2287, 99
      %v2380 = vpop.permute.xlu0 %2379
      %2381 = vrot.lane.b32.xlu0 %v2288, 99
      %v2382 = vpop.permute.xlu0 %2381
      %v2383 = vsel %vm1022, %v2374, %v2376
      %v2384 = vsel %vm1022, %v2376, %v2378
      %v2385 = vsel %vm1022, %v2378, %v2380
      %v2386 = vsel %vm1022, %v2380, %v2382
      %2387 = vrot.lane.b32.xlu0 %v2284, 98
      %v2388 = vpop.permute.xlu0 %2387
      %2389 = vrot.lane.b32.xlu0 %v2285, 98
      %v2390 = vpop.permute.xlu0 %2389
      %2391 = vrot.lane.b32.xlu0 %v2286, 98
      %v2392 = vpop.permute.xlu0 %2391
      %2393 = vrot.lane.b32.xlu0 %v2287, 98
      %v2394 = vpop.permute.xlu0 %2393
      %2395 = vrot.lane.b32.xlu0 %v2288, 98
      %v2396 = vpop.permute.xlu0 %2395
      %v2397 = vsel %vm1037, %v2388, %v2390
      %v2398 = vsel %vm1037, %v2390, %v2392
      %v2399 = vsel %vm1037, %v2392, %v2394
      %v2400 = vsel %vm1037, %v2394, %v2396
      %2401 = vrot.lane.b32.xlu0 %v2284, 97
      %v2402 = vpop.permute.xlu0 %2401
      %2403 = vrot.lane.b32.xlu0 %v2285, 97
      %v2404 = vpop.permute.xlu0 %2403
      %2405 = vrot.lane.b32.xlu0 %v2286, 97
      %v2406 = vpop.permute.xlu0 %2405
      %2407 = vrot.lane.b32.xlu0 %v2287, 97
      %v2408 = vpop.permute.xlu0 %2407
      %2409 = vrot.lane.b32.xlu0 %v2288, 97
      %v2410 = vpop.permute.xlu0 %2409
      %v2411 = vsel %vm1052, %v2402, %v2404
      %v2412 = vsel %vm1052, %v2404, %v2406
      %v2413 = vsel %vm1052, %v2406, %v2408
      %v2414 = vsel %vm1052, %v2408, %v2410
      %2415 = vrot.lane.b32.xlu0 %v2284, 93
      %v2416 = vpop.permute.xlu0 %2415
      %2417 = vrot.lane.b32.xlu0 %v2285, 93
      %v2418 = vpop.permute.xlu0 %2417
      %2419 = vrot.lane.b32.xlu0 %v2286, 93
      %v2420 = vpop.permute.xlu0 %2419
      %2421 = vrot.lane.b32.xlu0 %v2287, 93
      %v2422 = vpop.permute.xlu0 %2421
      %2423 = vrot.lane.b32.xlu0 %v2288, 93
      %v2424 = vpop.permute.xlu0 %2423
      %v2425 = vsel %vm1067, %v2416, %v2418
      %v2426 = vsel %vm1067, %v2418, %v2420
      %v2427 = vsel %vm1067, %v2420, %v2422
      %v2428 = vsel %vm1067, %v2422, %v2424
      %2429 = vrot.lane.b32.xlu0 %v2284, 92
      %v2430 = vpop.permute.xlu0 %2429
      %2431 = vrot.lane.b32.xlu0 %v2285, 92
      %v2432 = vpop.permute.xlu0 %2431
      %2433 = vrot.lane.b32.xlu0 %v2286, 92
      %v2434 = vpop.permute.xlu0 %2433
      %2435 = vrot.lane.b32.xlu0 %v2287, 92
      %v2436 = vpop.permute.xlu0 %2435
      %2437 = vrot.lane.b32.xlu0 %v2288, 92
      %v2438 = vpop.permute.xlu0 %2437
      %v2439 = vsel %vm717, %v2430, %v2432
      %v2440 = vsel %vm717, %v2432, %v2434
      %v2441 = vsel %vm717, %v2434, %v2436
      %v2442 = vsel %vm717, %v2436, %v2438
      %2443 = vrot.lane.b32.xlu0 %v2284, 91
      %v2444 = vpop.permute.xlu0 %2443
      %2445 = vrot.lane.b32.xlu0 %v2285, 91
      %v2446 = vpop.permute.xlu0 %2445
      %2447 = vrot.lane.b32.xlu0 %v2286, 91
      %v2448 = vpop.permute.xlu0 %2447
      %2449 = vrot.lane.b32.xlu0 %v2287, 91
      %v2450 = vpop.permute.xlu0 %2449
      %2451 = vrot.lane.b32.xlu0 %v2288, 91
      %v2452 = vpop.permute.xlu0 %2451
      %v2453 = vsel %vm732, %v2444, %v2446
      %v2454 = vsel %vm732, %v2446, %v2448
      %v2455 = vsel %vm732, %v2448, %v2450
      %v2456 = vsel %vm732, %v2450, %v2452
      %2457 = vrot.lane.b32.xlu0 %v2284, 79
      %v2458 = vpop.permute.xlu0 %2457
      %2459 = vrot.lane.b32.xlu0 %v2285, 79
      %v2460 = vpop.permute.xlu0 %2459
      %2461 = vrot.lane.b32.xlu0 %v2286, 79
      %v2462 = vpop.permute.xlu0 %2461
      %2463 = vrot.lane.b32.xlu0 %v2287, 79
      %v2464 = vpop.permute.xlu0 %2463
      %2465 = vrot.lane.b32.xlu0 %v2288, 79
      %v2466 = vpop.permute.xlu0 %2465
      %2467 = vrot.lane.b32.xlu0 %v2327, 79
      %v2468 = vpop.permute.xlu0 %2467
      %2469 = vrot.lane.b32.xlu0 %v2328, 79
      %v2470 = vpop.permute.xlu0 %2469
      %2471 = vrot.lane.b32.xlu0 %v2329, 79
      %v2472 = vpop.permute.xlu0 %2471
      %2473 = vrot.lane.b32.xlu0 %v2330, 79
      %v2474 = vpop.permute.xlu0 %2473
      %2475 = vrot.lane.b32.xlu0 %v2326, 79
      %v2476 = vpop.permute.xlu0 %2475
      %2477 = vrot.lane.b32.xlu0 %v2341, 79
      %v2478 = vpop.permute.xlu0 %2477
      %2479 = vrot.lane.b32.xlu0 %v2342, 79
      %v2480 = vpop.permute.xlu0 %2479
      %2481 = vrot.lane.b32.xlu0 %v2343, 79
      %v2482 = vpop.permute.xlu0 %2481
      %2483 = vrot.lane.b32.xlu0 %v2344, 79
      %v2484 = vpop.permute.xlu0 %2483
      %2485 = vrot.lane.b32.xlu0 %v2340, 79
      %v2486 = vpop.permute.xlu0 %2485
      %2487 = vrot.lane.b32.xlu0 %v2355, 79
      %v2488 = vpop.permute.xlu0 %2487
      %2489 = vrot.lane.b32.xlu0 %v2356, 79
      %v2490 = vpop.permute.xlu0 %2489
      %2491 = vrot.lane.b32.xlu0 %v2357, 79
      %v2492 = vpop.permute.xlu0 %2491
      %2493 = vrot.lane.b32.xlu0 %v2358, 79
      %v2494 = vpop.permute.xlu0 %2493
      %2495 = vrot.lane.b32.xlu0 %v2354, 79
      %v2496 = vpop.permute.xlu0 %2495
      %2497 = vrot.lane.b32.xlu0 %v2369, 79
      %v2498 = vpop.permute.xlu0 %2497
      %2499 = vrot.lane.b32.xlu0 %v2370, 79
      %v2500 = vpop.permute.xlu0 %2499
      %2501 = vrot.lane.b32.xlu0 %v2371, 79
      %v2502 = vpop.permute.xlu0 %2501
      %2503 = vrot.lane.b32.xlu0 %v2372, 79
      %v2504 = vpop.permute.xlu0 %2503
      %2505 = vrot.lane.b32.xlu0 %v2368, 79
      %v2506 = vpop.permute.xlu0 %2505
      %2507 = vrot.lane.b32.xlu0 %v2383, 79
      %v2508 = vpop.permute.xlu0 %2507
      %2509 = vrot.lane.b32.xlu0 %v2384, 79
      %v2510 = vpop.permute.xlu0 %2509
      %2511 = vrot.lane.b32.xlu0 %v2385, 79
      %v2512 = vpop.permute.xlu0 %2511
      %2513 = vrot.lane.b32.xlu0 %v2386, 79
      %v2514 = vpop.permute.xlu0 %2513
      %2515 = vrot.lane.b32.xlu0 %v2382, 79
      %v2516 = vpop.permute.xlu0 %2515
      %2517 = vrot.lane.b32.xlu0 %v2397, 79
      %v2518 = vpop.permute.xlu0 %2517
      %2519 = vrot.lane.b32.xlu0 %v2398, 79
      %v2520 = vpop.permute.xlu0 %2519
      %2521 = vrot.lane.b32.xlu0 %v2399, 79
      %v2522 = vpop.permute.xlu0 %2521
      %2523 = vrot.lane.b32.xlu0 %v2400, 79
      %v2524 = vpop.permute.xlu0 %2523
      %2525 = vrot.lane.b32.xlu0 %v2396, 79
      %v2526 = vpop.permute.xlu0 %2525
      %2527 = vrot.lane.b32.xlu0 %v2411, 79
      %v2528 = vpop.permute.xlu0 %2527
      %2529 = vrot.lane.b32.xlu0 %v2412, 79
      %v2530 = vpop.permute.xlu0 %2529
      %2531 = vrot.lane.b32.xlu0 %v2413, 79
      %v2532 = vpop.permute.xlu0 %2531
      %2533 = vrot.lane.b32.xlu0 %v2414, 79
      %v2534 = vpop.permute.xlu0 %2533
      %2535 = vrot.lane.b32.xlu0 %v2410, 79
      %v2536 = vpop.permute.xlu0 %2535
      %2537 = vrot.lane.b32.xlu0 %v2425, 79
      %v2538 = vpop.permute.xlu0 %2537
      %2539 = vrot.lane.b32.xlu0 %v2426, 79
      %v2540 = vpop.permute.xlu0 %2539
      %2541 = vrot.lane.b32.xlu0 %v2427, 79
      %v2542 = vpop.permute.xlu0 %2541
      %2543 = vrot.lane.b32.xlu0 %v2428, 79
      %v2544 = vpop.permute.xlu0 %2543
      %2545 = vrot.lane.b32.xlu0 %v2424, 79
      %v2546 = vpop.permute.xlu0 %2545
      %2547 = vrot.lane.b32.xlu0 %v2439, 79
      %v2548 = vpop.permute.xlu0 %2547
      %2549 = vrot.lane.b32.xlu0 %v2440, 79
      %v2550 = vpop.permute.xlu0 %2549
      %2551 = vrot.lane.b32.xlu0 %v2441, 79
      %v2552 = vpop.permute.xlu0 %2551
      %2553 = vrot.lane.b32.xlu0 %v2442, 79
      %v2554 = vpop.permute.xlu0 %2553
      %2555 = vrot.lane.b32.xlu0 %v2438, 79
      %v2556 = vpop.permute.xlu0 %2555
      %2557 = vrot.lane.b32.xlu0 %v2453, 79
      %v2558 = vpop.permute.xlu0 %2557
      %2559 = vrot.lane.b32.xlu0 %v2454, 79
      %v2560 = vpop.permute.xlu0 %2559
      %2561 = vrot.lane.b32.xlu0 %v2455, 79
      %v2562 = vpop.permute.xlu0 %2561
      %2563 = vrot.lane.b32.xlu0 %v2456, 79
      %v2564 = vpop.permute.xlu0 %2563
      %2565 = vrot.lane.b32.xlu0 %v2452, 79
      %v2566 = vpop.permute.xlu0 %2565
      %v2567 = vsel %vm1260, %v2458, %v2460
      %v2568 = vsel %vm1260, %v2460, %v2462
      %v2569 = vsel %vm1260, %v2462, %v2464
      %v2570 = vsel %vm1260, %v2464, %v2466
      %v2571 = vsel %vm1260, %v2468, %v2470
      %v2572 = vsel %vm1260, %v2470, %v2472
      %v2573 = vsel %vm1260, %v2472, %v2474
      %v2574 = vsel %vm1260, %v2474, %v2476
      %v2575 = vsel %vm1260, %v2478, %v2480
      %v2576 = vsel %vm1260, %v2480, %v2482
      %v2577 = vsel %vm1260, %v2482, %v2484
      %v2578 = vsel %vm1260, %v2484, %v2486
      %v2579 = vsel %vm1260, %v2488, %v2490
      %v2580 = vsel %vm1260, %v2490, %v2492
      %v2581 = vsel %vm1260, %v2492, %v2494
      %v2582 = vsel %vm1260, %v2494, %v2496
      %v2583 = vsel %vm1260, %v2498, %v2500
      %v2584 = vsel %vm1260, %v2500, %v2502
      %v2585 = vsel %vm1260, %v2502, %v2504
      %v2586 = vsel %vm1260, %v2504, %v2506
      %v2587 = vsel %vm1260, %v2508, %v2510
      %v2588 = vsel %vm1260, %v2510, %v2512
      %v2589 = vsel %vm1260, %v2512, %v2514
      %v2590 = vsel %vm1260, %v2514, %v2516
      %v2591 = vsel %vm1260, %v2518, %v2520
      %v2592 = vsel %vm1260, %v2520, %v2522
      %v2593 = vsel %vm1260, %v2522, %v2524
      %v2594 = vsel %vm1260, %v2524, %v2526
      %v2595 = vsel %vm1260, %v2528, %v2530
      %v2596 = vsel %vm1260, %v2530, %v2532
      %v2597 = vsel %vm1260, %v2532, %v2534
      %v2598 = vsel %vm1260, %v2534, %v2536
      %v2599 = vsel %vm1260, %v2538, %v2540
      %v2600 = vsel %vm1260, %v2540, %v2542
      %v2601 = vsel %vm1260, %v2542, %v2544
      %v2602 = vsel %vm1260, %v2544, %v2546
      %v2603 = vsel %vm1260, %v2548, %v2550
      %v2604 = vsel %vm1260, %v2550, %v2552
      %v2605 = vsel %vm1260, %v2552, %v2554
      %v2606 = vsel %vm1260, %v2554, %v2556
      %v2607 = vsel %vm1260, %v2558, %v2560
      %v2608 = vsel %vm1260, %v2560, %v2562
      %v2609 = vsel %vm1260, %v2562, %v2564
      %v2610 = vsel %vm1260, %v2564, %v2566
      %v2611 = vld [vmem:[%s6] sm:$0xff]
      %v2612 = vld [vmem:[%s6 + $0x8] sm:$0xff]
      %v2613 = vld [vmem:[%s6 + $0x10] sm:$0xff]
      %v2614 = vld [vmem:[%s6 + $0x18] sm:$0xff]
      %v2615 = vld [vmem:[%s7] sm:$0xff]
      %v2616 = vld [vmem:[%s7 + $0x8] sm:$0xff]
      %2618 = vset.pattern.permute.xlu0 0
      %2619 = vperm.xlu0 %2618, %v2615
      %v2620 = vpop.permute.xlu0 %2619
      %2623 = vset.pattern.permute.xlu0 0
      %2624 = vperm.xlu0 %2623, %v2616
      %v2625 = vpop.permute.xlu0 %2624
      %v2631 = vunpack.c.l.b16 %v2611
      %v2632 = vunpack.c.h.b16 %v2611
      %v2633 = vunpack.c.l.b16 %v2612
      %v2634 = vunpack.c.h.b16 %v2612
      %v2635 = vunpack.c.l.b16 %v2613
      %v2636 = vunpack.c.h.b16 %v2613
      %v2637 = vunpack.c.l.b16 %v2614
      %v2638 = vunpack.c.h.b16 %v2614
      %v2639 = vpack.c.b16 %v2635, %v2631
      %v2640 = vpack.c.b16 %v2636, %v2632
      %v2641 = vpack.c.b16 %v2637, %v2633
      %v2642 = vpack.c.b16 %v2638, %v2634
      %2646 = vrot.lane.b32.xlu0 %v2068, 43
      %v2647 = vpop.permute.xlu0 %2646
      %2648 = vrot.lane.b32.xlu0 %v2069, 43
      %v2649 = vpop.permute.xlu0 %2648
      %2650 = vrot.lane.b32.xlu0 %v2070, 43
      %v2651 = vpop.permute.xlu0 %2650
      %2652 = vrot.lane.b32.xlu0 %v2071, 43
      %v2653 = vpop.permute.xlu0 %2652
      %2654 = vrot.lane.b32.xlu0 %v2072, 43
      %v2655 = vpop.permute.xlu0 %2654
      %2656 = vrot.lane.b32.xlu0 %v2083, 43
      %v2657 = vpop.permute.xlu0 %2656
      %2658 = vrot.lane.b32.xlu0 %v2084, 43
      %v2659 = vpop.permute.xlu0 %2658
      %2660 = vrot.lane.b32.xlu0 %v2085, 43
      %v2661 = vpop.permute.xlu0 %2660
      %2662 = vrot.lane.b32.xlu0 %v2086, 43
      %v2663 = vpop.permute.xlu0 %2662
      %2664 = vrot.lane.b32.xlu0 %v2082, 43
      %v2665 = vpop.permute.xlu0 %2664
      %2666 = vrot.lane.b32.xlu0 %v2097, 43
      %v2667 = vpop.permute.xlu0 %2666
      %2668 = vrot.lane.b32.xlu0 %v2098, 43
      %v2669 = vpop.permute.xlu0 %2668
      %2670 = vrot.lane.b32.xlu0 %v2099, 43
      %v2671 = vpop.permute.xlu0 %2670
      %2672 = vrot.lane.b32.xlu0 %v2100, 43
      %v2673 = vpop.permute.xlu0 %2672
      %2674 = vrot.lane.b32.xlu0 %v2096, 43
      %v2675 = vpop.permute.xlu0 %2674
      %2676 = vrot.lane.b32.xlu0 %v2111, 43
      %v2677 = vpop.permute.xlu0 %2676
      %2678 = vrot.lane.b32.xlu0 %v2112, 43
      %v2679 = vpop.permute.xlu0 %2678
      %2680 = vrot.lane.b32.xlu0 %v2113, 43
      %v2681 = vpop.permute.xlu0 %2680
      %2682 = vrot.lane.b32.xlu0 %v2114, 43
      %v2683 = vpop.permute.xlu0 %2682
      %2684 = vrot.lane.b32.xlu0 %v2110, 43
      %v2685 = vpop.permute.xlu0 %2684
      %2686 = vrot.lane.b32.xlu0 %v2125, 43
      %v2687 = vpop.permute.xlu0 %2686
      %2688 = vrot.lane.b32.xlu0 %v2126, 43
      %v2689 = vpop.permute.xlu0 %2688
      %2690 = vrot.lane.b32.xlu0 %v2127, 43
      %v2691 = vpop.permute.xlu0 %2690
      %2692 = vrot.lane.b32.xlu0 %v2128, 43
      %v2693 = vpop.permute.xlu0 %2692
      %2694 = vrot.lane.b32.xlu0 %v2124, 43
      %v2695 = vpop.permute.xlu0 %2694
      %2696 = vrot.lane.b32.xlu0 %v2139, 43
      %v2697 = vpop.permute.xlu0 %2696
      %2698 = vrot.lane.b32.xlu0 %v2140, 43
      %v2699 = vpop.permute.xlu0 %2698
      %2700 = vrot.lane.b32.xlu0 %v2141, 43
      %v2701 = vpop.permute.xlu0 %2700
      %2702 = vrot.lane.b32.xlu0 %v2142, 43
      %v2703 = vpop.permute.xlu0 %2702
      %2704 = vrot.lane.b32.xlu0 %v2138, 43
      %v2705 = vpop.permute.xlu0 %2704
      %2706 = vrot.lane.b32.xlu0 %v2153, 43
      %v2707 = vpop.permute.xlu0 %2706
      %2708 = vrot.lane.b32.xlu0 %v2154, 43
      %v2709 = vpop.permute.xlu0 %2708
      %2710 = vrot.lane.b32.xlu0 %v2155, 43
      %v2711 = vpop.permute.xlu0 %2710
      %2712 = vrot.lane.b32.xlu0 %v2156, 43
      %v2713 = vpop.permute.xlu0 %2712
      %2714 = vrot.lane.b32.xlu0 %v2152, 43
      %v2715 = vpop.permute.xlu0 %2714
      %2716 = vrot.lane.b32.xlu0 %v2167, 43
      %v2717 = vpop.permute.xlu0 %2716
      %2718 = vrot.lane.b32.xlu0 %v2168, 43
      %v2719 = vpop.permute.xlu0 %2718
      %2720 = vrot.lane.b32.xlu0 %v2169, 43
      %v2721 = vpop.permute.xlu0 %2720
      %2722 = vrot.lane.b32.xlu0 %v2170, 43
      %v2723 = vpop.permute.xlu0 %2722
      %2724 = vrot.lane.b32.xlu0 %v2166, 43
      %v2725 = vpop.permute.xlu0 %2724
      %2726 = vrot.lane.b32.xlu0 %v2181, 43
      %v2727 = vpop.permute.xlu0 %2726
      %2728 = vrot.lane.b32.xlu0 %v2182, 43
      %v2729 = vpop.permute.xlu0 %2728
      %2730 = vrot.lane.b32.xlu0 %v2183, 43
      %v2731 = vpop.permute.xlu0 %2730
      %2732 = vrot.lane.b32.xlu0 %v2184, 43
      %v2733 = vpop.permute.xlu0 %2732
      %2734 = vrot.lane.b32.xlu0 %v2180, 43
      %v2735 = vpop.permute.xlu0 %2734
      %2736 = vrot.lane.b32.xlu0 %v2195, 43
      %v2737 = vpop.permute.xlu0 %2736
      %2738 = vrot.lane.b32.xlu0 %v2196, 43
      %v2739 = vpop.permute.xlu0 %2738
      %2740 = vrot.lane.b32.xlu0 %v2197, 43
      %v2741 = vpop.permute.xlu0 %2740
      %2742 = vrot.lane.b32.xlu0 %v2198, 43
      %v2743 = vpop.permute.xlu0 %2742
      %2744 = vrot.lane.b32.xlu0 %v2194, 43
      %v2745 = vpop.permute.xlu0 %2744
      %2746 = vrot.lane.b32.xlu0 %v2209, 43
      %v2747 = vpop.permute.xlu0 %2746
      %2748 = vrot.lane.b32.xlu0 %v2210, 43
      %v2749 = vpop.permute.xlu0 %2748
      %2750 = vrot.lane.b32.xlu0 %v2211, 43
      %v2751 = vpop.permute.xlu0 %2750
      %2752 = vrot.lane.b32.xlu0 %v2212, 43
      %v2753 = vpop.permute.xlu0 %2752
      %2754 = vrot.lane.b32.xlu0 %v2208, 43
      %v2755 = vpop.permute.xlu0 %2754
      %2756 = vrot.lane.b32.xlu0 %v2223, 43
      %v2757 = vpop.permute.xlu0 %2756
      %2758 = vrot.lane.b32.xlu0 %v2224, 43
      %v2759 = vpop.permute.xlu0 %2758
      %2760 = vrot.lane.b32.xlu0 %v2225, 43
      %v2761 = vpop.permute.xlu0 %2760
      %2762 = vrot.lane.b32.xlu0 %v2226, 43
      %v2763 = vpop.permute.xlu0 %2762
      %2764 = vrot.lane.b32.xlu0 %v2222, 43
      %v2765 = vpop.permute.xlu0 %2764
      %2766 = vrot.lane.b32.xlu0 %v2237, 43
      %v2767 = vpop.permute.xlu0 %2766
      %2768 = vrot.lane.b32.xlu0 %v2238, 43
      %v2769 = vpop.permute.xlu0 %2768
      %2770 = vrot.lane.b32.xlu0 %v2239, 43
      %v2771 = vpop.permute.xlu0 %2770
      %2772 = vrot.lane.b32.xlu0 %v2240, 43
      %v2773 = vpop.permute.xlu0 %2772
      %2774 = vrot.lane.b32.xlu0 %v2236, 43
      %v2775 = vpop.permute.xlu0 %2774
      %2776 = vrot.lane.b32.xlu0 %v2258, 43
      %v2777 = vpop.permute.xlu0 %2776
      %2778 = vrot.lane.b32.xlu0 %v2265, 43
      %v2779 = vpop.permute.xlu0 %2778
      %2780 = vrot.lane.b32.xlu0 %v2266, 43
      %v2781 = vpop.permute.xlu0 %2780
      %2782 = vrot.lane.b32.xlu0 %v2267, 43
      %v2783 = vpop.permute.xlu0 %2782
      %2784 = vrot.lane.b32.xlu0 %v2264, 43
      %v2785 = vpop.permute.xlu0 %2784
      %2786 = vrot.lane.b32.xlu0 %v2290, 43
      %v2787 = vpop.permute.xlu0 %2786
      %2788 = vrot.lane.b32.xlu0 %v2299, 43
      %v2789 = vpop.permute.xlu0 %2788
      %2790 = vrot.lane.b32.xlu0 %v2300, 43
      %v2791 = vpop.permute.xlu0 %2790
      %2792 = vrot.lane.b32.xlu0 %v2301, 43
      %v2793 = vpop.permute.xlu0 %2792
      %2794 = vrot.lane.b32.xlu0 %v2302, 43
      %v2795 = vpop.permute.xlu0 %2794
      %2796 = vrot.lane.b32.xlu0 %v2304, 43
      %v2797 = vpop.permute.xlu0 %2796
      %2798 = vrot.lane.b32.xlu0 %v2313, 43
      %v2799 = vpop.permute.xlu0 %2798
      %2800 = vrot.lane.b32.xlu0 %v2314, 43
      %v2801 = vpop.permute.xlu0 %2800
      %2802 = vrot.lane.b32.xlu0 %v2315, 43
      %v2803 = vpop.permute.xlu0 %2802
      %2804 = vrot.lane.b32.xlu0 %v2316, 43
      %v2805 = vpop.permute.xlu0 %2804
      %2806 = vrot.lane.b32.xlu0 %v2458, 43
      %v2807 = vpop.permute.xlu0 %2806
      %2808 = vrot.lane.b32.xlu0 %v2567, 43
      %v2809 = vpop.permute.xlu0 %2808
      %2810 = vrot.lane.b32.xlu0 %v2568, 43
      %v2811 = vpop.permute.xlu0 %2810
      %2812 = vrot.lane.b32.xlu0 %v2569, 43
      %v2813 = vpop.permute.xlu0 %2812
      %2814 = vrot.lane.b32.xlu0 %v2570, 43
      %v2815 = vpop.permute.xlu0 %2814
      %2816 = vrot.lane.b32.xlu0 %v2468, 43
      %v2817 = vpop.permute.xlu0 %2816
      %2818 = vrot.lane.b32.xlu0 %v2571, 43
      %v2819 = vpop.permute.xlu0 %2818
      %2820 = vrot.lane.b32.xlu0 %v2572, 43
      %v2821 = vpop.permute.xlu0 %2820
      %2822 = vrot.lane.b32.xlu0 %v2573, 43
      %v2823 = vpop.permute.xlu0 %2822
      %2824 = vrot.lane.b32.xlu0 %v2574, 43
      %v2825 = vpop.permute.xlu0 %2824
      %2826 = vrot.lane.b32.xlu0 %v2478, 43
      %v2827 = vpop.permute.xlu0 %2826
      %2828 = vrot.lane.b32.xlu0 %v2575, 43
      %v2829 = vpop.permute.xlu0 %2828
      %2830 = vrot.lane.b32.xlu0 %v2576, 43
      %v2831 = vpop.permute.xlu0 %2830
      %2832 = vrot.lane.b32.xlu0 %v2577, 43
      %v2833 = vpop.permute.xlu0 %2832
      %2834 = vrot.lane.b32.xlu0 %v2578, 43
      %v2835 = vpop.permute.xlu0 %2834
      %2836 = vrot.lane.b32.xlu0 %v2488, 43
      %v2837 = vpop.permute.xlu0 %2836
      %2838 = vrot.lane.b32.xlu0 %v2579, 43
      %v2839 = vpop.permute.xlu0 %2838
      %2840 = vrot.lane.b32.xlu0 %v2580, 43
      %v2841 = vpop.permute.xlu0 %2840
      %2842 = vrot.lane.b32.xlu0 %v2581, 43
      %v2843 = vpop.permute.xlu0 %2842
      %2844 = vrot.lane.b32.xlu0 %v2582, 43
      %v2845 = vpop.permute.xlu0 %2844
      %2846 = vrot.lane.b32.xlu0 %v2498, 43
      %v2847 = vpop.permute.xlu0 %2846
      %2848 = vrot.lane.b32.xlu0 %v2583, 43
      %v2849 = vpop.permute.xlu0 %2848
      %2850 = vrot.lane.b32.xlu0 %v2584, 43
      %v2851 = vpop.permute.xlu0 %2850
      %2852 = vrot.lane.b32.xlu0 %v2585, 43
      %v2853 = vpop.permute.xlu0 %2852
      %2854 = vrot.lane.b32.xlu0 %v2586, 43
      %v2855 = vpop.permute.xlu0 %2854
      %2856 = vrot.lane.b32.xlu0 %v2508, 43
      %v2857 = vpop.permute.xlu0 %2856
      %2858 = vrot.lane.b32.xlu0 %v2587, 43
      %v2859 = vpop.permute.xlu0 %2858
      %2860 = vrot.lane.b32.xlu0 %v2588, 43
      %v2861 = vpop.permute.xlu0 %2860
      %2862 = vrot.lane.b32.xlu0 %v2589, 43
      %v2863 = vpop.permute.xlu0 %2862
      %2864 = vrot.lane.b32.xlu0 %v2590, 43
      %v2865 = vpop.permute.xlu0 %2864
      %2866 = vrot.lane.b32.xlu0 %v2518, 43
      %v2867 = vpop.permute.xlu0 %2866
      %2868 = vrot.lane.b32.xlu0 %v2591, 43
      %v2869 = vpop.permute.xlu0 %2868
      %2870 = vrot.lane.b32.xlu0 %v2592, 43
      %v2871 = vpop.permute.xlu0 %2870
      %2872 = vrot.lane.b32.xlu0 %v2593, 43
      %v2873 = vpop.permute.xlu0 %2872
      %2874 = vrot.lane.b32.xlu0 %v2594, 43
      %v2875 = vpop.permute.xlu0 %2874
      %2876 = vrot.lane.b32.xlu0 %v2528, 43
      %v2877 = vpop.permute.xlu0 %2876
      %2878 = vrot.lane.b32.xlu0 %v2595, 43
      %v2879 = vpop.permute.xlu0 %2878
      %2880 = vrot.lane.b32.xlu0 %v2596, 43
      %v2881 = vpop.permute.xlu0 %2880
      %2882 = vrot.lane.b32.xlu0 %v2597, 43
      %v2883 = vpop.permute.xlu0 %2882
      %2884 = vrot.lane.b32.xlu0 %v2598, 43
      %v2885 = vpop.permute.xlu0 %2884
      %2886 = vrot.lane.b32.xlu0 %v2538, 43
      %v2887 = vpop.permute.xlu0 %2886
      %2888 = vrot.lane.b32.xlu0 %v2599, 43
      %v2889 = vpop.permute.xlu0 %2888
      %2890 = vrot.lane.b32.xlu0 %v2600, 43
      %v2891 = vpop.permute.xlu0 %2890
      %2892 = vrot.lane.b32.xlu0 %v2601, 43
      %v2893 = vpop.permute.xlu0 %2892
      %2894 = vrot.lane.b32.xlu0 %v2602, 43
      %v2895 = vpop.permute.xlu0 %2894
      %2896 = vrot.lane.b32.xlu0 %v2548, 43
      %v2897 = vpop.permute.xlu0 %2896
      %2898 = vrot.lane.b32.xlu0 %v2603, 43
      %v2899 = vpop.permute.xlu0 %2898
      %2900 = vrot.lane.b32.xlu0 %v2604, 43
      %v2901 = vpop.permute.xlu0 %2900
      %2902 = vrot.lane.b32.xlu0 %v2605, 43
      %v2903 = vpop.permute.xlu0 %2902
      %2904 = vrot.lane.b32.xlu0 %v2606, 43
      %v2905 = vpop.permute.xlu0 %2904
      %2906 = vrot.lane.b32.xlu0 %v2558, 43
      %v2907 = vpop.permute.xlu0 %2906
      %2908 = vrot.lane.b32.xlu0 %v2607, 43
      %v2909 = vpop.permute.xlu0 %2908
      %2910 = vrot.lane.b32.xlu0 %v2608, 43
      %v2911 = vpop.permute.xlu0 %2910
      %2912 = vrot.lane.b32.xlu0 %v2609, 43
      %v2913 = vpop.permute.xlu0 %2912
      %2914 = vrot.lane.b32.xlu0 %v2610, 43
      %v2915 = vpop.permute.xlu0 %2914
      %v2916 = vsel %vm1488, %v2647, %v2649
      %v2917 = vsel %vm1488, %v2649, %v2651
      %v2918 = vsel %vm1488, %v2651, %v2653
      %v2919 = vsel %vm1488, %v2653, %v2655
      %v2920 = vsel %vm1488, %v2657, %v2659
      %v2921 = vsel %vm1488, %v2659, %v2661
      %v2922 = vsel %vm1488, %v2661, %v2663
      %v2923 = vsel %vm1488, %v2663, %v2665
      %v2924 = vsel %vm1488, %v2667, %v2669
      %v2925 = vsel %vm1488, %v2669, %v2671
      %v2926 = vsel %vm1488, %v2671, %v2673
      %v2927 = vsel %vm1488, %v2673, %v2675
      %v2928 = vsel %vm1488, %v2677, %v2679
      %v2929 = vsel %vm1488, %v2679, %v2681
      %v2930 = vsel %vm1488, %v2681, %v2683
      %v2931 = vsel %vm1488, %v2683, %v2685
      %v2932 = vsel %vm1488, %v2687, %v2689
      %v2933 = vsel %vm1488, %v2689, %v2691
      %v2934 = vsel %vm1488, %v2691, %v2693
      %v2935 = vsel %vm1488, %v2693, %v2695
      %v2936 = vsel %vm1488, %v2697, %v2699
      %v2937 = vsel %vm1488, %v2699, %v2701
      %v2938 = vsel %vm1488, %v2701, %v2703
      %v2939 = vsel %vm1488, %v2703, %v2705
      %v2940 = vsel %vm1488, %v2707, %v2709
      %v2941 = vsel %vm1488, %v2709, %v2711
      %v2942 = vsel %vm1488, %v2711, %v2713
      %v2943 = vsel %vm1488, %v2713, %v2715
      %v2944 = vsel %vm1488, %v2717, %v2719
      %v2945 = vsel %vm1488, %v2719, %v2721
      %v2946 = vsel %vm1488, %v2721, %v2723
      %v2947 = vsel %vm1488, %v2723, %v2725
      %v2948 = vsel %vm1488, %v2727, %v2729
      %v2949 = vsel %vm1488, %v2729, %v2731
      %v2950 = vsel %vm1488, %v2731, %v2733
      %v2951 = vsel %vm1488, %v2733, %v2735
      %v2952 = vsel %vm1488, %v2737, %v2739
      %v2953 = vsel %vm1488, %v2739, %v2741
      %v2954 = vsel %vm1488, %v2741, %v2743
      %v2955 = vsel %vm1488, %v2743, %v2745
      %v2956 = vsel %vm1488, %v2747, %v2749
      %v2957 = vsel %vm1488, %v2749, %v2751
      %v2958 = vsel %vm1488, %v2751, %v2753
      %v2959 = vsel %vm1488, %v2753, %v2755
      %v2960 = vsel %vm1488, %v2757, %v2759
      %v2961 = vsel %vm1488, %v2759, %v2761
      %v2962 = vsel %vm1488, %v2761, %v2763
      %v2963 = vsel %vm1488, %v2763, %v2765
      %v2964 = vsel %vm1488, %v2767, %v2769
      %v2965 = vsel %vm1488, %v2769, %v2771
      %v2966 = vsel %vm1488, %v2771, %v2773
      %v2967 = vsel %vm1488, %v2773, %v2775
      %v2968 = vsel %vm1488, %v2777, %v2779
      %v2969 = vsel %vm1488, %v2779, %v2781
      %v2970 = vsel %vm1488, %v2781, %v2783
      %v2971 = vsel %vm1488, %v2783, %v2785
      %v2972 = vsel %vm1488, %v2787, %v2789
      %v2973 = vsel %vm1488, %v2789, %v2791
      %v2974 = vsel %vm1488, %v2791, %v2793
      %v2975 = vsel %vm1488, %v2793, %v2795
      %v2976 = vsel %vm1488, %v2797, %v2799
      %v2977 = vsel %vm1488, %v2799, %v2801
      %v2978 = vsel %vm1488, %v2801, %v2803
      %v2979 = vsel %vm1488, %v2803, %v2805
      %v2980 = vsel %vm1488, %v2807, %v2809
      %v2981 = vsel %vm1488, %v2809, %v2811
      %v2982 = vsel %vm1488, %v2811, %v2813
      %v2983 = vsel %vm1488, %v2813, %v2815
      %v2984 = vsel %vm1488, %v2817, %v2819
      %v2985 = vsel %vm1488, %v2819, %v2821
      %v2986 = vsel %vm1488, %v2821, %v2823
      %v2987 = vsel %vm1488, %v2823, %v2825
      %v2988 = vsel %vm1488, %v2827, %v2829
      %v2989 = vsel %vm1488, %v2829, %v2831
      %v2990 = vsel %vm1488, %v2831, %v2833
      %v2991 = vsel %vm1488, %v2833, %v2835
      %v2992 = vsel %vm1488, %v2837, %v2839
      %v2993 = vsel %vm1488, %v2839, %v2841
      %v2994 = vsel %vm1488, %v2841, %v2843
      %v2995 = vsel %vm1488, %v2843, %v2845
      %v2996 = vsel %vm1488, %v2847, %v2849
      %v2997 = vsel %vm1488, %v2849, %v2851
      %v2998 = vsel %vm1488, %v2851, %v2853
      %v2999 = vsel %vm1488, %v2853, %v2855
      %v3000 = vsel %vm1488, %v2857, %v2859
      %v3001 = vsel %vm1488, %v2859, %v2861
      %v3002 = vsel %vm1488, %v2861, %v2863
      %v3003 = vsel %vm1488, %v2863, %v2865
      %v3004 = vsel %vm1488, %v2867, %v2869
      %v3005 = vsel %vm1488, %v2869, %v2871
      %v3006 = vsel %vm1488, %v2871, %v2873
      %v3007 = vsel %vm1488, %v2873, %v2875
      %v3008 = vsel %vm1488, %v2877, %v2879
      %v3009 = vsel %vm1488, %v2879, %v2881
      %v3010 = vsel %vm1488, %v2881, %v2883
      %v3011 = vsel %vm1488, %v2883, %v2885
      %v3012 = vsel %vm1488, %v2887, %v2889
      %v3013 = vsel %vm1488, %v2889, %v2891
      %v3014 = vsel %vm1488, %v2891, %v2893
      %v3015 = vsel %vm1488, %v2893, %v2895
      %v3016 = vsel %vm1488, %v2897, %v2899
      %v3017 = vsel %vm1488, %v2899, %v2901
      %v3018 = vsel %vm1488, %v2901, %v2903
      %v3019 = vsel %vm1488, %v2903, %v2905
      %v3020 = vsel %vm1488, %v2907, %v2909
      %v3021 = vsel %vm1488, %v2909, %v2911
      %v3022 = vsel %vm1488, %v2911, %v2913
      %v3023 = vsel %vm1488, %v2913, %v2915
      %vm3132 = vcmask 392192
      %v3134 = vsel %vm3132, %v2642, 0
      %3136 = vmatpush.bf16.msra.mxu0 %v2944
      %3137 = vmatpush.bf16.msra.mxu0 %v2940
      %3138 = vmatpush.bf16.msra.mxu0 %v2936
      %3139 = vmatpush.bf16.msra.mxu0 %v2932
      %3140 = vmatpush.bf16.msra.mxu0 %v2928
      %3141 = vmatpush.bf16.msra.mxu0 %v2924
      %3142 = vmatpush.bf16.msra.mxu0 %v2920
      %3143 = vmatpush.bf16.msra.mxu0 %v2916
      %3144 = vmatmul.bf16.gmra.mxu0 %v2639
      %v3145 = vpop.f32.mrf.mxu0
      %v3146 = vadd.f32 %v2620, %v3145
      %v3147 = vpop.f32.mrf.mxu0
      %v3148 = vadd.f32 %v2625, %v3147
      %3149 = vdwg.mxu0
      %3150 = vmatpush.bf16.msra.mxu0 %v2976
      %3151 = vmatpush.bf16.msra.mxu0 %v2972
      %3152 = vmatpush.bf16.msra.mxu0 %v2968
      %3153 = vmatpush.bf16.msra.mxu0 %v2964
      %3154 = vmatpush.bf16.msra.mxu0 %v2960
      %3155 = vmatpush.bf16.msra.mxu0 %v2956
      %3156 = vmatpush.bf16.msra.mxu0 %v2952
      %3157 = vmatpush.bf16.msra.mxu0 %v2948
      %3158 = vmatmul.bf16.gmra.mxu0 %v2640
      %v3159 = vpop.f32.mrf.mxu0
      %v3160 = vadd.f32 %v3146, %v3159
      %v3161 = vpop.f32.mrf.mxu0
      %v3162 = vadd.f32 %v3148, %v3161
      %3163 = vdwg.mxu0
      %3164 = vmatpush.bf16.msra.mxu0 %v3008
      %3165 = vmatpush.bf16.msra.mxu0 %v3004
      %3166 = vmatpush.bf16.msra.mxu0 %v3000
      %3167 = vmatpush.bf16.msra.mxu0 %v2996
      %3168 = vmatpush.bf16.msra.mxu0 %v2992
      %3169 = vmatpush.bf16.msra.mxu0 %v2988
      %3170 = vmatpush.bf16.msra.mxu0 %v2984
      %3171 = vmatpush.bf16.msra.mxu0 %v2980
      %3172 = vmatmul.bf16.gmra.mxu0 %v2641
      %v3173 = vpop.f32.mrf.mxu0
      %v3174 = vadd.f32 %v3160, %v3173
      %v3175 = vpop.f32.mrf.mxu0
      %v3176 = vadd.f32 %v3162, %v3175
      %3177 = vdwg.mxu0
      %3178 = vmatpush.bf16.msra.mxu0 0
      %3179 = vmatpush.bf16.msra.mxu0 0
      %3180 = vmatpush.bf16.msra.mxu0 0
      %3181 = vmatpush.bf16.msra.mxu0 0
      %3182 = vmatpush.bf16.msra.mxu0 0
      %3183 = vmatpush.bf16.msra.mxu0 %v3020
      %3184 = vmatpush.bf16.msra.mxu0 %v3016
      %3185 = vmatpush.bf16.msra.mxu0 %v3012
      %3186 = vmatmul.bf16.gmra.mxu0 %v3134
      %v3187 = vpop.f32.mrf.mxu0
      %v3188 = vadd.f32 %v3174, %v3187
      %v3189 = vpop.f32.mrf.mxu0
      %v3190 = vadd.f32 %v3176, %v3189
      %3191 = vdwg.mxu0
      %3192 = vmatpush.bf16.msra.mxu0 %v2945
      %3193 = vmatpush.bf16.msra.mxu0 %v2941
      %3194 = vmatpush.bf16.msra.mxu0 %v2937
      %3195 = vmatpush.bf16.msra.mxu0 %v2933
      %3196 = vmatpush.bf16.msra.mxu0 %v2929
      %3197 = vmatpush.bf16.msra.mxu0 %v2925
      %3198 = vmatpush.bf16.msra.mxu0 %v2921
      %3199 = vmatpush.bf16.msra.mxu0 %v2917
      %3200 = vmatmul.bf16.gmra.mxu0 %v2639
      %v3201 = vpop.f32.mrf.mxu0
      %v3202 = vadd.f32 %v2620, %v3201
      %v3203 = vpop.f32.mrf.mxu0
      %v3204 = vadd.f32 %v2625, %v3203
      %3205 = vdwg.mxu0
      %3206 = vmatpush.bf16.msra.mxu0 %v2977
      %3207 = vmatpush.bf16.msra.mxu0 %v2973
      %3208 = vmatpush.bf16.msra.mxu0 %v2969
      %3209 = vmatpush.bf16.msra.mxu0 %v2965
      %3210 = vmatpush.bf16.msra.mxu0 %v2961
      %3211 = vmatpush.bf16.msra.mxu0 %v2957
      %3212 = vmatpush.bf16.msra.mxu0 %v2953
      %3213 = vmatpush.bf16.msra.mxu0 %v2949
      %3214 = vmatmul.bf16.gmra.mxu0 %v2640
      %v3215 = vpop.f32.mrf.mxu0
      %v3216 = vadd.f32 %v3202, %v3215
      %v3217 = vpop.f32.mrf.mxu0
      %v3218 = vadd.f32 %v3204, %v3217
      %3219 = vdwg.mxu0
      %3220 = vmatpush.bf16.msra.mxu0 %v3009
      %3221 = vmatpush.bf16.msra.mxu0 %v3005
      %3222 = vmatpush.bf16.msra.mxu0 %v3001
      %3223 = vmatpush.bf16.msra.mxu0 %v2997
      %3224 = vmatpush.bf16.msra.mxu0 %v2993
      %3225 = vmatpush.bf16.msra.mxu0 %v2989
      %3226 = vmatpush.bf16.msra.mxu0 %v2985
      %3227 = vmatpush.bf16.msra.mxu0 %v2981
      %3228 = vmatmul.bf16.gmra.mxu0 %v2641
      %v3229 = vpop.f32.mrf.mxu0
      %v3230 = vadd.f32 %v3216, %v3229
      %v3231 = vpop.f32.mrf.mxu0
      %v3232 = vadd.f32 %v3218, %v3231
      %3233 = vdwg.mxu0
      %3234 = vmatpush.bf16.msra.mxu0 0
      %3235 = vmatpush.bf16.msra.mxu0 0
      %3236 = vmatpush.bf16.msra.mxu0 0
      %3237 = vmatpush.bf16.msra.mxu0 0
      %3238 = vmatpush.bf16.msra.mxu0 0
      %3239 = vmatpush.bf16.msra.mxu0 %v3021
      %3240 = vmatpush.bf16.msra.mxu0 %v3017
      %3241 = vmatpush.bf16.msra.mxu0 %v3013
      %3242 = vmatmul.bf16.gmra.mxu0 %v3134
      %v3243 = vpop.f32.mrf.mxu0
      %v3244 = vadd.f32 %v3230, %v3243
      %v3245 = vpop.f32.mrf.mxu0
      %v3246 = vadd.f32 %v3232, %v3245
      %3247 = vdwg.mxu0
      %3248 = vmatpush.bf16.msra.mxu0 %v2946
      %3249 = vmatpush.bf16.msra.mxu0 %v2942
      %3250 = vmatpush.bf16.msra.mxu0 %v2938
      %3251 = vmatpush.bf16.msra.mxu0 %v2934
      %3252 = vmatpush.bf16.msra.mxu0 %v2930
      %3253 = vmatpush.bf16.msra.mxu0 %v2926
      %3254 = vmatpush.bf16.msra.mxu0 %v2922
      %3255 = vmatpush.bf16.msra.mxu0 %v2918
      %3256 = vmatmul.bf16.gmra.mxu0 %v2639
      %v3257 = vpop.f32.mrf.mxu0
      %v3258 = vadd.f32 %v2620, %v3257
      %v3259 = vpop.f32.mrf.mxu0
      %v3260 = vadd.f32 %v2625, %v3259
      %3261 = vdwg.mxu0
      %3262 = vmatpush.bf16.msra.mxu0 %v2978
      %3263 = vmatpush.bf16.msra.mxu0 %v2974
      %3264 = vmatpush.bf16.msra.mxu0 %v2970
      %3265 = vmatpush.bf16.msra.mxu0 %v2966
      %3266 = vmatpush.bf16.msra.mxu0 %v2962
      %3267 = vmatpush.bf16.msra.mxu0 %v2958
      %3268 = vmatpush.bf16.msra.mxu0 %v2954
      %3269 = vmatpush.bf16.msra.mxu0 %v2950
      %3270 = vmatmul.bf16.gmra.mxu0 %v2640
      %v3271 = vpop.f32.mrf.mxu0
      %v3272 = vadd.f32 %v3258, %v3271
      %v3273 = vpop.f32.mrf.mxu0
      %v3274 = vadd.f32 %v3260, %v3273
      %3275 = vdwg.mxu0
      %3276 = vmatpush.bf16.msra.mxu0 %v3010
      %3277 = vmatpush.bf16.msra.mxu0 %v3006
      %3278 = vmatpush.bf16.msra.mxu0 %v3002
      %3279 = vmatpush.bf16.msra.mxu0 %v2998
      %3280 = vmatpush.bf16.msra.mxu0 %v2994
      %3281 = vmatpush.bf16.msra.mxu0 %v2990
      %3282 = vmatpush.bf16.msra.mxu0 %v2986
      %3283 = vmatpush.bf16.msra.mxu0 %v2982
      %3284 = vmatmul.bf16.gmra.mxu0 %v2641
      %v3285 = vpop.f32.mrf.mxu0
      %v3286 = vadd.f32 %v3272, %v3285
      %v3287 = vpop.f32.mrf.mxu0
      %v3288 = vadd.f32 %v3274, %v3287
      %3289 = vdwg.mxu0
      %3290 = vmatpush.bf16.msra.mxu0 0
      %3291 = vmatpush.bf16.msra.mxu0 0
      %3292 = vmatpush.bf16.msra.mxu0 0
      %3293 = vmatpush.bf16.msra.mxu0 0
      %3294 = vmatpush.bf16.msra.mxu0 0
      %3295 = vmatpush.bf16.msra.mxu0 %v3022
      %3296 = vmatpush.bf16.msra.mxu0 %v3018
      %3297 = vmatpush.bf16.msra.mxu0 %v3014
      %3298 = vmatmul.bf16.gmra.mxu0 %v3134
      %v3299 = vpop.f32.mrf.mxu0
      %v3300 = vadd.f32 %v3286, %v3299
      %v3301 = vpop.f32.mrf.mxu0
      %v3302 = vadd.f32 %v3288, %v3301
      %3303 = vdwg.mxu0
      %3304 = vmatpush.bf16.msra.mxu0 %v2947
      %3305 = vmatpush.bf16.msra.mxu0 %v2943
      %3306 = vmatpush.bf16.msra.mxu0 %v2939
      %3307 = vmatpush.bf16.msra.mxu0 %v2935
      %3308 = vmatpush.bf16.msra.mxu0 %v2931
      %3309 = vmatpush.bf16.msra.mxu0 %v2927
      %3310 = vmatpush.bf16.msra.mxu0 %v2923
      %3311 = vmatpush.bf16.msra.mxu0 %v2919
      %3312 = vmatmul.bf16.gmra.mxu0 %v2639
      %v3313 = vpop.f32.mrf.mxu0
      %v3314 = vadd.f32 %v2620, %v3313
      %v3315 = vpop.f32.mrf.mxu0
      %v3316 = vadd.f32 %v2625, %v3315
      %3317 = vdwg.mxu0
      %3318 = vmatpush.bf16.msra.mxu0 %v2979
      %3319 = vmatpush.bf16.msra.mxu0 %v2975
      %3320 = vmatpush.bf16.msra.mxu0 %v2971
      %3321 = vmatpush.bf16.msra.mxu0 %v2967
      %3322 = vmatpush.bf16.msra.mxu0 %v2963
      %3323 = vmatpush.bf16.msra.mxu0 %v2959
      %3324 = vmatpush.bf16.msra.mxu0 %v2955
      %3325 = vmatpush.bf16.msra.mxu0 %v2951
      %3326 = vmatmul.bf16.gmra.mxu0 %v2640
      %v3327 = vpop.f32.mrf.mxu0
      %v3328 = vadd.f32 %v3314, %v3327
      %v3329 = vpop.f32.mrf.mxu0
      %v3330 = vadd.f32 %v3316, %v3329
      %3331 = vdwg.mxu0
      %3332 = vmatpush.bf16.msra.mxu0 %v3011
      %3333 = vmatpush.bf16.msra.mxu0 %v3007
      %3334 = vmatpush.bf16.msra.mxu0 %v3003
      %3335 = vmatpush.bf16.msra.mxu0 %v2999
      %3336 = vmatpush.bf16.msra.mxu0 %v2995
      %3337 = vmatpush.bf16.msra.mxu0 %v2991
      %3338 = vmatpush.bf16.msra.mxu0 %v2987
      %3339 = vmatpush.bf16.msra.mxu0 %v2983
      %3340 = vmatmul.bf16.gmra.mxu0 %v2641
      %v3341 = vpop.f32.mrf.mxu0
      %v3342 = vadd.f32 %v3328, %v3341
      %v3343 = vpop.f32.mrf.mxu0
      %v3344 = vadd.f32 %v3330, %v3343
      %3345 = vdwg.mxu0
      %3346 = vmatpush.bf16.msra.mxu0 0
      %3347 = vmatpush.bf16.msra.mxu0 0
      %3348 = vmatpush.bf16.msra.mxu0 0
      %3349 = vmatpush.bf16.msra.mxu0 0
      %3350 = vmatpush.bf16.msra.mxu0 0
      %3351 = vmatpush.bf16.msra.mxu0 %v3023
      %3352 = vmatpush.bf16.msra.mxu0 %v3019
      %3353 = vmatpush.bf16.msra.mxu0 %v3015
      %3354 = vmatmul.bf16.gmra.mxu0 %v3134
      %v3355 = vpop.f32.mrf.mxu0
      %v3356 = vadd.f32 %v3342, %v3355
      %v3357 = vpop.f32.mrf.mxu0
      %v3358 = vadd.f32 %v3344, %v3357
      %3359 = vdwg.mxu0
      %v3360 = vld [vmem:[%s429] sm:$0xff]
      %v3361 = vld [vmem:[%s429 + $0x8] sm:$0xff]
      %v3362 = vld [vmem:[%s434] sm:$0xff]
      %v3363 = vld [vmem:[%s434 + $0x8] sm:$0xff]
      %v3364 = vsel %vm1732, %v3188, 0.0
      %v3365 = vsel %vm1733, %v3244, 0.0
      %v3366 = vsel %vm1732, %v3190, 0.0
      %v3367 = vsel %vm1733, %v3246, 0.0
      %v3368 = vadd.f32 %v3364, %v3365
      %3369 = vadd.xlane.f32.xlu0 %v3368
      %v3370 = vpop.xlane.xlu0 %3369
      %v3371 = vadd.f32 %v3366, %v3367
      %3372 = vadd.xlane.f32.xlu0 %v3371
      %v3373 = vpop.xlane.xlu0 %3372
      %v3374 = vrot.slane %v3370, 1
      %v3375 = vrot.slane %v3373, 1
      %v3376 = vsel %vm1748, %v3374, %v3375
      %v3377 = vsel %vm1748, %v3375, %v3374
      %v3378 = vrot.slane %v3370, 7
      %v3379 = vrot.slane %v3373, 7
      %v3380 = vsel %vm1753, %v3378, %v3379
      %v3381 = vsel %vm1753, %v3379, %v3378
      %v3382 = vsel %vm1781, %v3376, %v3381
      %v3383 = vsel %vm1782, %v3377, %v3380
      %v3384 = vadd.f32 %v3370, %v3382
      %v3385 = vadd.f32 %v3373, %v3383
      %v3386 = vmul.f32 %v3384, 0.0078125
      %v3387 = vmul.f32 %v3385, 0.0078125
      %3389 = vset.pattern.permute.xlu0 0
      %3390 = vperm.xlu0 %3389, %v3386
      %v3391 = vpop.permute.xlu0 %3390
      %3394 = vset.pattern.permute.xlu0 0
      %3395 = vperm.xlu0 %3394, %v3387
      %v3396 = vpop.permute.xlu0 %3395
      %v3398 = vsub.f32 %v3188, %v3391
      %v3399 = vsub.f32 %v3244, %v3391
      %v3400 = vsub.f32 %v3190, %v3396
      %v3401 = vsub.f32 %v3246, %v3396
      %v3402 = vsel %vm1732, %v3398, 0.0
      %v3403 = vsel %vm1733, %v3399, 0.0
      %v3404 = vsel %vm1732, %v3400, 0.0
      %v3405 = vsel %vm1733, %v3401, 0.0
      %v3406 = vmul.f32 %v3402, %v3402
      %v3407 = vmul.f32 %v3403, %v3403
      %v3408 = vmul.f32 %v3404, %v3404
      %v3409 = vmul.f32 %v3405, %v3405
      %v3410 = vadd.f32 %v3406, %v3407
      %3411 = vadd.xlane.f32.xlu0 %v3410
      %v3412 = vpop.xlane.xlu0 %3411
      %v3413 = vadd.f32 %v3408, %v3409
      %3414 = vadd.xlane.f32.xlu0 %v3413
      %v3415 = vpop.xlane.xlu0 %3414
      %v3416 = vrot.slane %v3412, 1
      %v3417 = vrot.slane %v3415, 1
      %v3418 = vsel %vm1748, %v3416, %v3417
      %v3419 = vsel %vm1748, %v3417, %v3416
      %v3420 = vrot.slane %v3412, 7
      %v3421 = vrot.slane %v3415, 7
      %v3422 = vsel %vm1753, %v3420, %v3421
      %v3423 = vsel %vm1753, %v3421, %v3420
      %v3424 = vsel %vm1781, %v3418, %v3423
      %v3425 = vsel %vm1782, %v3419, %v3422
      %v3426 = vadd.f32 %v3412, %v3424
      %v3427 = vadd.f32 %v3415, %v3425
      %v3428 = vmul.f32 %v3426, 0.0078125
      %v3429 = vmul.f32 %v3427, 0.0078125
      %v3430 = vadd.f32 %v3428, 1e-05
      %v3431 = vadd.f32 %v3429, 1e-05
      %v3432 = vrsqrt.pop %v3430
      %v3433 = vmul.f32 %v3432, %v3430
      %v3434 = vmul.f32 %v3433, %v3432
      %v3435 = vmul.f32 0.5, %v3434
      %v3436 = vsub.f32 1.5, %v3435
      %v3437 = vmul.f32 %v3432, %v3436
      %vm3438 = vweird.f32 %v3430
      %vm3439 = vweird.f32 %v3432
      %vm3440 = vmor %vm3438, %vm3439
      %v3441 = vsel %vm3440, %v3432, %v3437
      %v3442 = vrsqrt.pop %v3431
      %v3443 = vmul.f32 %v3442, %v3431
      %v3444 = vmul.f32 %v3443, %v3442
      %v3445 = vmul.f32 0.5, %v3444
      %v3446 = vsub.f32 1.5, %v3445
      %v3447 = vmul.f32 %v3442, %v3446
      %vm3448 = vweird.f32 %v3431
      %vm3449 = vweird.f32 %v3442
      %vm3450 = vmor %vm3448, %vm3449
      %v3451 = vsel %vm3450, %v3442, %v3447
      %3453 = vset.pattern.permute.xlu0 0
      %3454 = vperm.xlu0 %3453, %v3441
      %v3455 = vpop.permute.xlu0 %3454
      %3458 = vset.pattern.permute.xlu0 0
      %3459 = vperm.xlu0 %3458, %v3451
      %v3460 = vpop.permute.xlu0 %3459
      %v3462 = vmul.f32 %v3398, %v3455
      %v3463 = vmul.f32 %v3399, %v3455
      %v3464 = vmul.f32 %v3400, %v3460
      %v3465 = vmul.f32 %v3401, %v3460
      %3467 = vset.pattern.permute.xlu0 0
      %3468 = vperm.xlu0 %3467, %v3360
      %v3469 = vpop.permute.xlu0 %3468
      %3472 = vset.pattern.permute.xlu0 0
      %3473 = vperm.xlu0 %3472, %v3361
      %v3474 = vpop.permute.xlu0 %3473
      %v3476 = vmul.f32 %v3462, %v3469
      %v3477 = vmul.f32 %v3463, %v3469
      %v3478 = vmul.f32 %v3464, %v3474
      %v3479 = vmul.f32 %v3465, %v3474
      %3481 = vset.pattern.permute.xlu0 0
      %3482 = vperm.xlu0 %3481, %v3362
      %v3483 = vpop.permute.xlu0 %3482
      %3486 = vset.pattern.permute.xlu0 0
      %3487 = vperm.xlu0 %3486, %v3363
      %v3488 = vpop.permute.xlu0 %3487
      %v3490 = vadd.f32 %v3476, %v3483
      %v3491 = vadd.f32 %v3477, %v3483
      %v3492 = vadd.f32 %v3478, %v3488
      %v3493 = vadd.f32 %v3479, %v3488
      %v3494 = vmax.f32 %v3490, 0.0
      %v3495 = vmax.f32 %v3491, 0.0
      %v3496 = vmax.f32 %v3492, 0.0
      %v3497 = vmax.f32 %v3493, 0.0
      %v3498 = vsel %vm1732, %v3494, 0.0
      %v3499 = vsel %vm1733, %v3495, 0.0
      %v3500 = vsel %vm1732, %v3496, 0.0
      %v3501 = vsel %vm1733, %v3497, 0.0
      %3502 = vst [vmem:[%s439] sm:$0xff] %v3498
      %3503 = vst [vmem:[%s439 + $0x8] sm:$0xff] %v3499
      %3504 = vst [vmem:[%s439 + $0x20] sm:$0xff] %v3500
      %3505 = vst [vmem:[%s439 + $0x28] sm:$0xff] %v3501
      %v3506 = vsel %vm1912, %v3300, 0.0
      %v3507 = vsel %vm1913, %v3356, 0.0
      %v3508 = vsel %vm1912, %v3302, 0.0
      %v3509 = vsel %vm1913, %v3358, 0.0
      %v3510 = vadd.f32 %v3506, %v3507
      %3511 = vadd.xlane.f32.xlu0 %v3510
      %v3512 = vpop.xlane.xlu0 %3511
      %v3513 = vadd.f32 %v3508, %v3509
      %3514 = vadd.xlane.f32.xlu0 %v3513
      %v3515 = vpop.xlane.xlu0 %3514
      %v3516 = vrot.slane %v3512, 1
      %v3517 = vrot.slane %v3515, 1
      %v3518 = vsel %vm1748, %v3516, %v3517
      %v3519 = vsel %vm1748, %v3517, %v3516
      %v3520 = vrot.slane %v3512, 7
      %v3521 = vrot.slane %v3515, 7
      %v3522 = vsel %vm1753, %v3520, %v3521
      %v3523 = vsel %vm1753, %v3521, %v3520
      %v3524 = vsel %vm1781, %v3518, %v3523
      %v3525 = vsel %vm1782, %v3519, %v3522
      %v3526 = vadd.f32 %v3512, %v3524
      %v3527 = vadd.f32 %v3515, %v3525
      %v3528 = vmul.f32 %v3526, 0.0078125
      %v3529 = vmul.f32 %v3527, 0.0078125
      %3531 = vset.pattern.permute.xlu0 0
      %3532 = vperm.xlu0 %3531, %v3528
      %v3533 = vpop.permute.xlu0 %3532
      %3536 = vset.pattern.permute.xlu0 0
      %3537 = vperm.xlu0 %3536, %v3529
      %v3538 = vpop.permute.xlu0 %3537
      %v3540 = vsub.f32 %v3300, %v3533
      %v3541 = vsub.f32 %v3356, %v3533
      %v3542 = vsub.f32 %v3302, %v3538
      %v3543 = vsub.f32 %v3358, %v3538
      %v3544 = vsel %vm1912, %v3540, 0.0
      %v3545 = vsel %vm1913, %v3541, 0.0
      %v3546 = vsel %vm1912, %v3542, 0.0
      %v3547 = vsel %vm1913, %v3543, 0.0
      %v3548 = vmul.f32 %v3544, %v3544
      %v3549 = vmul.f32 %v3545, %v3545
      %v3550 = vmul.f32 %v3546, %v3546
      %v3551 = vmul.f32 %v3547, %v3547
      %v3552 = vadd.f32 %v3548, %v3549
      %3553 = vadd.xlane.f32.xlu0 %v3552
      %v3554 = vpop.xlane.xlu0 %3553
      %v3555 = vadd.f32 %v3550, %v3551
      %3556 = vadd.xlane.f32.xlu0 %v3555
      %v3557 = vpop.xlane.xlu0 %3556
      %v3558 = vrot.slane %v3554, 1
      %v3559 = vrot.slane %v3557, 1
      %v3560 = vsel %vm1748, %v3558, %v3559
      %v3561 = vsel %vm1748, %v3559, %v3558
      %v3562 = vrot.slane %v3554, 7
      %v3563 = vrot.slane %v3557, 7
      %v3564 = vsel %vm1753, %v3562, %v3563
      %v3565 = vsel %vm1753, %v3563, %v3562
      %v3566 = vsel %vm1781, %v3560, %v3565
      %v3567 = vsel %vm1782, %v3561, %v3564
      %v3568 = vadd.f32 %v3554, %v3566
      %v3569 = vadd.f32 %v3557, %v3567
      %v3570 = vmul.f32 %v3568, 0.0078125
      %v3571 = vmul.f32 %v3569, 0.0078125
      %v3572 = vadd.f32 %v3570, 1e-05
      %v3573 = vadd.f32 %v3571, 1e-05
      %v3574 = vrsqrt.pop %v3572
      %v3575 = vmul.f32 %v3574, %v3572
      %v3576 = vmul.f32 %v3575, %v3574
      %v3577 = vmul.f32 0.5, %v3576
      %v3578 = vsub.f32 1.5, %v3577
      %v3579 = vmul.f32 %v3574, %v3578
      %vm3580 = vweird.f32 %v3572
      %vm3581 = vweird.f32 %v3574
      %vm3582 = vmor %vm3580, %vm3581
      %v3583 = vsel %vm3582, %v3574, %v3579
      %v3584 = vrsqrt.pop %v3573
      %v3585 = vmul.f32 %v3584, %v3573
      %v3586 = vmul.f32 %v3585, %v3584
      %v3587 = vmul.f32 0.5, %v3586
      %v3588 = vsub.f32 1.5, %v3587
      %v3589 = vmul.f32 %v3584, %v3588
      %vm3590 = vweird.f32 %v3573
      %vm3591 = vweird.f32 %v3584
      %vm3592 = vmor %vm3590, %vm3591
      %v3593 = vsel %vm3592, %v3584, %v3589
      %3595 = vset.pattern.permute.xlu0 0
      %3596 = vperm.xlu0 %3595, %v3583
      %v3597 = vpop.permute.xlu0 %3596
      %3600 = vset.pattern.permute.xlu0 0
      %3601 = vperm.xlu0 %3600, %v3593
      %v3602 = vpop.permute.xlu0 %3601
      %v3604 = vmul.f32 %v3540, %v3597
      %v3605 = vmul.f32 %v3541, %v3597
      %v3606 = vmul.f32 %v3542, %v3602
      %v3607 = vmul.f32 %v3543, %v3602
      %v3608 = vmul.f32 %v3604, %v3469
      %v3609 = vmul.f32 %v3605, %v3469
      %v3610 = vmul.f32 %v3606, %v3474
      %v3611 = vmul.f32 %v3607, %v3474
      %v3612 = vadd.f32 %v3608, %v3483
      %v3613 = vadd.f32 %v3609, %v3483
      %v3614 = vadd.f32 %v3610, %v3488
      %v3615 = vadd.f32 %v3611, %v3488
      %v3616 = vmax.f32 %v3612, 0.0
      %v3617 = vmax.f32 %v3613, 0.0
      %v3618 = vmax.f32 %v3614, 0.0
      %v3619 = vmax.f32 %v3615, 0.0
      %v3620 = vsel %vm1912, %v3616, 0.0
      %v3621 = vsel %vm1913, %v3617, 0.0
      %v3622 = vsel %vm1912, %v3618, 0.0
      %v3623 = vsel %vm1913, %v3619, 0.0
      %3624 = vst [vmem:[%s439 + $0x10] sm:$0xff] %v3620
      %3625 = vst [vmem:[%s439 + $0x18] sm:$0xff] %v3621
      %3626 = vst [vmem:[%s439 + $0x30] sm:$0xff] %v3622
      %3627 = vst [vmem:[%s439 + $0x38] sm:$0xff] %v3623
      %p3628 = scmp.lt.s32.totalorder %s21, 1
      %s3629 = scalar_select %p3628, %s21, 1
      %s3630 = smul.addr %s3629, 8
      %s3631 = smul.addr %s3630, 8
      %s3632 = scalar_lea.vmem %s10, %s3631
      // Predicated region
      $region61: #{down_forward.1} parent=59 // pred_check
        %p3633 = pneg %p274
      $region62: #{down_forward.1} parent=59 // pred_check_branch
        %3635 = sbr.rel (%p3633) target = $region64
      $region63: #{down_forward.1} parent=59 // pred_region
        _
      $region64: #{down_forward.1} parent=59 // pred_fallthru
        _
    $region60: #{down_forward.1} parent=5 // pred_fallthru
      _
    %p3636 = scmp.le.s32.totalorder 2, %s16
    // Predicated region
    $region65: #{down_forward.1} parent=5 // pred_check
      %p3637 = pneg %p3636
    $region66: #{down_forward.1} parent=5 // pred_check_branch
      %3639 = sbr.rel (%p3637) target = $region68
    $region67: #{down_forward.1} parent=5 // pred_region
      %s3640 = ssub.s32 %s16, 2
      // Predicated region
      $region69: #{down_forward.1} parent=67 // pred_check
        %p3641 = pneg %p280
      $region70: #{down_forward.1} parent=67 // pred_check_branch
        %3643 = sbr.rel (%p3641) target = $region72
      $region71: #{down_forward.1} parent=67 // pred_region
        %p3644 = scmp.lt.s32.totalorder %s22, 1
        %s3645 = scalar_select %p3644, %s22, 1
        %s3646 = smul.addr %s3645, 8
        %s3647 = smul.addr %s3646, 8
        %s3648 = scalar_lea.vmem %s10, %s3647
      $region72: #{down_forward.1} parent=67 // pred_fallthru
        _
    $region68: #{down_forward.1} parent=5 // pred_fallthru
      _
  $region6: #{down_forward.1} parent=0 // loop_footer
    %s20 = sadd.s32 1, %s16
  $region7: #{down_forward.1} parent=0 // loop_footer_branch
    %15 = sbr.rel target = $region3
  $region8: #{down_forward.1} parent=0 // loop_exit
    _

</llo_original>
